<compile_context>
chip_gen: v7x
topology: tpu7x:2x2x1
jax: 0.10.0
libtpu: 0.0.40
codegen_flags: <defaults>
</compile_context>

<pallas_src>
import functools
import math

import jax
import jax.numpy as jnp
import numpy as np
from jax.experimental import pallas as pl
from jax.experimental.pallas import tpu as pltpu


_SQRT_HALF = 1.0 / math.sqrt(2.0)
_LANES = 128


def _round_up(x, m):
    return ((x + m - 1) // m) * m


# ----------------------- slab layouts (8-aligned row bands) --------------------

def _attn_layout(d, n):
    """Row offsets inside the attention-weight slab (also holds the score mask)."""
    rows, lay = 0, {}
    for name, nrows in (("a1q", d + 1), ("a1kv", d + 1), ("a1o", d + 1),
                        ("a2qkv", d + 1), ("a2o", d + 1), ("mask", n)):
        lay[name] = rows
        rows += _round_up(nrows, 8)
    return lay, rows


def _ffn_layout(d):
    """Row offsets inside the FFN/combination/norm slab."""
    rows, lay = 0, {}
    for name, nrows in (("c", 2 * d + 1), ("f1", d + 1), ("f2", 4 * d + 1), ("nm", 2)):
        lay[name] = rows
        rows += _round_up(nrows, 8)
    return lay, rows


# ----------------------------- kernel-side math helpers ------------------------

def _erf(x):
    # Abramowitz & Stegun 7.1.26 (|error| <= 1.5e-7); the divide goes to the
    # EUP via the approximate reciprocal (review suggestion).
    p = 0.3275911
    a1, a2, a3, a4, a5 = 0.254829592, -0.284496736, 1.421413741, -1.453152027, 1.061405429
    ax = jnp.abs(x)
    t = pl.reciprocal(1.0 + p * ax, approx=True)
    poly = ((((a5 * t + a4) * t + a3) * t + a2) * t + a1) * t
    y = 1.0 - poly * jnp.exp(-ax * ax)
    return jnp.where(x >= 0, y, -y)


def _gelu(x):
    # torch.nn.GELU default = exact erf form.
    return 0.5 * x * (1.0 + _erf(x * _SQRT_HALF))


def _softmax_last(x):
    m = jnp.max(x, axis=-1, keepdims=True)
    e = jnp.exp(x - m)
    return e * pl.reciprocal(jnp.sum(e, axis=-1, keepdims=True), approx=True)


def _linear(x, slab_ref, row, din, dout):
    """y = x @ W + b, with W in slab rows [row, row+din) and b in row row+din."""
    w = slab_ref[row:row + din, 0:dout]
    b = slab_ref[row + din:row + din + 1, 0:dout]
    return jnp.dot(x, w, preferred_element_type=jnp.float32) + b


def _mha_core(q, k, v, mask_bias, num_heads):
    """Multi-head attention over all batch-interleaved rows at once.

    q, k, v: (N, D) with N = B*S; cross-batch query/key pairs are removed by
    the additive mask (-1e30).  Per-head contexts are concatenated so the
    output projection runs as a single (N, D) @ (D, D) matmul."""
    n, d = q.shape
    hd = d // num_heads
    ctx = []
    for h in range(num_heads):                         # static unroll (H = 4)
        sl = slice(h * hd, (h + 1) * hd)
        s = jax.lax.dot_general(q[:, sl], k[:, sl],
                                (((1,), (1,)), ((), ())),
                                preferred_element_type=jnp.float32)   # (N, N)
        p = _softmax_last(s + mask_bias)
        ctx.append(jnp.dot(p, v[:, sl], preferred_element_type=jnp.float32))
    return jnp.concatenate(ctx, axis=-1)               # (N, D)


# ----------------------------- Pallas kernel ----------------------------------

def _block_kernel(num_heads, lay_a, lay_f,
                  ir_ref, vis_ref, wa_ref, wf_hbm_ref,
                  out_ref, wf_ref, dma_sem):
    n, d = ir_ref.shape

    # Kick off the FFN/comb/norm weight DMA immediately; it overlaps with both
    # attention stages and is only waited on right before linear_combination.
    wf_copy = pltpu.make_async_copy(wf_hbm_ref, wf_ref, dma_sem)
    wf_copy.start()

    x_ir = ir_ref[...]                                 # (N, D)
    x_vis = vis_ref[...]

    # additive score mask packed alongside the attention weights.
    rm = lay_a["mask"]
    mask_bias = wa_ref[rm:rm + n, 0:n]                 # (N, N)

    # custom_attn(infrared, visible, visible): Q from infrared (1/sqrt(hd)
    # folded into the slab), K/V from visible via one fused (D, 2D) matmul.
    q1 = _linear(x_ir, wa_ref, lay_a["a1q"], d, d)
    kv1 = _linear(x_vis, wa_ref, lay_a["a1kv"], d, 2 * d)
    ctx1 = _mha_core(q1, kv1[:, :d], kv1[:, d:], mask_bias, num_heads)
    attn1 = _linear(ctx1, wa_ref, lay_a["a1o"], d, d)

    # weighted_attn(attn1, attn1, attn1): one fused (D, 3D) QKV projection.
    qkv2 = _linear(attn1, wa_ref, lay_a["a2qkv"], d, 3 * d)
    ctx2 = _mha_core(qkv2[:, :d], qkv2[:, d:2 * d], qkv2[:, 2 * d:], mask_bias, num_heads)
    attn2 = _linear(ctx2, wa_ref, lay_a["a2o"], d, d)

    # FFN weights must be resident from here on.
    wf_copy.wait()

    # linear_combination(cat([visible, weighted], -1)) without the concat.
    rc = lay_f["c"]
    comb = (jnp.dot(x_vis, wf_ref[rc:rc + d, 0:d], preferred_element_type=jnp.float32)
            + jnp.dot(attn2, wf_ref[rc + d:rc + 2 * d, 0:d], preferred_element_type=jnp.float32)
            + wf_ref[rc + 2 * d:rc + 2 * d + 1, 0:d])

    # feed forward: Linear -> GELU (exact erf) -> Linear.
    hidden = _gelu(_linear(comb, wf_ref, lay_f["f1"], d, 4 * d))
    ffn = _linear(hidden, wf_ref, lay_f["f2"], 4 * d, d)

    # residual + LayerNorm (eps = 1e-5, biased variance, like torch).
    x = x_vis + ffn
    mean = jnp.mean(x, axis=-1, keepdims=True)
    var = jnp.mean((x - mean) ** 2, axis=-1, keepdims=True)
    y = (x - mean) * jax.lax.rsqrt(var + 1e-5)
    rn = lay_f["nm"]
    out_ref[...] = y * wf_ref[rn:rn + 1, 0:d] + wf_ref[rn + 1:rn + 2, 0:d]


# ----------------------------- parameter handling -----------------------------

def init_params(key, dim):
    """Deterministic synthetic parameters with the same shapes as the module."""
    ks = list(jax.random.split(key, 16))

    def nrm(k, shape, scale=0.05):
        return scale * jax.random.normal(k, shape, jnp.float32)

    def mha_params(k1, k2):
        return {
            "in_proj_weight": nrm(k1, (3 * dim, dim)),
            "in_proj_bias": nrm(k2, (3 * dim,)),
            "out_proj_weight": nrm(jax.random.fold_in(k1, 1), (dim, dim)),
            "out_proj_bias": nrm(jax.random.fold_in(k2, 1), (dim,)),
        }

    return {
        "custom_attn": mha_params(ks[0], ks[1]),
        "weighted_attn": mha_params(ks[2], ks[3]),
        "linear_combination": {"weight": nrm(ks[4], (dim, 2 * dim)),
                               "bias": nrm(ks[5], (dim,))},
        "ffn1": {"weight": nrm(ks[6], (4 * dim, dim)),
                 "bias": nrm(ks[7], (4 * dim,))},
        "ffn2": {"weight": nrm(ks[8], (dim, 4 * dim)),
                 "bias": nrm(ks[9], (dim,))},
        "norm": {"weight": jnp.ones((dim,), jnp.float32),
                 "bias": jnp.zeros((dim,), jnp.float32)},
    }


def _prepare_weights(params, dim, num_heads, n, batch):
    """Pack torch-layout params into two lane-padded f32 slabs.

    Each linear occupies rows [off, off+in) (pre-transposed weight, so
    y = x @ W + b) plus one bias row, all starting at lane 0 of a 128-lane
    slab, at 8-aligned row offsets.  The attention slab also carries the
    additive (n, n) batch mask used by the in-kernel masked softmax."""
    d = dim
    scale = 1.0 / math.sqrt(d // num_heads)

    def blk(w_torch, b):   # (out, in) torch weight -> (in + 1, out) slab block
        return jnp.concatenate([jnp.transpose(w_torch).astype(jnp.float32),
                                b.reshape(1, -1).astype(jnp.float32)], axis=0)

    p1 = params["custom_attn"]
    w1, b1 = p1["in_proj_weight"], p1["in_proj_bias"]
    p2 = params["weighted_attn"]
    w2, b2 = p2["in_proj_weight"], p2["in_proj_bias"]

    idx = np.arange(n)
    same = (idx[:, None] % batch) == (idx[None, :] % batch)
    mask = jnp.asarray(np.where(same, 0.0, -1e30).astype(np.float32))

    blocks_a = {
        # 1/sqrt(head_dim) query scaling folded into the Q projection.
        "a1q": blk(w1[:d] * scale, b1[:d] * scale),
        "a1kv": blk(w1[d:], b1[d:]),
        "a1o": blk(p1["out_proj_weight"], p1["out_proj_bias"]),
        "a2qkv": blk(jnp.concatenate([w2[:d] * scale, w2[d:]], axis=0),
                     jnp.concatenate([b2[:d] * scale, b2[d:]], axis=0)),
        "a2o": blk(p2["out_proj_weight"], p2["out_proj_bias"]),
        "mask": mask,
    }

    pc = params["linear_combination"]
    blocks_f = {
        # Wc^T rows [0:D] multiply `visible`, rows [D:2D] multiply `weighted`.
        "c": jnp.concatenate([jnp.transpose(pc["weight"]),
                              pc["bias"].reshape(1, d)], axis=0),
        "f1": blk(params["ffn1"]["weight"], params["ffn1"]["bias"]),
        "f2": blk(params["ffn2"]["weight"], params["ffn2"]["bias"]),
        "nm": jnp.stack([params["norm"]["weight"], params["norm"]["bias"]], axis=0),
    }

    lay_a, rows_a = _attn_layout(d, n)
    lay_f, rows_f = _ffn_layout(d)
    lanes_a = _round_up(max(3 * d, n), _LANES)
    lanes_f = _round_up(4 * d, _LANES)

    def pack(blocks, lay, rows, lanes):
        slab = jnp.zeros((rows, lanes), jnp.float32)
        for name, b in blocks.items():
            r = lay[name]
            slab = slab.at[r:r + b.shape[0], :b.shape[1]].set(b)
        return slab

    return pack(blocks_a, lay_a, rows_a, lanes_a), pack(blocks_f, lay_f, rows_f, lanes_f)


# ----------------------------- wrapper -----------------------------------------

@functools.partial(jax.jit, static_argnames=("num_heads",))
def _forward(infrared, visible, wa, wf, num_heads):
    S, B, D = infrared.shape
    n = S * B
    # free row-major merge of (S, B) — no transpose, no data movement.
    ir = infrared.reshape(n, D).astype(jnp.float32)
    vis = visible.reshape(n, D).astype(jnp.float32)

    lay_a, _ = _attn_layout(D, n)
    lay_f, _ = _ffn_layout(D)
    kernel = functools.partial(_block_kernel, num_heads, lay_a, lay_f)

    out = pl.pallas_call(
        kernel,
        out_shape=jax.ShapeDtypeStruct((n, D), jnp.float32),
        grid=(1,),
        in_specs=[
            pl.BlockSpec((n, D), lambda i: (0, 0)),          # infrared rows
            pl.BlockSpec((n, D), lambda i: (0, 0)),          # visible rows
            pl.BlockSpec(wa.shape, lambda i: (0, 0)),        # attention slab (VMEM)
            pl.BlockSpec(memory_space=pl.ANY),               # FFN slab stays in HBM
        ],
        out_specs=pl.BlockSpec((n, D), lambda i: (0, 0)),
        scratch_shapes=[
            pltpu.VMEM(wf.shape, jnp.float32),               # FFN slab landing buffer
            pltpu.SemaphoreType.DMA(()),
        ],
        compiler_params=pltpu.CompilerParams(
            dimension_semantics=("arbitrary",)),
    )(ir, vis, wa, wf)

    return out.reshape(S, B, D)


def enhanced_cross_modal_block(infrared, visible, params, num_heads):
    """infrared, visible: (S, B, D) float32 (torch MultiheadAttention layout).
    Returns (S, B, D) float32."""
    S, B, D = infrared.shape
    assert D % num_heads == 0, "num_heads must divide dim"
    wa, wf = _prepare_weights(params, D, num_heads, S * B, B)
    return _forward(infrared, visible, wa, wf, num_heads=num_heads)


# ----------------------------- pure-JAX reference --------------------------------

def reference_forward(infrared, visible, params, num_heads):
    """Independent pure-JAX reference of the torch module (exact softmax,
    exact erf GELU, unfused projections, explicit concat)."""
    S, B, D = infrared.shape
    H = num_heads
    hd = D // H

    def mha(xq, xkv, p):                              # xq, xkv: (B, S, D)
        w_in, b_in = p["in_proj_weight"], p["in_proj_bias"]
        q = xq @ w_in[:D].T + b_in[:D]
        k = xkv @ w_in[D:2 * D].T + b_in[D:2 * D]
        v = xkv @ w_in[2 * D:].T + b_in[2 * D:]

        def split(t):                                 # -> (B, H, S, hd)
            return t.reshape(B, S, H, hd).transpose(0, 2, 1, 3)

        qh, kh, vh = split(q) / math.sqrt(hd), split(k), split(v)
        s = jnp.einsum('bhqd,bhkd->bhqk', qh, kh)
        a = jax.nn.softmax(s, axis=-1)
        o = jnp.einsum('bhqk,bhkd->bhqd', a, vh)
        o = o.transpose(0, 2, 1, 3).reshape(B, S, D)
        return o @ p["out_proj_weight"].T + p["out_proj_bias"]

    ir = jnp.transpose(infrared, (1, 0, 2)).astype(jnp.float32)
    vis = jnp.transpose(visible, (1, 0, 2)).astype(jnp.float32)

    attn1 = mha(ir, vis, params["custom_attn"])
    attn2 = mha(attn1, attn1, params["weighted_attn"])
    comb = jnp.concatenate([vis, attn2], axis=-1)
    comb = comb @ params["linear_combination"]["weight"].T + params["linear_combination"]["bias"]
    h = jax.nn.gelu(comb @ params["ffn1"]["weight"].T + params["ffn1"]["bias"],
                    approximate=False)
    ffn = h @ params["ffn2"]["weight"].T + params["ffn2"]["bias"]
    x = vis + ffn
    mean = jnp.mean(x, axis=-1, keepdims=True)
    var = jnp.mean((x - mean) ** 2, axis=-1, keepdims=True)
    y = (x - mean) * jax.lax.rsqrt(var + 1e-5)
    y = y * params["norm"]["weight"] + params["norm"]["bias"]
    return jnp.transpose(y, (1, 0, 2))


# ----------------------------- main ---------------------------------------------

if __name__ == "__main__":
    S, B, D, H = 8, 2, 32, 4  # seq, batch, dim, num_heads

    key = jax.random.PRNGKey(0)
    k_ir, k_vis, k_params = jax.random.split(key, 3)
    infrared = jax.random.normal(k_ir, (S, B, D), jnp.float32)
    visible = jax.random.normal(k_vis, (S, B, D), jnp.float32)
    params = init_params(k_params, D)

    out = jax.block_until_ready(enhanced_cross_modal_block(infrared, visible, params, H))
    ref = jax.block_until_ready(reference_forward(infrared, visible, params, H))

    assert out.shape == (S, B, D)
    # tolerance covers the EUP approximate reciprocals (softmax denom, erf
    # polynomial) and the 1.5e-7-accurate erf polynomial vs. the exact reference.
    np.testing.assert_allclose(np.asarray(out), np.asarray(ref), rtol=5e-3, atol=5e-3)
    print("KERNEL_OK")
</pallas_src>

<mosaic_0001>
module attributes {stable_mosaic.version = 11 : i64} {
  func.func @_block_kernel(%arg0: i32, %arg1: memref<16x32xf32, #tpu.memory_space<vmem>>, %arg2: memref<16x32xf32, #tpu.memory_space<vmem>>, %arg3: memref<216x128xf32, #tpu.memory_space<vmem>>, %arg4: memref<256x128xf32, #tpu.memory_space<any>>, %arg5: memref<16x32xf32, #tpu.memory_space<vmem>>, %arg6: memref<256x128xf32, #tpu.memory_space<vmem>>, %arg7: memref<!tpu.dma_semaphore, #tpu.memory_space<semaphore_mem>>) attributes {dimension_semantics = [#tpu.dimension_semantics<arbitrary>], iteration_bounds = array<i64: 1>, scalar_prefetch = 0 : i64, scratch_operands = 2 : i64, tpu.core_type = #tpu.core_type<tc>, window_params = [{pipeline_mode = #tpu.pipeline_mode<synchronous>, transform_indices = @transform_0, window_bounds = array<i64: 16, 32>}, {pipeline_mode = #tpu.pipeline_mode<synchronous>, transform_indices = @transform_1, window_bounds = array<i64: 16, 32>}, {pipeline_mode = #tpu.pipeline_mode<synchronous>, transform_indices = @transform_2, window_bounds = array<i64: 216, 128>}, {}, {pipeline_mode = #tpu.pipeline_mode<synchronous>, transform_indices = @transform_4, window_bounds = array<i64: 16, 32>}]} {
    tpu.enqueue_dma source(%arg4 : memref<256x128xf32, #tpu.memory_space<any>>) target(%arg6 : memref<256x128xf32, #tpu.memory_space<vmem>>) target_semaphore(%arg7 : memref<!tpu.dma_semaphore, #tpu.memory_space<semaphore_mem>>)
    %c0 = arith.constant 0 : index
    %c0_0 = arith.constant 0 : index
    %0 = vector.load %arg1[%c0, %c0_0] : memref<16x32xf32, #tpu.memory_space<vmem>>, vector<16x32xf32>
    %c0_1 = arith.constant 0 : index
    %c0_2 = arith.constant 0 : index
    %1 = vector.load %arg2[%c0_1, %c0_2] : memref<16x32xf32, #tpu.memory_space<vmem>>, vector<16x32xf32>
    %c200 = arith.constant 200 : index
    %c0_3 = arith.constant 0 : index
    %2 = vector.load %arg3[%c200, %c0_3] : memref<216x128xf32, #tpu.memory_space<vmem>>, vector<16x16xf32>
    %c0_4 = arith.constant 0 : index
    %c0_5 = arith.constant 0 : index
    %3 = vector.load %arg3[%c0_4, %c0_5] : memref<216x128xf32, #tpu.memory_space<vmem>>, vector<32x32xf32>
    %c32 = arith.constant 32 : index
    %c0_6 = arith.constant 0 : index
    %4 = vector.load %arg3[%c32, %c0_6] : memref<216x128xf32, #tpu.memory_space<vmem>>, vector<1x32xf32>
    %cst = arith.constant dense<0.000000e+00> : vector<16x32xf32>
    %5 = tpu.matmul %0, %3, %cst {dimension_numbers = #tpu.dot_dimension_numbers<[1], [0], [0], [1], [0, 0, 1, 1], [], []>} : vector<16x32xf32>, vector<32x32xf32>, vector<16x32xf32> -> vector<16x32xf32>
    %6 = vector.broadcast %4 : vector<1x32xf32> to vector<16x32xf32>
    %7 = arith.addf %5, %6 : vector<16x32xf32>
    %c40 = arith.constant 40 : index
    %c0_7 = arith.constant 0 : index
    %8 = vector.load %arg3[%c40, %c0_7] : memref<216x128xf32, #tpu.memory_space<vmem>>, vector<32x64xf32>
    %c72 = arith.constant 72 : index
    %c0_8 = arith.constant 0 : index
    %9 = vector.load %arg3[%c72, %c0_8] : memref<216x128xf32, #tpu.memory_space<vmem>>, vector<1x64xf32>
    %cst_9 = arith.constant dense<0.000000e+00> : vector<16x64xf32>
    %10 = tpu.matmul %1, %8, %cst_9 {dimension_numbers = #tpu.dot_dimension_numbers<[1], [0], [0], [1], [0, 0, 1, 1], [], []>} : vector<16x32xf32>, vector<32x64xf32>, vector<16x64xf32> -> vector<16x64xf32>
    %11 = vector.broadcast %9 : vector<1x64xf32> to vector<16x64xf32>
    %12 = arith.addf %10, %11 : vector<16x64xf32>
    %13 = vector.extract_strided_slice %12 {offsets = [0, 0], sizes = [16, 32], strides = [1, 1]} : vector<16x64xf32> to vector<16x32xf32>
    %14 = vector.extract_strided_slice %12 {offsets = [0, 32], sizes = [16, 32], strides = [1, 1]} : vector<16x64xf32> to vector<16x32xf32>
    %15 = vector.extract_strided_slice %7 {offsets = [0, 0], sizes = [16, 8], strides = [1, 1]} : vector<16x32xf32> to vector<16x8xf32>
    %16 = vector.extract_strided_slice %13 {offsets = [0, 0], sizes = [16, 8], strides = [1, 1]} : vector<16x32xf32> to vector<16x8xf32>
    %cst_10 = arith.constant dense<0.000000e+00> : vector<16x16xf32>
    %17 = tpu.matmul %15, %16, %cst_10 {dimension_numbers = #tpu.dot_dimension_numbers<[1], [1], [0], [0], [0, 0, 1, 0], [], []>} : vector<16x8xf32>, vector<16x8xf32>, vector<16x16xf32> -> vector<16x16xf32>
    %18 = arith.addf %17, %2 : vector<16x16xf32>
    %cst_11 = arith.constant dense<0xFF800000> : vector<16xf32>
    %19 = vector.multi_reduction <maximumf>, %18, %cst_11 [1] : vector<16x16xf32> to vector<16xf32>
    %20 = vector.shape_cast %19 : vector<16xf32> to vector<16x1xf32>
    %21 = vector.broadcast %20 : vector<16x1xf32> to vector<16x16xf32>
    %22 = arith.subf %18, %21 : vector<16x16xf32>
    %23 = math.exp %22 : vector<16x16xf32>
    %cst_12 = arith.constant dense<0.000000e+00> : vector<16xf32>
    %24 = vector.multi_reduction <add>, %23, %cst_12 [1] : vector<16x16xf32> to vector<16xf32>
    %25 = vector.shape_cast %24 : vector<16xf32> to vector<16x1xf32>
    %26 = tpu.reciprocal %25 {approx = true} : vector<16x1xf32> -> vector<16x1xf32>
    %27 = vector.broadcast %26 : vector<16x1xf32> to vector<16x16xf32>
    %28 = arith.mulf %23, %27 : vector<16x16xf32>
    %29 = vector.extract_strided_slice %14 {offsets = [0, 0], sizes = [16, 8], strides = [1, 1]} : vector<16x32xf32> to vector<16x8xf32>
    %cst_13 = arith.constant dense<0.000000e+00> : vector<16x8xf32>
    %30 = tpu.matmul %28, %29, %cst_13 {dimension_numbers = #tpu.dot_dimension_numbers<[1], [0], [0], [1], [0, 0, 1, 1], [], []>} : vector<16x16xf32>, vector<16x8xf32>, vector<16x8xf32> -> vector<16x8xf32>
    %31 = vector.extract_strided_slice %7 {offsets = [0, 8], sizes = [16, 8], strides = [1, 1]} : vector<16x32xf32> to vector<16x8xf32>
    %32 = vector.extract_strided_slice %13 {offsets = [0, 8], sizes = [16, 8], strides = [1, 1]} : vector<16x32xf32> to vector<16x8xf32>
    %cst_14 = arith.constant dense<0.000000e+00> : vector<16x16xf32>
    %33 = tpu.matmul %31, %32, %cst_14 {dimension_numbers = #tpu.dot_dimension_numbers<[1], [1], [0], [0], [0, 0, 1, 0], [], []>} : vector<16x8xf32>, vector<16x8xf32>, vector<16x16xf32> -> vector<16x16xf32>
    %34 = arith.addf %33, %2 : vector<16x16xf32>
    %cst_15 = arith.constant dense<0xFF800000> : vector<16xf32>
    %35 = vector.multi_reduction <maximumf>, %34, %cst_15 [1] : vector<16x16xf32> to vector<16xf32>
    %36 = vector.shape_cast %35 : vector<16xf32> to vector<16x1xf32>
    %37 = vector.broadcast %36 : vector<16x1xf32> to vector<16x16xf32>
    %38 = arith.subf %34, %37 : vector<16x16xf32>
    %39 = math.exp %38 : vector<16x16xf32>
    %cst_16 = arith.constant dense<0.000000e+00> : vector<16xf32>
    %40 = vector.multi_reduction <add>, %39, %cst_16 [1] : vector<16x16xf32> to vector<16xf32>
    %41 = vector.shape_cast %40 : vector<16xf32> to vector<16x1xf32>
    %42 = tpu.reciprocal %41 {approx = true} : vector<16x1xf32> -> vector<16x1xf32>
    %43 = vector.broadcast %42 : vector<16x1xf32> to vector<16x16xf32>
    %44 = arith.mulf %39, %43 : vector<16x16xf32>
    %45 = vector.extract_strided_slice %14 {offsets = [0, 8], sizes = [16, 8], strides = [1, 1]} : vector<16x32xf32> to vector<16x8xf32>
    %cst_17 = arith.constant dense<0.000000e+00> : vector<16x8xf32>
    %46 = tpu.matmul %44, %45, %cst_17 {dimension_numbers = #tpu.dot_dimension_numbers<[1], [0], [0], [1], [0, 0, 1, 1], [], []>} : vector<16x16xf32>, vector<16x8xf32>, vector<16x8xf32> -> vector<16x8xf32>
    %47 = vector.extract_strided_slice %7 {offsets = [0, 16], sizes = [16, 8], strides = [1, 1]} : vector<16x32xf32> to vector<16x8xf32>
    %48 = vector.extract_strided_slice %13 {offsets = [0, 16], sizes = [16, 8], strides = [1, 1]} : vector<16x32xf32> to vector<16x8xf32>
    %cst_18 = arith.constant dense<0.000000e+00> : vector<16x16xf32>
    %49 = tpu.matmul %47, %48, %cst_18 {dimension_numbers = #tpu.dot_dimension_numbers<[1], [1], [0], [0], [0, 0, 1, 0], [], []>} : vector<16x8xf32>, vector<16x8xf32>, vector<16x16xf32> -> vector<16x16xf32>
    %50 = arith.addf %49, %2 : vector<16x16xf32>
    %cst_19 = arith.constant dense<0xFF800000> : vector<16xf32>
    %51 = vector.multi_reduction <maximumf>, %50, %cst_19 [1] : vector<16x16xf32> to vector<16xf32>
    %52 = vector.shape_cast %51 : vector<16xf32> to vector<16x1xf32>
    %53 = vector.broadcast %52 : vector<16x1xf32> to vector<16x16xf32>
    %54 = arith.subf %50, %53 : vector<16x16xf32>
    %55 = math.exp %54 : vector<16x16xf32>
    %cst_20 = arith.constant dense<0.000000e+00> : vector<16xf32>
    %56 = vector.multi_reduction <add>, %55, %cst_20 [1] : vector<16x16xf32> to vector<16xf32>
    %57 = vector.shape_cast %56 : vector<16xf32> to vector<16x1xf32>
    %58 = tpu.reciprocal %57 {approx = true} : vector<16x1xf32> -> vector<16x1xf32>
    %59 = vector.broadcast %58 : vector<16x1xf32> to vector<16x16xf32>
    %60 = arith.mulf %55, %59 : vector<16x16xf32>
    %61 = vector.extract_strided_slice %14 {offsets = [0, 16], sizes = [16, 8], strides = [1, 1]} : vector<16x32xf32> to vector<16x8xf32>
    %cst_21 = arith.constant dense<0.000000e+00> : vector<16x8xf32>
    %62 = tpu.matmul %60, %61, %cst_21 {dimension_numbers = #tpu.dot_dimension_numbers<[1], [0], [0], [1], [0, 0, 1, 1], [], []>} : vector<16x16xf32>, vector<16x8xf32>, vector<16x8xf32> -> vector<16x8xf32>
    %63 = vector.extract_strided_slice %7 {offsets = [0, 24], sizes = [16, 8], strides = [1, 1]} : vector<16x32xf32> to vector<16x8xf32>
    %64 = vector.extract_strided_slice %13 {offsets = [0, 24], sizes = [16, 8], strides = [1, 1]} : vector<16x32xf32> to vector<16x8xf32>
    %cst_22 = arith.constant dense<0.000000e+00> : vector<16x16xf32>
    %65 = tpu.matmul %63, %64, %cst_22 {dimension_numbers = #tpu.dot_dimension_numbers<[1], [1], [0], [0], [0, 0, 1, 0], [], []>} : vector<16x8xf32>, vector<16x8xf32>, vector<16x16xf32> -> vector<16x16xf32>
    %66 = arith.addf %65, %2 : vector<16x16xf32>
    %cst_23 = arith.constant dense<0xFF800000> : vector<16xf32>
    %67 = vector.multi_reduction <maximumf>, %66, %cst_23 [1] : vector<16x16xf32> to vector<16xf32>
    %68 = vector.shape_cast %67 : vector<16xf32> to vector<16x1xf32>
    %69 = vector.broadcast %68 : vector<16x1xf32> to vector<16x16xf32>
    %70 = arith.subf %66, %69 : vector<16x16xf32>
    %71 = math.exp %70 : vector<16x16xf32>
    %cst_24 = arith.constant dense<0.000000e+00> : vector<16xf32>
    %72 = vector.multi_reduction <add>, %71, %cst_24 [1] : vector<16x16xf32> to vector<16xf32>
    %73 = vector.shape_cast %72 : vector<16xf32> to vector<16x1xf32>
    %74 = tpu.reciprocal %73 {approx = true} : vector<16x1xf32> -> vector<16x1xf32>
    %75 = vector.broadcast %74 : vector<16x1xf32> to vector<16x16xf32>
    %76 = arith.mulf %71, %75 : vector<16x16xf32>
    %77 = vector.extract_strided_slice %14 {offsets = [0, 24], sizes = [16, 8], strides = [1, 1]} : vector<16x32xf32> to vector<16x8xf32>
    %cst_25 = arith.constant dense<0.000000e+00> : vector<16x8xf32>
    %78 = tpu.matmul %76, %77, %cst_25 {dimension_numbers = #tpu.dot_dimension_numbers<[1], [0], [0], [1], [0, 0, 1, 1], [], []>} : vector<16x16xf32>, vector<16x8xf32>, vector<16x8xf32> -> vector<16x8xf32>
    %79 = tpu.concatenate %30, %46, %62, %78 in 1 : vector<16x8xf32>, vector<16x8xf32>, vector<16x8xf32>, vector<16x8xf32> -> vector<16x32xf32>
    %c80 = arith.constant 80 : index
    %c0_26 = arith.constant 0 : index
    %80 = vector.load %arg3[%c80, %c0_26] : memref<216x128xf32, #tpu.memory_space<vmem>>, vector<32x32xf32>
    %c112 = arith.constant 112 : index
    %c0_27 = arith.constant 0 : index
    %81 = vector.load %arg3[%c112, %c0_27] : memref<216x128xf32, #tpu.memory_space<vmem>>, vector<1x32xf32>
    %cst_28 = arith.constant dense<0.000000e+00> : vector<16x32xf32>
    %82 = tpu.matmul %79, %80, %cst_28 {dimension_numbers = #tpu.dot_dimension_numbers<[1], [0], [0], [1], [0, 0, 1, 1], [], []>} : vector<16x32xf32>, vector<32x32xf32>, vector<16x32xf32> -> vector<16x32xf32>
    %83 = vector.broadcast %81 : vector<1x32xf32> to vector<16x32xf32>
    %84 = arith.addf %82, %83 : vector<16x32xf32>
    %c120 = arith.constant 120 : index
    %c0_29 = arith.constant 0 : index
    %85 = vector.load %arg3[%c120, %c0_29] : memref<216x128xf32, #tpu.memory_space<vmem>>, vector<32x96xf32>
    %c152 = arith.constant 152 : index
    %c0_30 = arith.constant 0 : index
    %86 = vector.load %arg3[%c152, %c0_30] : memref<216x128xf32, #tpu.memory_space<vmem>>, vector<1x96xf32>
    %cst_31 = arith.constant dense<0.000000e+00> : vector<16x96xf32>
    %87 = tpu.matmul %84, %85, %cst_31 {dimension_numbers = #tpu.dot_dimension_numbers<[1], [0], [0], [1], [0, 0, 1, 1], [], []>} : vector<16x32xf32>, vector<32x96xf32>, vector<16x96xf32> -> vector<16x96xf32>
    %88 = vector.broadcast %86 : vector<1x96xf32> to vector<16x96xf32>
    %89 = arith.addf %87, %88 : vector<16x96xf32>
    %90 = vector.extract_strided_slice %89 {offsets = [0, 0], sizes = [16, 32], strides = [1, 1]} : vector<16x96xf32> to vector<16x32xf32>
    %91 = vector.extract_strided_slice %89 {offsets = [0, 32], sizes = [16, 32], strides = [1, 1]} : vector<16x96xf32> to vector<16x32xf32>
    %92 = vector.extract_strided_slice %89 {offsets = [0, 64], sizes = [16, 32], strides = [1, 1]} : vector<16x96xf32> to vector<16x32xf32>
    %93 = vector.extract_strided_slice %90 {offsets = [0, 0], sizes = [16, 8], strides = [1, 1]} : vector<16x32xf32> to vector<16x8xf32>
    %94 = vector.extract_strided_slice %91 {offsets = [0, 0], sizes = [16, 8], strides = [1, 1]} : vector<16x32xf32> to vector<16x8xf32>
    %cst_32 = arith.constant dense<0.000000e+00> : vector<16x16xf32>
    %95 = tpu.matmul %93, %94, %cst_32 {dimension_numbers = #tpu.dot_dimension_numbers<[1], [1], [0], [0], [0, 0, 1, 0], [], []>} : vector<16x8xf32>, vector<16x8xf32>, vector<16x16xf32> -> vector<16x16xf32>
    %96 = arith.addf %95, %2 : vector<16x16xf32>
    %cst_33 = arith.constant dense<0xFF800000> : vector<16xf32>
    %97 = vector.multi_reduction <maximumf>, %96, %cst_33 [1] : vector<16x16xf32> to vector<16xf32>
    %98 = vector.shape_cast %97 : vector<16xf32> to vector<16x1xf32>
    %99 = vector.broadcast %98 : vector<16x1xf32> to vector<16x16xf32>
    %100 = arith.subf %96, %99 : vector<16x16xf32>
    %101 = math.exp %100 : vector<16x16xf32>
    %cst_34 = arith.constant dense<0.000000e+00> : vector<16xf32>
    %102 = vector.multi_reduction <add>, %101, %cst_34 [1] : vector<16x16xf32> to vector<16xf32>
    %103 = vector.shape_cast %102 : vector<16xf32> to vector<16x1xf32>
    %104 = tpu.reciprocal %103 {approx = true} : vector<16x1xf32> -> vector<16x1xf32>
    %105 = vector.broadcast %104 : vector<16x1xf32> to vector<16x16xf32>
    %106 = arith.mulf %101, %105 : vector<16x16xf32>
    %107 = vector.extract_strided_slice %92 {offsets = [0, 0], sizes = [16, 8], strides = [1, 1]} : vector<16x32xf32> to vector<16x8xf32>
    %cst_35 = arith.constant dense<0.000000e+00> : vector<16x8xf32>
    %108 = tpu.matmul %106, %107, %cst_35 {dimension_numbers = #tpu.dot_dimension_numbers<[1], [0], [0], [1], [0, 0, 1, 1], [], []>} : vector<16x16xf32>, vector<16x8xf32>, vector<16x8xf32> -> vector<16x8xf32>
    %109 = vector.extract_strided_slice %90 {offsets = [0, 8], sizes = [16, 8], strides = [1, 1]} : vector<16x32xf32> to vector<16x8xf32>
    %110 = vector.extract_strided_slice %91 {offsets = [0, 8], sizes = [16, 8], strides = [1, 1]} : vector<16x32xf32> to vector<16x8xf32>
    %cst_36 = arith.constant dense<0.000000e+00> : vector<16x16xf32>
    %111 = tpu.matmul %109, %110, %cst_36 {dimension_numbers = #tpu.dot_dimension_numbers<[1], [1], [0], [0], [0, 0, 1, 0], [], []>} : vector<16x8xf32>, vector<16x8xf32>, vector<16x16xf32> -> vector<16x16xf32>
    %112 = arith.addf %111, %2 : vector<16x16xf32>
    %cst_37 = arith.constant dense<0xFF800000> : vector<16xf32>
    %113 = vector.multi_reduction <maximumf>, %112, %cst_37 [1] : vector<16x16xf32> to vector<16xf32>
    %114 = vector.shape_cast %113 : vector<16xf32> to vector<16x1xf32>
    %115 = vector.broadcast %114 : vector<16x1xf32> to vector<16x16xf32>
    %116 = arith.subf %112, %115 : vector<16x16xf32>
    %117 = math.exp %116 : vector<16x16xf32>
    %cst_38 = arith.constant dense<0.000000e+00> : vector<16xf32>
    %118 = vector.multi_reduction <add>, %117, %cst_38 [1] : vector<16x16xf32> to vector<16xf32>
    %119 = vector.shape_cast %118 : vector<16xf32> to vector<16x1xf32>
    %120 = tpu.reciprocal %119 {approx = true} : vector<16x1xf32> -> vector<16x1xf32>
    %121 = vector.broadcast %120 : vector<16x1xf32> to vector<16x16xf32>
    %122 = arith.mulf %117, %121 : vector<16x16xf32>
    %123 = vector.extract_strided_slice %92 {offsets = [0, 8], sizes = [16, 8], strides = [1, 1]} : vector<16x32xf32> to vector<16x8xf32>
    %cst_39 = arith.constant dense<0.000000e+00> : vector<16x8xf32>
    %124 = tpu.matmul %122, %123, %cst_39 {dimension_numbers = #tpu.dot_dimension_numbers<[1], [0], [0], [1], [0, 0, 1, 1], [], []>} : vector<16x16xf32>, vector<16x8xf32>, vector<16x8xf32> -> vector<16x8xf32>
    %125 = vector.extract_strided_slice %90 {offsets = [0, 16], sizes = [16, 8], strides = [1, 1]} : vector<16x32xf32> to vector<16x8xf32>
    %126 = vector.extract_strided_slice %91 {offsets = [0, 16], sizes = [16, 8], strides = [1, 1]} : vector<16x32xf32> to vector<16x8xf32>
    %cst_40 = arith.constant dense<0.000000e+00> : vector<16x16xf32>
    %127 = tpu.matmul %125, %126, %cst_40 {dimension_numbers = #tpu.dot_dimension_numbers<[1], [1], [0], [0], [0, 0, 1, 0], [], []>} : vector<16x8xf32>, vector<16x8xf32>, vector<16x16xf32> -> vector<16x16xf32>
    %128 = arith.addf %127, %2 : vector<16x16xf32>
    %cst_41 = arith.constant dense<0xFF800000> : vector<16xf32>
    %129 = vector.multi_reduction <maximumf>, %128, %cst_41 [1] : vector<16x16xf32> to vector<16xf32>
    %130 = vector.shape_cast %129 : vector<16xf32> to vector<16x1xf32>
    %131 = vector.broadcast %130 : vector<16x1xf32> to vector<16x16xf32>
    %132 = arith.subf %128, %131 : vector<16x16xf32>
    %133 = math.exp %132 : vector<16x16xf32>
    %cst_42 = arith.constant dense<0.000000e+00> : vector<16xf32>
    %134 = vector.multi_reduction <add>, %133, %cst_42 [1] : vector<16x16xf32> to vector<16xf32>
    %135 = vector.shape_cast %134 : vector<16xf32> to vector<16x1xf32>
    %136 = tpu.reciprocal %135 {approx = true} : vector<16x1xf32> -> vector<16x1xf32>
    %137 = vector.broadcast %136 : vector<16x1xf32> to vector<16x16xf32>
    %138 = arith.mulf %133, %137 : vector<16x16xf32>
    %139 = vector.extract_strided_slice %92 {offsets = [0, 16], sizes = [16, 8], strides = [1, 1]} : vector<16x32xf32> to vector<16x8xf32>
    %cst_43 = arith.constant dense<0.000000e+00> : vector<16x8xf32>
    %140 = tpu.matmul %138, %139, %cst_43 {dimension_numbers = #tpu.dot_dimension_numbers<[1], [0], [0], [1], [0, 0, 1, 1], [], []>} : vector<16x16xf32>, vector<16x8xf32>, vector<16x8xf32> -> vector<16x8xf32>
    %141 = vector.extract_strided_slice %90 {offsets = [0, 24], sizes = [16, 8], strides = [1, 1]} : vector<16x32xf32> to vector<16x8xf32>
    %142 = vector.extract_strided_slice %91 {offsets = [0, 24], sizes = [16, 8], strides = [1, 1]} : vector<16x32xf32> to vector<16x8xf32>
    %cst_44 = arith.constant dense<0.000000e+00> : vector<16x16xf32>
    %143 = tpu.matmul %141, %142, %cst_44 {dimension_numbers = #tpu.dot_dimension_numbers<[1], [1], [0], [0], [0, 0, 1, 0], [], []>} : vector<16x8xf32>, vector<16x8xf32>, vector<16x16xf32> -> vector<16x16xf32>
    %144 = arith.addf %143, %2 : vector<16x16xf32>
    %cst_45 = arith.constant dense<0xFF800000> : vector<16xf32>
    %145 = vector.multi_reduction <maximumf>, %144, %cst_45 [1] : vector<16x16xf32> to vector<16xf32>
    %146 = vector.shape_cast %145 : vector<16xf32> to vector<16x1xf32>
    %147 = vector.broadcast %146 : vector<16x1xf32> to vector<16x16xf32>
    %148 = arith.subf %144, %147 : vector<16x16xf32>
    %149 = math.exp %148 : vector<16x16xf32>
    %cst_46 = arith.constant dense<0.000000e+00> : vector<16xf32>
    %150 = vector.multi_reduction <add>, %149, %cst_46 [1] : vector<16x16xf32> to vector<16xf32>
    %151 = vector.shape_cast %150 : vector<16xf32> to vector<16x1xf32>
    %152 = tpu.reciprocal %151 {approx = true} : vector<16x1xf32> -> vector<16x1xf32>
    %153 = vector.broadcast %152 : vector<16x1xf32> to vector<16x16xf32>
    %154 = arith.mulf %149, %153 : vector<16x16xf32>
    %155 = vector.extract_strided_slice %92 {offsets = [0, 24], sizes = [16, 8], strides = [1, 1]} : vector<16x32xf32> to vector<16x8xf32>
    %cst_47 = arith.constant dense<0.000000e+00> : vector<16x8xf32>
    %156 = tpu.matmul %154, %155, %cst_47 {dimension_numbers = #tpu.dot_dimension_numbers<[1], [0], [0], [1], [0, 0, 1, 1], [], []>} : vector<16x16xf32>, vector<16x8xf32>, vector<16x8xf32> -> vector<16x8xf32>
    %157 = tpu.concatenate %108, %124, %140, %156 in 1 : vector<16x8xf32>, vector<16x8xf32>, vector<16x8xf32>, vector<16x8xf32> -> vector<16x32xf32>
    %c160 = arith.constant 160 : index
    %c0_48 = arith.constant 0 : index
    %158 = vector.load %arg3[%c160, %c0_48] : memref<216x128xf32, #tpu.memory_space<vmem>>, vector<32x32xf32>
    %c192 = arith.constant 192 : index
    %c0_49 = arith.constant 0 : index
    %159 = vector.load %arg3[%c192, %c0_49] : memref<216x128xf32, #tpu.memory_space<vmem>>, vector<1x32xf32>
    %cst_50 = arith.constant dense<0.000000e+00> : vector<16x32xf32>
    %160 = tpu.matmul %157, %158, %cst_50 {dimension_numbers = #tpu.dot_dimension_numbers<[1], [0], [0], [1], [0, 0, 1, 1], [], []>} : vector<16x32xf32>, vector<32x32xf32>, vector<16x32xf32> -> vector<16x32xf32>
    %161 = vector.broadcast %159 : vector<1x32xf32> to vector<16x32xf32>
    %162 = arith.addf %160, %161 : vector<16x32xf32>
    tpu.wait_dma2 semaphore(%arg7 : memref<!tpu.dma_semaphore, #tpu.memory_space<semaphore_mem>>) src(%arg4 : memref<256x128xf32, #tpu.memory_space<any>>) dst(%arg6 : memref<256x128xf32, #tpu.memory_space<vmem>>)
    %c0_51 = arith.constant 0 : index
    %c0_52 = arith.constant 0 : index
    %163 = vector.load %arg6[%c0_51, %c0_52] : memref<256x128xf32, #tpu.memory_space<vmem>>, vector<32x32xf32>
    %cst_53 = arith.constant dense<0.000000e+00> : vector<16x32xf32>
    %164 = tpu.matmul %1, %163, %cst_53 {dimension_numbers = #tpu.dot_dimension_numbers<[1], [0], [0], [1], [0, 0, 1, 1], [], []>} : vector<16x32xf32>, vector<32x32xf32>, vector<16x32xf32> -> vector<16x32xf32>
    %c32_54 = arith.constant 32 : index
    %c0_55 = arith.constant 0 : index
    %165 = vector.load %arg6[%c32_54, %c0_55] : memref<256x128xf32, #tpu.memory_space<vmem>>, vector<32x32xf32>
    %cst_56 = arith.constant dense<0.000000e+00> : vector<16x32xf32>
    %166 = tpu.matmul %162, %165, %cst_56 {dimension_numbers = #tpu.dot_dimension_numbers<[1], [0], [0], [1], [0, 0, 1, 1], [], []>} : vector<16x32xf32>, vector<32x32xf32>, vector<16x32xf32> -> vector<16x32xf32>
    %167 = arith.addf %164, %166 : vector<16x32xf32>
    %c64 = arith.constant 64 : index
    %c0_57 = arith.constant 0 : index
    %168 = vector.load %arg6[%c64, %c0_57] : memref<256x128xf32, #tpu.memory_space<vmem>>, vector<1x32xf32>
    %169 = vector.broadcast %168 : vector<1x32xf32> to vector<16x32xf32>
    %170 = arith.addf %167, %169 : vector<16x32xf32>
    %c72_58 = arith.constant 72 : index
    %c0_59 = arith.constant 0 : index
    %171 = vector.load %arg6[%c72_58, %c0_59] : memref<256x128xf32, #tpu.memory_space<vmem>>, vector<32x128xf32>
    %c104 = arith.constant 104 : index
    %c0_60 = arith.constant 0 : index
    %172 = vector.load %arg6[%c104, %c0_60] : memref<256x128xf32, #tpu.memory_space<vmem>>, vector<1x128xf32>
    %cst_61 = arith.constant dense<0.000000e+00> : vector<16x128xf32>
    %173 = tpu.matmul %170, %171, %cst_61 {dimension_numbers = #tpu.dot_dimension_numbers<[1], [0], [0], [1], [0, 0, 1, 1], [], []>} : vector<16x32xf32>, vector<32x128xf32>, vector<16x128xf32> -> vector<16x128xf32>
    %174 = vector.broadcast %172 : vector<1x128xf32> to vector<16x128xf32>
    %175 = arith.addf %173, %174 : vector<16x128xf32>
    %cst_62 = arith.constant 5.000000e-01 : f32
    %176 = vector.broadcast %cst_62 : f32 to vector<16x128xf32>
    %177 = arith.mulf %176, %175 : vector<16x128xf32>
    %cst_63 = arith.constant 0.707106769 : f32
    %178 = vector.broadcast %cst_63 : f32 to vector<16x128xf32>
    %179 = arith.mulf %175, %178 : vector<16x128xf32>
    %180 = math.absf %179 : vector<16x128xf32>
    %cst_64 = arith.constant 0.327591091 : f32
    %181 = vector.broadcast %cst_64 : f32 to vector<16x128xf32>
    %182 = arith.mulf %181, %180 : vector<16x128xf32>
    %cst_65 = arith.constant 1.000000e+00 : f32
    %183 = vector.broadcast %cst_65 : f32 to vector<16x128xf32>
    %184 = arith.addf %183, %182 : vector<16x128xf32>
    %185 = tpu.reciprocal %184 {approx = true} : vector<16x128xf32> -> vector<16x128xf32>
    %cst_66 = arith.constant 1.06140542 : f32
    %186 = vector.broadcast %cst_66 : f32 to vector<16x128xf32>
    %187 = arith.mulf %186, %185 : vector<16x128xf32>
    %cst_67 = arith.constant -1.45315206 : f32
    %188 = vector.broadcast %cst_67 : f32 to vector<16x128xf32>
    %189 = arith.addf %187, %188 : vector<16x128xf32>
    %190 = arith.mulf %189, %185 : vector<16x128xf32>
    %cst_68 = arith.constant 1.42141378 : f32
    %191 = vector.broadcast %cst_68 : f32 to vector<16x128xf32>
    %192 = arith.addf %190, %191 : vector<16x128xf32>
    %193 = arith.mulf %192, %185 : vector<16x128xf32>
    %cst_69 = arith.constant -0.284496725 : f32
    %194 = vector.broadcast %cst_69 : f32 to vector<16x128xf32>
    %195 = arith.addf %193, %194 : vector<16x128xf32>
    %196 = arith.mulf %195, %185 : vector<16x128xf32>
    %cst_70 = arith.constant 0.254829586 : f32
    %197 = vector.broadcast %cst_70 : f32 to vector<16x128xf32>
    %198 = arith.addf %196, %197 : vector<16x128xf32>
    %199 = arith.mulf %198, %185 : vector<16x128xf32>
    %cst_71 = arith.constant 0.000000e+00 : f32
    %200 = vector.broadcast %cst_71 : f32 to vector<16x128xf32>
    %201 = arith.subf %200, %180 : vector<16x128xf32>
    %202 = arith.mulf %201, %180 : vector<16x128xf32>
    %203 = math.exp %202 : vector<16x128xf32>
    %204 = arith.mulf %199, %203 : vector<16x128xf32>
    %cst_72 = arith.constant 1.000000e+00 : f32
    %205 = vector.broadcast %cst_72 : f32 to vector<16x128xf32>
    %206 = arith.subf %205, %204 : vector<16x128xf32>
    %cst_73 = arith.constant 0.000000e+00 : f32
    %207 = vector.broadcast %cst_73 : f32 to vector<16x128xf32>
    %208 = arith.cmpf oge, %179, %207 : vector<16x128xf32>
    %cst_74 = arith.constant 0.000000e+00 : f32
    %209 = vector.broadcast %cst_74 : f32 to vector<16x128xf32>
    %210 = arith.subf %209, %206 : vector<16x128xf32>
    %211 = arith.select %208, %206, %210 : vector<16x128xi1>, vector<16x128xf32>
    %cst_75 = arith.constant 1.000000e+00 : f32
    %212 = vector.broadcast %cst_75 : f32 to vector<16x128xf32>
    %213 = arith.addf %212, %211 : vector<16x128xf32>
    %214 = arith.mulf %177, %213 : vector<16x128xf32>
    %c112_76 = arith.constant 112 : index
    %c0_77 = arith.constant 0 : index
    %215 = vector.load %arg6[%c112_76, %c0_77] : memref<256x128xf32, #tpu.memory_space<vmem>>, vector<128x32xf32>
    %c240 = arith.constant 240 : index
    %c0_78 = arith.constant 0 : index
    %216 = vector.load %arg6[%c240, %c0_78] : memref<256x128xf32, #tpu.memory_space<vmem>>, vector<1x32xf32>
    %cst_79 = arith.constant dense<0.000000e+00> : vector<16x32xf32>
    %217 = tpu.matmul %214, %215, %cst_79 {dimension_numbers = #tpu.dot_dimension_numbers<[1], [0], [0], [1], [0, 0, 1, 1], [], []>} : vector<16x128xf32>, vector<128x32xf32>, vector<16x32xf32> -> vector<16x32xf32>
    %218 = vector.broadcast %216 : vector<1x32xf32> to vector<16x32xf32>
    %219 = arith.addf %217, %218 : vector<16x32xf32>
    %220 = arith.addf %1, %219 : vector<16x32xf32>
    %cst_80 = arith.constant dense<0.000000e+00> : vector<16xf32>
    %221 = vector.multi_reduction <add>, %220, %cst_80 [1] : vector<16x32xf32> to vector<16xf32>
    %222 = vector.shape_cast %221 : vector<16xf32> to vector<16x1xf32>
    %cst_81 = arith.constant 3.200000e+01 : f32
    %223 = vector.broadcast %cst_81 : f32 to vector<16x1xf32>
    %224 = arith.divf %222, %223 : vector<16x1xf32>
    %225 = vector.broadcast %224 : vector<16x1xf32> to vector<16x32xf32>
    %226 = arith.subf %220, %225 : vector<16x32xf32>
    %227 = arith.mulf %226, %226 : vector<16x32xf32>
    %cst_82 = arith.constant dense<0.000000e+00> : vector<16xf32>
    %228 = vector.multi_reduction <add>, %227, %cst_82 [1] : vector<16x32xf32> to vector<16xf32>
    %229 = vector.shape_cast %228 : vector<16xf32> to vector<16x1xf32>
    %cst_83 = arith.constant 3.200000e+01 : f32
    %230 = vector.broadcast %cst_83 : f32 to vector<16x1xf32>
    %231 = arith.divf %229, %230 : vector<16x1xf32>
    %232 = vector.broadcast %224 : vector<16x1xf32> to vector<16x32xf32>
    %233 = arith.subf %220, %232 : vector<16x32xf32>
    %cst_84 = arith.constant 9.99999974E-6 : f32
    %234 = vector.broadcast %cst_84 : f32 to vector<16x1xf32>
    %235 = arith.addf %231, %234 : vector<16x1xf32>
    %236 = math.rsqrt %235 : vector<16x1xf32>
    %237 = vector.broadcast %236 : vector<16x1xf32> to vector<16x32xf32>
    %238 = arith.mulf %233, %237 : vector<16x32xf32>
    %c248 = arith.constant 248 : index
    %c0_85 = arith.constant 0 : index
    %239 = vector.load %arg6[%c248, %c0_85] : memref<256x128xf32, #tpu.memory_space<vmem>>, vector<1x32xf32>
    %240 = vector.broadcast %239 : vector<1x32xf32> to vector<16x32xf32>
    %241 = arith.mulf %238, %240 : vector<16x32xf32>
    %c249 = arith.constant 249 : index
    %c0_86 = arith.constant 0 : index
    %242 = vector.load %arg6[%c249, %c0_86] : memref<256x128xf32, #tpu.memory_space<vmem>>, vector<1x32xf32>
    %243 = vector.broadcast %242 : vector<1x32xf32> to vector<16x32xf32>
    %244 = arith.addf %241, %243 : vector<16x32xf32>
    %c0_87 = arith.constant 0 : index
    %c0_88 = arith.constant 0 : index
    %245 = vector.load %arg5[%c0_87, %c0_88] : memref<16x32xf32, #tpu.memory_space<vmem>>, vector<16x32xf32>
    tpu.vector_store %arg5[%c0_87, %c0_88], %244 {strides = array<i32>} : memref<16x32xf32, #tpu.memory_space<vmem>>, vector<16x32xf32>,
    return
  }
  func.func @transform_0(%arg0: i32) -> (i32, i32) {
    %c0_i32 = arith.constant 0 : i32
    %c0_i32_0 = arith.constant 0 : i32
    %c0_i32_1 = arith.constant 0 : i32
    return %c0_i32, %c0_i32_0 : i32, i32
  }
  func.func @transform_1(%arg0: i32) -> (i32, i32) {
    %c0_i32 = arith.constant 0 : i32
    %c0_i32_0 = arith.constant 0 : i32
    %c0_i32_1 = arith.constant 0 : i32
    return %c0_i32, %c0_i32_0 : i32, i32
  }
  func.func @transform_2(%arg0: i32) -> (i32, i32) {
    %c0_i32 = arith.constant 0 : i32
    %c0_i32_0 = arith.constant 0 : i32
    %c0_i32_1 = arith.constant 0 : i32
    return %c0_i32, %c0_i32_0 : i32, i32
  }
  func.func @transform_4(%arg0: i32) -> (i32, i32) {
    %c0_i32 = arith.constant 0 : i32
    %c0_i32_0 = arith.constant 0 : i32
    %c0_i32_1 = arith.constant 0 : i32
    return %c0_i32, %c0_i32_0 : i32, i32
  }
}

</mosaic_0001>

<llo_original>
// kernel: _forward.1
$region0: #{_forward.1}
  #allocation0 [shape = 'u32[]', space=smem, size = 0x4, offset = 0x4, fixed_abs, tag = 'smem constant byte address 0x4 - core index']
  #allocation1 [shape = 'u32[144,128]{1,0:T(1,128)}', space=vmem, size = 0x12000, scoped, tag = 'internal scratch']
  #allocation2 [shape = 'f32[256,128]{1,0:T(8,128)}', space=vmem, size = 0x20000, scoped, tag = 'scratch operand']
  #allocation3 [shape = 's32[1]{0}', space=sflag, size = 0x4, scoped, tag = 'scratch operand']
  #allocation11 [shape = 's32[]', space=sflag, size = 0x4, offset = 0, fixed_abs, tag = 'sflag constant byte address 0x0 - dummy sync flag']
  #allocation12 [shape = 's32[]', space=sflag, size = 0x4, offset = 0, fixed_abs, tag = 'sflag constant byte address 0x0 - dummy sync flag']
  #allocation13 [shape = 'u32[]', space=smem, size = 0x4, offset = 0x44, fixed_abs, tag = 'smem constant byte address 0x44 - assertion arg 0']
  #allocation14 [shape = 'u32[]', space=smem, size = 0x4, offset = 0x48, fixed_abs, tag = 'smem constant byte address 0x48 - assertion arg 1']
  %s0 = inlined_call_operand.hbm [shape: f32[16,32], index: 0, kind: input, shape index: {}]
  %s1 = inlined_call_operand.hbm [shape: f32[16,32], index: 1, kind: input, shape index: {}]
  %s2 = inlined_call_operand.hbm [shape: f32[216,128], index: 2, kind: input, shape index: {}]
  %s3 = inlined_call_operand.hbm [shape: f32[256,128], index: 3, kind: input, shape index: {}]
  %s4 = inlined_call_operand.hbm [shape: f32[16,32], index: 4, kind: output, shape index: {}]
  %s5 = sld [smem:[#allocation0]]
  $region38: #{_forward.1} parent=0
    _
  %s7 = ssub.s32 1, %s5
  %s8 = scalar_select 0, %s7, %s5
  $region1: #{_forward.1} parent=0
    #allocation4 [shape = 'u8[8192]{0}', space=vmem, size = 0x2000, scoped, tag = 'input window, operand 0, single buffered']
    #allocation5 [shape = 's32[1]{0}', space=sflag, size = 0x4, scoped, tag = 'scoped memory for _forward.1']
    #allocation6 [shape = 's32[1]{0}', space=sflag, size = 0x4, scoped, tag = 'scoped memory for _forward.1']
    #allocation7 [shape = 'u8[8192]{0}', space=vmem, size = 0x2000, scoped, tag = 'input window, operand 1, single buffered']
    #allocation8 [shape = 's32[1]{0}', space=sflag, size = 0x4, scoped, tag = 'scoped memory for _forward.1']
    #allocation9 [shape = 'u8[110592]{0}', space=vmem, size = 0x1b000, scoped, tag = 'input window, operand 2, single buffered']
    #allocation10 [shape = 'u8[8192]{0}', space=vmem, size = 0x2000, scoped, tag = 'output window, operand 0, single buffered']
    %9 = vsyncpa [#allocation5], 0
    %10 = vsyncpa [#allocation8], 0
    %11 = vsyncpa [#allocation6], 0
    // Predicated region
    $region2: #{_forward.1} parent=1 // pred_check
      _
    $region3: #{_forward.1} parent=1 // pred_check_branch
      %13 = sbr.rel (0) target = $region5
    $region4: #{_forward.1} parent=1 // pred_region
      %s15 = ssub.s32 256, 256
      %16 = vsyncadd [#allocation5], %s15
      %s17 = sshll.u32 [#allocation4], 4
      %s18 = int_to_ptr.vmem [resolvable:$true] %s17
      %23 = dma.hbm_to_vmem [thread:$0]  %s0, 256, %s18, [#allocation5], 128, 128, 8
    $region5: #{_forward.1} parent=1 // pred_fallthru
      _
    // Predicated region
    $region6: #{_forward.1} parent=1 // pred_check
      _
    $region7: #{_forward.1} parent=1 // pred_check_branch
      %25 = sbr.rel (0) target = $region9
    $region8: #{_forward.1} parent=1 // pred_region
      %s27 = ssub.s32 256, 256
      %28 = vsyncadd [#allocation8], %s27
      %s29 = sshll.u32 [#allocation7], 4
      %s30 = int_to_ptr.vmem [resolvable:$true] %s29
      %35 = dma.hbm_to_vmem [thread:$0]  %s1, 256, %s30, [#allocation8], 128, 128, 8
    $region9: #{_forward.1} parent=1 // pred_fallthru
      _
    // Predicated region
    $region10: #{_forward.1} parent=1 // pred_check
      _
    $region11: #{_forward.1} parent=1 // pred_check_branch
      %37 = sbr.rel (0) target = $region13
    $region12: #{_forward.1} parent=1 // pred_region
      %s39 = ssub.s32 3456, 3456
      %40 = vsyncadd [#allocation8], %s39
      %s41 = sshll.u32 [#allocation9], 4
      %s42 = int_to_ptr.vmem [resolvable:$true] %s41
      %47 = dma.hbm_to_vmem [thread:$0]  %s2, 3456, %s42, [#allocation8], 128, 128, 8
    $region13: #{_forward.1} parent=1 // pred_fallthru
      _
    // Predicated region
    $region14: #{_forward.1} parent=1 // pred_check
      _
    $region15: #{_forward.1} parent=1 // pred_check_branch
      %49 = sbr.rel (0) target = $region17
    $region16: #{_forward.1} parent=1 // pred_region
      %50 = dma.done [#allocation5], 256
    $region17: #{_forward.1} parent=1 // pred_fallthru
      _
    // Predicated region
    $region18: #{_forward.1} parent=1 // pred_check
      _
    $region19: #{_forward.1} parent=1 // pred_check_branch
      %52 = sbr.rel (0) target = $region21
    $region20: #{_forward.1} parent=1 // pred_region
      %53 = dma.done [#allocation8], 256
    $region21: #{_forward.1} parent=1 // pred_fallthru
      _
    // Predicated region
    $region22: #{_forward.1} parent=1 // pred_check
      _
    $region23: #{_forward.1} parent=1 // pred_check_branch
      %55 = sbr.rel (0) target = $region25
    $region24: #{_forward.1} parent=1 // pred_region
      %56 = dma.done [#allocation8], 3456
    $region25: #{_forward.1} parent=1 // pred_fallthru
      _
    // Predicated region
    $region26: #{_forward.1} parent=1 // pred_check
      _
    $region27: #{_forward.1} parent=1 // pred_check_branch
      %58 = sbr.rel target = $region29
    $region28: #{_forward.1} parent=1 // pred_region
      %59 = sst [smem:[#allocation13]] [#allocation12]
      %60 = sst [smem:[#allocation14]] [#allocation11]
    $region29: #{_forward.1} parent=1 // pred_fallthru
      _
    %62 = shalt.err (0)
    %s64 = sshll.u32 [#allocation2], 4
    %s65 = int_to_ptr.vmem [resolvable:$true] %s64
    %67 = dma.hbm_to_vmem [thread:$0]  %s3, 4096, %s65, [#allocation3]
    %v68 = vld [vmem:[#allocation4] sm:$0xff]
    %v69 = vld [vmem:[#allocation4 + $0x8] sm:$0xff]
    %v70 = vld [vmem:[#allocation7] sm:$0xff]
    %v71 = vld [vmem:[#allocation7 + $0x8] sm:$0xff]
    %v72 = vld [vmem:[#allocation9 + $0xc8] sm:$0xff]
    %v73 = vld [vmem:[#allocation9 + $0xd0] sm:$0xff]
    %v74 = vld [vmem:[#allocation9] sm:$0xff]
    %v75 = vld [vmem:[#allocation9 + $0x8] sm:$0xff]
    %v76 = vld [vmem:[#allocation9 + $0x10] sm:$0xff]
    %v77 = vld [vmem:[#allocation9 + $0x18] sm:$0xff]
    %v78 = vld [vmem:[#allocation9 + $0x20] sm:$0x1]
    %v79 = vlaneseq
    %v80 = vshrl.u32 %v79, 7
    %v81 = vsub.s32 0, %v80
    %v82 = vrot.slane %v78, %v81
    %vm83 = vcmask 261120
    %v85 = vsel %vm83, %v68, 0
    %v88 = vsel %vm83, %v69, 0
    %90 = vmatprep.subr.mxu0 0.0
    %91 = vmatpush1.msra.mxu0 %v74
    %92 = vmatprep.subr.mxu0 0.0
    %93 = vmatpush1.msra.mxu0 %v75
    %94 = vmatprep.subr.mxu0 0.0
    %95 = vmatpush1.msra.mxu0 %v76
    %96 = vmatprep.subr.mxu0 0.0
    %97 = vmatpush1.msra.mxu0 %v77
    %98 = vmatprep.subr.mxu0 0.0
    %99 = vmatpush1.msra.mxu0 0.0
    %100 = vmatprep.subr.mxu0 0.0
    %101 = vmatpush1.msra.mxu0 0.0
    %102 = vmatprep.subr.mxu0 0.0
    %103 = vmatpush1.msra.mxu0 0.0
    %104 = vmatprep.subr.mxu0 0.0
    %105 = vmatpush1.msra.mxu0 0.0
    %106 = vmatprep.subr.mxu0 0.0
    %107 = vmatpush1.msra.mxu0 0.0
    %108 = vmatprep.subr.mxu0 0.0
    %109 = vmatpush1.msra.mxu0 0.0
    %110 = vmatprep.subr.mxu0 0.0
    %111 = vmatpush1.msra.mxu0 0.0
    %112 = vmatprep.subr.mxu0 0.0
    %113 = vmatpush1.msra.mxu0 0.0
    %114 = vmatprep.subr.mxu0 0.0
    %115 = vmatpush1.msra.mxu0 0.0
    %116 = vmatprep.subr.mxu0 0.0
    %117 = vmatpush1.msra.mxu0 0.0
    %118 = vmatprep.subr.mxu0 0.0
    %119 = vmatpush1.msra.mxu0 0.0
    %120 = vmatprep.subr.mxu0 0.0
    %121 = vmatpush1.msra.mxu0 0.0
    %122 = vmatprep.subr.mxu0 0.0
    %123 = vmatpush1.msra.mxu0 0.0
    %124 = vmatprep.subr.mxu0 0.0
    %125 = vmatpush1.msra.mxu0 0.0
    %126 = vmatprep.subr.mxu0 0.0
    %127 = vmatpush1.msra.mxu0 0.0
    %128 = vmatprep.subr.mxu0 0.0
    %129 = vmatpush1.msra.mxu0 0.0
    %130 = vmatprep.subr.mxu0 0.0
    %131 = vmatpush1.msra.mxu0 0.0
    %132 = vmatprep.subr.mxu0 0.0
    %133 = vmatpush1.msra.mxu0 0.0
    %134 = vmatprep.subr.mxu0 0.0
    %135 = vmatpush1.msra.mxu0 0.0
    %136 = vmatprep.subr.mxu0 0.0
    %137 = vmatpush1.msra.mxu0 0.0
    %138 = vmatprep.subr.mxu0 0.0
    %139 = vmatpush1.msra.mxu0 0.0
    %140 = vmatprep.subr.mxu0 0.0
    %141 = vmatpush1.msra.mxu0 0.0
    %142 = vmatprep.subr.mxu0 0.0
    %143 = vmatpush1.msra.mxu0 0.0
    %144 = vmatprep.subr.mxu0 0.0
    %145 = vmatpush1.msra.mxu0 0.0
    %146 = vmatprep.subr.mxu0 0.0
    %147 = vmatpush1.msra.mxu0 0.0
    %148 = vmatprep.subr.mxu0 0.0
    %149 = vmatpush1.msra.mxu0 0.0
    %150 = vmatprep.subr.mxu0 0.0
    %151 = vmatpush1.msra.mxu0 0.0
    %152 = vmatprep.subr.mxu0 0.0
    %153 = vmatpush1.msra.mxu0 0.0
    %154 = vmatprep.mubr.f32.mxu0 0.0
    %155 = vmatmul.mubr.f32.gmra.mrb[0].mxu0 %v85
    %v156 = vpop.f32.mrb[0].mxu0
    %v157 = vadd.f32 %v82, %v156
    %v158 = vpop.f32.mrb[0].mxu0
    %159 = vmatprep.mubr.f32.mxu0 0.0
    %160 = vmatmul.mubr.f32.gmra.mrb[0].mxu0 %v88
    %v161 = vpop.f32.mrb[0].mxu0
    %v162 = vadd.f32 %v82, %v161
    %v163 = vpop.f32.mrb[0].mxu0
    %164 = vdwg.mxu0
    %v165 = vld [vmem:[#allocation9 + $0x28] sm:$0xff]
    %v166 = vld [vmem:[#allocation9 + $0x30] sm:$0xff]
    %v167 = vld [vmem:[#allocation9 + $0x38] sm:$0xff]
    %v168 = vld [vmem:[#allocation9 + $0x40] sm:$0xff]
    %v169 = vld [vmem:[#allocation9 + $0x48] sm:$0x1]
    %v170 = vlaneseq
    %v171 = vshrl.u32 %v170, 7
    %v172 = vsub.s32 0, %v171
    %v173 = vrot.slane %v169, %v172
    %v175 = vsel %vm83, %v70, 0
    %v178 = vsel %vm83, %v71, 0
    %180 = vmatprep.subr.mxu0 0.0
    %181 = vmatpush1.msra.mxu0 %v165
    %182 = vmatprep.subr.mxu0 0.0
    %183 = vmatpush1.msra.mxu0 %v166
    %184 = vmatprep.subr.mxu0 0.0
    %185 = vmatpush1.msra.mxu0 %v167
    %186 = vmatprep.subr.mxu0 0.0
    %187 = vmatpush1.msra.mxu0 %v168
    %188 = vmatprep.subr.mxu0 0.0
    %189 = vmatpush1.msra.mxu0 0.0
    %190 = vmatprep.subr.mxu0 0.0
    %191 = vmatpush1.msra.mxu0 0.0
    %192 = vmatprep.subr.mxu0 0.0
    %193 = vmatpush1.msra.mxu0 0.0
    %194 = vmatprep.subr.mxu0 0.0
    %195 = vmatpush1.msra.mxu0 0.0
    %196 = vmatprep.subr.mxu0 0.0
    %197 = vmatpush1.msra.mxu0 0.0
    %198 = vmatprep.subr.mxu0 0.0
    %199 = vmatpush1.msra.mxu0 0.0
    %200 = vmatprep.subr.mxu0 0.0
    %201 = vmatpush1.msra.mxu0 0.0
    %202 = vmatprep.subr.mxu0 0.0
    %203 = vmatpush1.msra.mxu0 0.0
    %204 = vmatprep.subr.mxu0 0.0
    %205 = vmatpush1.msra.mxu0 0.0
    %206 = vmatprep.subr.mxu0 0.0
    %207 = vmatpush1.msra.mxu0 0.0
    %208 = vmatprep.subr.mxu0 0.0
    %209 = vmatpush1.msra.mxu0 0.0
    %210 = vmatprep.subr.mxu0 0.0
    %211 = vmatpush1.msra.mxu0 0.0
    %212 = vmatprep.subr.mxu0 0.0
    %213 = vmatpush1.msra.mxu0 0.0
    %214 = vmatprep.subr.mxu0 0.0
    %215 = vmatpush1.msra.mxu0 0.0
    %216 = vmatprep.subr.mxu0 0.0
    %217 = vmatpush1.msra.mxu0 0.0
    %218 = vmatprep.subr.mxu0 0.0
    %219 = vmatpush1.msra.mxu0 0.0
    %220 = vmatprep.subr.mxu0 0.0
    %221 = vmatpush1.msra.mxu0 0.0
    %222 = vmatprep.subr.mxu0 0.0
    %223 = vmatpush1.msra.mxu0 0.0
    %224 = vmatprep.subr.mxu0 0.0
    %225 = vmatpush1.msra.mxu0 0.0
    %226 = vmatprep.subr.mxu0 0.0
    %227 = vmatpush1.msra.mxu0 0.0
    %228 = vmatprep.subr.mxu0 0.0
    %229 = vmatpush1.msra.mxu0 0.0
    %230 = vmatprep.subr.mxu0 0.0
    %231 = vmatpush1.msra.mxu0 0.0
    %232 = vmatprep.subr.mxu0 0.0
    %233 = vmatpush1.msra.mxu0 0.0
    %234 = vmatprep.subr.mxu0 0.0
    %235 = vmatpush1.msra.mxu0 0.0
    %236 = vmatprep.subr.mxu0 0.0
    %237 = vmatpush1.msra.mxu0 0.0
    %238 = vmatprep.subr.mxu0 0.0
    %239 = vmatpush1.msra.mxu0 0.0
    %240 = vmatprep.subr.mxu0 0.0
    %241 = vmatpush1.msra.mxu0 0.0
    %242 = vmatprep.subr.mxu0 0.0
    %243 = vmatpush1.msra.mxu0 0.0
    %244 = vmatprep.mubr.f32.mxu0 0.0
    %245 = vmatmul.mubr.f32.gmra.mrb[0].mxu0 %v175
    %v246 = vpop.f32.mrb[0].mxu0
    %v247 = vadd.f32 %v173, %v246
    %v248 = vpop.f32.mrb[0].mxu0
    %249 = vmatprep.mubr.f32.mxu0 0.0
    %250 = vmatmul.mubr.f32.gmra.mrb[0].mxu0 %v178
    %v251 = vpop.f32.mrb[0].mxu0
    %v252 = vadd.f32 %v173, %v251
    %v253 = vpop.f32.mrb[0].mxu0
    %254 = vdwg.mxu0
    %vm255 = vcmask 64512
    %v257 = vsel %vm255, %v157, 0
    %v260 = vsel %vm255, %v162, 0
    %v263 = vsel %vm255, %v247, 0
    %v266 = vsel %vm255, %v252, 0
    %268 = vmatprep.subr.mxu0 0.0
    %269 = vmatpush1.xpose.msra.mxu0 %v263
    %270 = vmatprep.subr.mxu0 0.0
    %271 = vmatpush1.xpose.msra.mxu0 %v266
    %272 = vmatprep.subr.mxu0 0.0
    %273 = vmatpush1.xpose.msra.mxu0 0.0
    %274 = vmatprep.subr.mxu0 0.0
    %275 = vmatpush1.xpose.msra.mxu0 0.0
    %276 = vmatprep.subr.mxu0 0.0
    %277 = vmatpush1.xpose.msra.mxu0 0.0
    %278 = vmatprep.subr.mxu0 0.0
    %279 = vmatpush1.xpose.msra.mxu0 0.0
    %280 = vmatprep.subr.mxu0 0.0
    %281 = vmatpush1.xpose.msra.mxu0 0.0
    %282 = vmatprep.subr.mxu0 0.0
    %283 = vmatpush1.xpose.msra.mxu0 0.0
    %284 = vmatprep.subr.mxu0 0.0
    %285 = vmatpush1.xpose.msra.mxu0 0.0
    %286 = vmatprep.subr.mxu0 0.0
    %287 = vmatpush1.xpose.msra.mxu0 0.0
    %288 = vmatprep.subr.mxu0 0.0
    %289 = vmatpush1.xpose.msra.mxu0 0.0
    %290 = vmatprep.subr.mxu0 0.0
    %291 = vmatpush1.xpose.msra.mxu0 0.0
    %292 = vmatprep.subr.mxu0 0.0
    %293 = vmatpush1.xpose.msra.mxu0 0.0
    %294 = vmatprep.subr.mxu0 0.0
    %295 = vmatpush1.xpose.msra.mxu0 0.0
    %296 = vmatprep.subr.mxu0 0.0
    %297 = vmatpush1.xpose.msra.mxu0 0.0
    %298 = vmatprep.subr.mxu0 0.0
    %299 = vmatpush1.xpose.msra.mxu0 0.0
    %300 = vmatprep.subr.mxu0 0.0
    %301 = vmatpush1.xpose.msra.mxu0 0.0
    %302 = vmatprep.subr.mxu0 0.0
    %303 = vmatpush1.xpose.msra.mxu0 0.0
    %304 = vmatprep.subr.mxu0 0.0
    %305 = vmatpush1.xpose.msra.mxu0 0.0
    %306 = vmatprep.subr.mxu0 0.0
    %307 = vmatpush1.xpose.msra.mxu0 0.0
    %308 = vmatprep.subr.mxu0 0.0
    %309 = vmatpush1.xpose.msra.mxu0 0.0
    %310 = vmatprep.subr.mxu0 0.0
    %311 = vmatpush1.xpose.msra.mxu0 0.0
    %312 = vmatprep.subr.mxu0 0.0
    %313 = vmatpush1.xpose.msra.mxu0 0.0
    %314 = vmatprep.subr.mxu0 0.0
    %315 = vmatpush1.xpose.msra.mxu0 0.0
    %316 = vmatprep.subr.mxu0 0.0
    %317 = vmatpush1.xpose.msra.mxu0 0.0
    %318 = vmatprep.subr.mxu0 0.0
    %319 = vmatpush1.xpose.msra.mxu0 0.0
    %320 = vmatprep.subr.mxu0 0.0
    %321 = vmatpush1.xpose.msra.mxu0 0.0
    %322 = vmatprep.subr.mxu0 0.0
    %323 = vmatpush1.xpose.msra.mxu0 0.0
    %324 = vmatprep.subr.mxu0 0.0
    %325 = vmatpush1.xpose.msra.mxu0 0.0
    %326 = vmatprep.subr.mxu0 0.0
    %327 = vmatpush1.xpose.msra.mxu0 0.0
    %328 = vmatprep.subr.mxu0 0.0
    %329 = vmatpush1.xpose.msra.mxu0 0.0
    %330 = vmatprep.subr.mxu0 0.0
    %331 = vmatpush1.xpose.msra.mxu0 0.0
    %332 = vmatprep.mubr.f32.mxu0 0.0
    %333 = vmatmul.mubr.f32.gmra.mrb[0].mxu0 %v257
    %v334 = vpop.f32.mrb[0].mxu0
    %v335 = vadd.f32 %v72, %v334
    %v336 = vpop.f32.mrb[0].mxu0
    %337 = vmatprep.mubr.f32.mxu0 0.0
    %338 = vmatmul.mubr.f32.gmra.mrb[0].mxu0 %v260
    %v339 = vpop.f32.mrb[0].mxu0
    %v340 = vadd.f32 %v73, %v339
    %v341 = vpop.f32.mrb[0].mxu0
    %342 = vdwg.mxu0
    %vm343 = vcmask 130048
    %v344 = vsel %vm343, %v335, -inf
    %345 = vmax.xlane.f32.xlu0 %v344
    %v346 = vpop.xlane.xlu0 %345
    %v347 = vsel %vm343, %v340, -inf
    %348 = vmax.xlane.f32.xlu0 %v347
    %v349 = vpop.xlane.xlu0 %348
    %v350 = vsub.f32 %v335, %v346
    %v351 = vsub.f32 %v340, %v349
    %v352 = vmul.f32 %v350, 1.442695
    %v353 = vpow.pop %v352
    %v354 = vmul.f32 %v351, 1.442695
    %v355 = vpow.pop %v354
    %v356 = vsel %vm343, %v353, 0.0
    %357 = vadd.xlane.f32.xlu0 %v356
    %v358 = vpop.xlane.xlu0 %357
    %v359 = vsel %vm343, %v355, 0.0
    %360 = vadd.xlane.f32.xlu0 %v359
    %v361 = vpop.xlane.xlu0 %360
    %v362 = vrcp.pop %v358
    %v363 = vrcp.pop %v361
    %v364 = vmul.f32 %v353, %v362
    %v365 = vmul.f32 %v355, %v363
    %366 = vrot.lane.b32.xlu0 %v247, 96
    %v367 = vpop.permute.xlu0 %366
    %368 = vrot.lane.b32.xlu0 %v252, 96
    %v369 = vpop.permute.xlu0 %368
    %v373 = vsel %vm343, %v364, 0
    %v376 = vsel %vm343, %v365, 0
    %378 = vmatprep.subr.mxu0 0.0
    %379 = vmatpush1.msra.mxu0 %v367
    %380 = vmatprep.subr.mxu0 0.0
    %381 = vmatpush1.msra.mxu0 %v369
    %382 = vmatprep.subr.mxu0 0.0
    %383 = vmatpush1.msra.mxu0 0.0
    %384 = vmatprep.subr.mxu0 0.0
    %385 = vmatpush1.msra.mxu0 0.0
    %386 = vmatprep.subr.mxu0 0.0
    %387 = vmatpush1.msra.mxu0 0.0
    %388 = vmatprep.subr.mxu0 0.0
    %389 = vmatpush1.msra.mxu0 0.0
    %390 = vmatprep.subr.mxu0 0.0
    %391 = vmatpush1.msra.mxu0 0.0
    %392 = vmatprep.subr.mxu0 0.0
    %393 = vmatpush1.msra.mxu0 0.0
    %394 = vmatprep.subr.mxu0 0.0
    %395 = vmatpush1.msra.mxu0 0.0
    %396 = vmatprep.subr.mxu0 0.0
    %397 = vmatpush1.msra.mxu0 0.0
    %398 = vmatprep.subr.mxu0 0.0
    %399 = vmatpush1.msra.mxu0 0.0
    %400 = vmatprep.subr.mxu0 0.0
    %401 = vmatpush1.msra.mxu0 0.0
    %402 = vmatprep.subr.mxu0 0.0
    %403 = vmatpush1.msra.mxu0 0.0
    %404 = vmatprep.subr.mxu0 0.0
    %405 = vmatpush1.msra.mxu0 0.0
    %406 = vmatprep.subr.mxu0 0.0
    %407 = vmatpush1.msra.mxu0 0.0
    %408 = vmatprep.subr.mxu0 0.0
    %409 = vmatpush1.msra.mxu0 0.0
    %410 = vmatprep.subr.mxu0 0.0
    %411 = vmatpush1.msra.mxu0 0.0
    %412 = vmatprep.subr.mxu0 0.0
    %413 = vmatpush1.msra.mxu0 0.0
    %414 = vmatprep.subr.mxu0 0.0
    %415 = vmatpush1.msra.mxu0 0.0
    %416 = vmatprep.subr.mxu0 0.0
    %417 = vmatpush1.msra.mxu0 0.0
    %418 = vmatprep.subr.mxu0 0.0
    %419 = vmatpush1.msra.mxu0 0.0
    %420 = vmatprep.subr.mxu0 0.0
    %421 = vmatpush1.msra.mxu0 0.0
    %422 = vmatprep.subr.mxu0 0.0
    %423 = vmatpush1.msra.mxu0 0.0
    %424 = vmatprep.subr.mxu0 0.0
    %425 = vmatpush1.msra.mxu0 0.0
    %426 = vmatprep.subr.mxu0 0.0
    %427 = vmatpush1.msra.mxu0 0.0
    %428 = vmatprep.subr.mxu0 0.0
    %429 = vmatpush1.msra.mxu0 0.0
    %430 = vmatprep.subr.mxu0 0.0
    %431 = vmatpush1.msra.mxu0 0.0
    %432 = vmatprep.subr.mxu0 0.0
    %433 = vmatpush1.msra.mxu0 0.0
    %434 = vmatprep.subr.mxu0 0.0
    %435 = vmatpush1.msra.mxu0 0.0
    %436 = vmatprep.subr.mxu0 0.0
    %437 = vmatpush1.msra.mxu0 0.0
    %438 = vmatprep.subr.mxu0 0.0
    %439 = vmatpush1.msra.mxu0 0.0
    %440 = vmatprep.subr.mxu0 0.0
    %441 = vmatpush1.msra.mxu0 0.0
    %442 = vmatprep.mubr.f32.mxu0 0.0
    %443 = vmatmul.mubr.f32.gmra.mrb[0].mxu0 %v373
    %v444 = vpop.f32.mrb[0].mxu0
    %v445 = vadd.f32 0.0, %v444
    %v446 = vpop.f32.mrb[0].mxu0
    %447 = vmatprep.mubr.f32.mxu0 0.0
    %448 = vmatmul.mubr.f32.gmra.mrb[0].mxu0 %v376
    %v449 = vpop.f32.mrb[0].mxu0
    %v450 = vadd.f32 0.0, %v449
    %v451 = vpop.f32.mrb[0].mxu0
    %452 = vdwg.mxu0
    %453 = vrot.lane.b32.xlu0 %v157, 120
    %v454 = vpop.permute.xlu0 %453
    %455 = vrot.lane.b32.xlu0 %v162, 120
    %v456 = vpop.permute.xlu0 %455
    %457 = vrot.lane.b32.xlu0 %v247, 120
    %v458 = vpop.permute.xlu0 %457
    %459 = vrot.lane.b32.xlu0 %v252, 120
    %v460 = vpop.permute.xlu0 %459
    %v461 = vsel %vm255, %v454, 0
    %v463 = vsel %vm255, %v456, 0
    %v465 = vsel %vm255, %v458, 0
    %v467 = vsel %vm255, %v460, 0
    %469 = vmatprep.subr.mxu0 0.0
    %470 = vmatpush1.xpose.msra.mxu0 %v465
    %471 = vmatprep.subr.mxu0 0.0
    %472 = vmatpush1.xpose.msra.mxu0 %v467
    %473 = vmatprep.subr.mxu0 0.0
    %474 = vmatpush1.xpose.msra.mxu0 0.0
    %475 = vmatprep.subr.mxu0 0.0
    %476 = vmatpush1.xpose.msra.mxu0 0.0
    %477 = vmatprep.subr.mxu0 0.0
    %478 = vmatpush1.xpose.msra.mxu0 0.0
    %479 = vmatprep.subr.mxu0 0.0
    %480 = vmatpush1.xpose.msra.mxu0 0.0
    %481 = vmatprep.subr.mxu0 0.0
    %482 = vmatpush1.xpose.msra.mxu0 0.0
    %483 = vmatprep.subr.mxu0 0.0
    %484 = vmatpush1.xpose.msra.mxu0 0.0
    %485 = vmatprep.subr.mxu0 0.0
    %486 = vmatpush1.xpose.msra.mxu0 0.0
    %487 = vmatprep.subr.mxu0 0.0
    %488 = vmatpush1.xpose.msra.mxu0 0.0
    %489 = vmatprep.subr.mxu0 0.0
    %490 = vmatpush1.xpose.msra.mxu0 0.0
    %491 = vmatprep.subr.mxu0 0.0
    %492 = vmatpush1.xpose.msra.mxu0 0.0
    %493 = vmatprep.subr.mxu0 0.0
    %494 = vmatpush1.xpose.msra.mxu0 0.0
    %495 = vmatprep.subr.mxu0 0.0
    %496 = vmatpush1.xpose.msra.mxu0 0.0
    %497 = vmatprep.subr.mxu0 0.0
    %498 = vmatpush1.xpose.msra.mxu0 0.0
    %499 = vmatprep.subr.mxu0 0.0
    %500 = vmatpush1.xpose.msra.mxu0 0.0
    %501 = vmatprep.subr.mxu0 0.0
    %502 = vmatpush1.xpose.msra.mxu0 0.0
    %503 = vmatprep.subr.mxu0 0.0
    %504 = vmatpush1.xpose.msra.mxu0 0.0
    %505 = vmatprep.subr.mxu0 0.0
    %506 = vmatpush1.xpose.msra.mxu0 0.0
    %507 = vmatprep.subr.mxu0 0.0
    %508 = vmatpush1.xpose.msra.mxu0 0.0
    %509 = vmatprep.subr.mxu0 0.0
    %510 = vmatpush1.xpose.msra.mxu0 0.0
    %511 = vmatprep.subr.mxu0 0.0
    %512 = vmatpush1.xpose.msra.mxu0 0.0
    %513 = vmatprep.subr.mxu0 0.0
    %514 = vmatpush1.xpose.msra.mxu0 0.0
    %515 = vmatprep.subr.mxu0 0.0
    %516 = vmatpush1.xpose.msra.mxu0 0.0
    %517 = vmatprep.subr.mxu0 0.0
    %518 = vmatpush1.xpose.msra.mxu0 0.0
    %519 = vmatprep.subr.mxu0 0.0
    %520 = vmatpush1.xpose.msra.mxu0 0.0
    %521 = vmatprep.subr.mxu0 0.0
    %522 = vmatpush1.xpose.msra.mxu0 0.0
    %523 = vmatprep.subr.mxu0 0.0
    %524 = vmatpush1.xpose.msra.mxu0 0.0
    %525 = vmatprep.subr.mxu0 0.0
    %526 = vmatpush1.xpose.msra.mxu0 0.0
    %527 = vmatprep.subr.mxu0 0.0
    %528 = vmatpush1.xpose.msra.mxu0 0.0
    %529 = vmatprep.subr.mxu0 0.0
    %530 = vmatpush1.xpose.msra.mxu0 0.0
    %531 = vmatprep.subr.mxu0 0.0
    %532 = vmatpush1.xpose.msra.mxu0 0.0
    %533 = vmatprep.mubr.f32.mxu0 0.0
    %534 = vmatmul.mubr.f32.gmra.mrb[0].mxu0 %v461
    %v535 = vpop.f32.mrb[0].mxu0
    %v536 = vadd.f32 %v72, %v535
    %v537 = vpop.f32.mrb[0].mxu0
    %538 = vmatprep.mubr.f32.mxu0 0.0
    %539 = vmatmul.mubr.f32.gmra.mrb[0].mxu0 %v463
    %v540 = vpop.f32.mrb[0].mxu0
    %v541 = vadd.f32 %v73, %v540
    %v542 = vpop.f32.mrb[0].mxu0
    %543 = vdwg.mxu0
    %v544 = vsel %vm343, %v536, -inf
    %545 = vmax.xlane.f32.xlu0 %v544
    %v546 = vpop.xlane.xlu0 %545
    %v547 = vsel %vm343, %v541, -inf
    %548 = vmax.xlane.f32.xlu0 %v547
    %v549 = vpop.xlane.xlu0 %548
    %v550 = vsub.f32 %v536, %v546
    %v551 = vsub.f32 %v541, %v549
    %v552 = vmul.f32 %v550, 1.442695
    %v553 = vpow.pop %v552
    %v554 = vmul.f32 %v551, 1.442695
    %v555 = vpow.pop %v554
    %v556 = vsel %vm343, %v553, 0.0
    %557 = vadd.xlane.f32.xlu0 %v556
    %v558 = vpop.xlane.xlu0 %557
    %v559 = vsel %vm343, %v555, 0.0
    %560 = vadd.xlane.f32.xlu0 %v559
    %v561 = vpop.xlane.xlu0 %560
    %v562 = vrcp.pop %v558
    %v563 = vrcp.pop %v561
    %v564 = vmul.f32 %v553, %v562
    %v565 = vmul.f32 %v555, %v563
    %566 = vrot.lane.b32.xlu0 %v247, 88
    %v567 = vpop.permute.xlu0 %566
    %568 = vrot.lane.b32.xlu0 %v252, 88
    %v569 = vpop.permute.xlu0 %568
    %v573 = vsel %vm343, %v564, 0
    %v576 = vsel %vm343, %v565, 0
    %578 = vmatprep.subr.mxu0 0.0
    %579 = vmatpush1.msra.mxu0 %v567
    %580 = vmatprep.subr.mxu0 0.0
    %581 = vmatpush1.msra.mxu0 %v569
    %582 = vmatprep.subr.mxu0 0.0
    %583 = vmatpush1.msra.mxu0 0.0
    %584 = vmatprep.subr.mxu0 0.0
    %585 = vmatpush1.msra.mxu0 0.0
    %586 = vmatprep.subr.mxu0 0.0
    %587 = vmatpush1.msra.mxu0 0.0
    %588 = vmatprep.subr.mxu0 0.0
    %589 = vmatpush1.msra.mxu0 0.0
    %590 = vmatprep.subr.mxu0 0.0
    %591 = vmatpush1.msra.mxu0 0.0
    %592 = vmatprep.subr.mxu0 0.0
    %593 = vmatpush1.msra.mxu0 0.0
    %594 = vmatprep.subr.mxu0 0.0
    %595 = vmatpush1.msra.mxu0 0.0
    %596 = vmatprep.subr.mxu0 0.0
    %597 = vmatpush1.msra.mxu0 0.0
    %598 = vmatprep.subr.mxu0 0.0
    %599 = vmatpush1.msra.mxu0 0.0
    %600 = vmatprep.subr.mxu0 0.0
    %601 = vmatpush1.msra.mxu0 0.0
    %602 = vmatprep.subr.mxu0 0.0
    %603 = vmatpush1.msra.mxu0 0.0
    %604 = vmatprep.subr.mxu0 0.0
    %605 = vmatpush1.msra.mxu0 0.0
    %606 = vmatprep.subr.mxu0 0.0
    %607 = vmatpush1.msra.mxu0 0.0
    %608 = vmatprep.subr.mxu0 0.0
    %609 = vmatpush1.msra.mxu0 0.0
    %610 = vmatprep.subr.mxu0 0.0
    %611 = vmatpush1.msra.mxu0 0.0
    %612 = vmatprep.subr.mxu0 0.0
    %613 = vmatpush1.msra.mxu0 0.0
    %614 = vmatprep.subr.mxu0 0.0
    %615 = vmatpush1.msra.mxu0 0.0
    %616 = vmatprep.subr.mxu0 0.0
    %617 = vmatpush1.msra.mxu0 0.0
    %618 = vmatprep.subr.mxu0 0.0
    %619 = vmatpush1.msra.mxu0 0.0
    %620 = vmatprep.subr.mxu0 0.0
    %621 = vmatpush1.msra.mxu0 0.0
    %622 = vmatprep.subr.mxu0 0.0
    %623 = vmatpush1.msra.mxu0 0.0
    %624 = vmatprep.subr.mxu0 0.0
    %625 = vmatpush1.msra.mxu0 0.0
    %626 = vmatprep.subr.mxu0 0.0
    %627 = vmatpush1.msra.mxu0 0.0
    %628 = vmatprep.subr.mxu0 0.0
    %629 = vmatpush1.msra.mxu0 0.0
    %630 = vmatprep.subr.mxu0 0.0
    %631 = vmatpush1.msra.mxu0 0.0
    %632 = vmatprep.subr.mxu0 0.0
    %633 = vmatpush1.msra.mxu0 0.0
    %634 = vmatprep.subr.mxu0 0.0
    %635 = vmatpush1.msra.mxu0 0.0
    %636 = vmatprep.subr.mxu0 0.0
    %637 = vmatpush1.msra.mxu0 0.0
    %638 = vmatprep.subr.mxu0 0.0
    %639 = vmatpush1.msra.mxu0 0.0
    %640 = vmatprep.subr.mxu0 0.0
    %641 = vmatpush1.msra.mxu0 0.0
    %642 = vmatprep.mubr.f32.mxu0 0.0
    %643 = vmatmul.mubr.f32.gmra.mrb[0].mxu0 %v573
    %v644 = vpop.f32.mrb[0].mxu0
    %v645 = vadd.f32 0.0, %v644
    %v646 = vpop.f32.mrb[0].mxu0
    %647 = vmatprep.mubr.f32.mxu0 0.0
    %648 = vmatmul.mubr.f32.gmra.mrb[0].mxu0 %v576
    %v649 = vpop.f32.mrb[0].mxu0
    %v650 = vadd.f32 0.0, %v649
    %v651 = vpop.f32.mrb[0].mxu0
    %652 = vdwg.mxu0
    %653 = vrot.lane.b32.xlu0 %v157, 112
    %v654 = vpop.permute.xlu0 %653
    %655 = vrot.lane.b32.xlu0 %v162, 112
    %v656 = vpop.permute.xlu0 %655
    %657 = vrot.lane.b32.xlu0 %v247, 112
    %v658 = vpop.permute.xlu0 %657
    %659 = vrot.lane.b32.xlu0 %v252, 112
    %v660 = vpop.permute.xlu0 %659
    %v661 = vsel %vm255, %v654, 0
    %v663 = vsel %vm255, %v656, 0
    %v665 = vsel %vm255, %v658, 0
    %v667 = vsel %vm255, %v660, 0
    %669 = vmatprep.subr.mxu0 0.0
    %670 = vmatpush1.xpose.msra.mxu0 %v665
    %671 = vmatprep.subr.mxu0 0.0
    %672 = vmatpush1.xpose.msra.mxu0 %v667
    %673 = vmatprep.subr.mxu0 0.0
    %674 = vmatpush1.xpose.msra.mxu0 0.0
    %675 = vmatprep.subr.mxu0 0.0
    %676 = vmatpush1.xpose.msra.mxu0 0.0
    %677 = vmatprep.subr.mxu0 0.0
    %678 = vmatpush1.xpose.msra.mxu0 0.0
    %679 = vmatprep.subr.mxu0 0.0
    %680 = vmatpush1.xpose.msra.mxu0 0.0
    %681 = vmatprep.subr.mxu0 0.0
    %682 = vmatpush1.xpose.msra.mxu0 0.0
    %683 = vmatprep.subr.mxu0 0.0
    %684 = vmatpush1.xpose.msra.mxu0 0.0
    %685 = vmatprep.subr.mxu0 0.0
    %686 = vmatpush1.xpose.msra.mxu0 0.0
    %687 = vmatprep.subr.mxu0 0.0
    %688 = vmatpush1.xpose.msra.mxu0 0.0
    %689 = vmatprep.subr.mxu0 0.0
    %690 = vmatpush1.xpose.msra.mxu0 0.0
    %691 = vmatprep.subr.mxu0 0.0
    %692 = vmatpush1.xpose.msra.mxu0 0.0
    %693 = vmatprep.subr.mxu0 0.0
    %694 = vmatpush1.xpose.msra.mxu0 0.0
    %695 = vmatprep.subr.mxu0 0.0
    %696 = vmatpush1.xpose.msra.mxu0 0.0
    %697 = vmatprep.subr.mxu0 0.0
    %698 = vmatpush1.xpose.msra.mxu0 0.0
    %699 = vmatprep.subr.mxu0 0.0
    %700 = vmatpush1.xpose.msra.mxu0 0.0
    %701 = vmatprep.subr.mxu0 0.0
    %702 = vmatpush1.xpose.msra.mxu0 0.0
    %703 = vmatprep.subr.mxu0 0.0
    %704 = vmatpush1.xpose.msra.mxu0 0.0
    %705 = vmatprep.subr.mxu0 0.0
    %706 = vmatpush1.xpose.msra.mxu0 0.0
    %707 = vmatprep.subr.mxu0 0.0
    %708 = vmatpush1.xpose.msra.mxu0 0.0
    %709 = vmatprep.subr.mxu0 0.0
    %710 = vmatpush1.xpose.msra.mxu0 0.0
    %711 = vmatprep.subr.mxu0 0.0
    %712 = vmatpush1.xpose.msra.mxu0 0.0
    %713 = vmatprep.subr.mxu0 0.0
    %714 = vmatpush1.xpose.msra.mxu0 0.0
    %715 = vmatprep.subr.mxu0 0.0
    %716 = vmatpush1.xpose.msra.mxu0 0.0
    %717 = vmatprep.subr.mxu0 0.0
    %718 = vmatpush1.xpose.msra.mxu0 0.0
    %719 = vmatprep.subr.mxu0 0.0
    %720 = vmatpush1.xpose.msra.mxu0 0.0
    %721 = vmatprep.subr.mxu0 0.0
    %722 = vmatpush1.xpose.msra.mxu0 0.0
    %723 = vmatprep.subr.mxu0 0.0
    %724 = vmatpush1.xpose.msra.mxu0 0.0
    %725 = vmatprep.subr.mxu0 0.0
    %726 = vmatpush1.xpose.msra.mxu0 0.0
    %727 = vmatprep.subr.mxu0 0.0
    %728 = vmatpush1.xpose.msra.mxu0 0.0
    %729 = vmatprep.subr.mxu0 0.0
    %730 = vmatpush1.xpose.msra.mxu0 0.0
    %731 = vmatprep.subr.mxu0 0.0
    %732 = vmatpush1.xpose.msra.mxu0 0.0
    %733 = vmatprep.mubr.f32.mxu0 0.0
    %734 = vmatmul.mubr.f32.gmra.mrb[0].mxu0 %v661
    %v735 = vpop.f32.mrb[0].mxu0
    %v736 = vadd.f32 %v72, %v735
    %v737 = vpop.f32.mrb[0].mxu0
    %738 = vmatprep.mubr.f32.mxu0 0.0
    %739 = vmatmul.mubr.f32.gmra.mrb[0].mxu0 %v663
    %v740 = vpop.f32.mrb[0].mxu0
    %v741 = vadd.f32 %v73, %v740
    %v742 = vpop.f32.mrb[0].mxu0
    %743 = vdwg.mxu0
    %v744 = vsel %vm343, %v736, -inf
    %745 = vmax.xlane.f32.xlu0 %v744
    %v746 = vpop.xlane.xlu0 %745
    %v747 = vsel %vm343, %v741, -inf
    %748 = vmax.xlane.f32.xlu0 %v747
    %v749 = vpop.xlane.xlu0 %748
    %v750 = vsub.f32 %v736, %v746
    %v751 = vsub.f32 %v741, %v749
    %v752 = vmul.f32 %v750, 1.442695
    %v753 = vpow.pop %v752
    %v754 = vmul.f32 %v751, 1.442695
    %v755 = vpow.pop %v754
    %v756 = vsel %vm343, %v753, 0.0
    %757 = vadd.xlane.f32.xlu0 %v756
    %v758 = vpop.xlane.xlu0 %757
    %v759 = vsel %vm343, %v755, 0.0
    %760 = vadd.xlane.f32.xlu0 %v759
    %v761 = vpop.xlane.xlu0 %760
    %v762 = vrcp.pop %v758
    %v763 = vrcp.pop %v761
    %v764 = vmul.f32 %v753, %v762
    %v765 = vmul.f32 %v755, %v763
    %766 = vrot.lane.b32.xlu0 %v247, 80
    %v767 = vpop.permute.xlu0 %766
    %768 = vrot.lane.b32.xlu0 %v252, 80
    %v769 = vpop.permute.xlu0 %768
    %v773 = vsel %vm343, %v764, 0
    %v776 = vsel %vm343, %v765, 0
    %778 = vmatprep.subr.mxu0 0.0
    %779 = vmatpush1.msra.mxu0 %v767
    %780 = vmatprep.subr.mxu0 0.0
    %781 = vmatpush1.msra.mxu0 %v769
    %782 = vmatprep.subr.mxu0 0.0
    %783 = vmatpush1.msra.mxu0 0.0
    %784 = vmatprep.subr.mxu0 0.0
    %785 = vmatpush1.msra.mxu0 0.0
    %786 = vmatprep.subr.mxu0 0.0
    %787 = vmatpush1.msra.mxu0 0.0
    %788 = vmatprep.subr.mxu0 0.0
    %789 = vmatpush1.msra.mxu0 0.0
    %790 = vmatprep.subr.mxu0 0.0
    %791 = vmatpush1.msra.mxu0 0.0
    %792 = vmatprep.subr.mxu0 0.0
    %793 = vmatpush1.msra.mxu0 0.0
    %794 = vmatprep.subr.mxu0 0.0
    %795 = vmatpush1.msra.mxu0 0.0
    %796 = vmatprep.subr.mxu0 0.0
    %797 = vmatpush1.msra.mxu0 0.0
    %798 = vmatprep.subr.mxu0 0.0
    %799 = vmatpush1.msra.mxu0 0.0
    %800 = vmatprep.subr.mxu0 0.0
    %801 = vmatpush1.msra.mxu0 0.0
    %802 = vmatprep.subr.mxu0 0.0
    %803 = vmatpush1.msra.mxu0 0.0
    %804 = vmatprep.subr.mxu0 0.0
    %805 = vmatpush1.msra.mxu0 0.0
    %806 = vmatprep.subr.mxu0 0.0
    %807 = vmatpush1.msra.mxu0 0.0
    %808 = vmatprep.subr.mxu0 0.0
    %809 = vmatpush1.msra.mxu0 0.0
    %810 = vmatprep.subr.mxu0 0.0
    %811 = vmatpush1.msra.mxu0 0.0
    %812 = vmatprep.subr.mxu0 0.0
    %813 = vmatpush1.msra.mxu0 0.0
    %814 = vmatprep.subr.mxu0 0.0
    %815 = vmatpush1.msra.mxu0 0.0
    %816 = vmatprep.subr.mxu0 0.0
    %817 = vmatpush1.msra.mxu0 0.0
    %818 = vmatprep.subr.mxu0 0.0
    %819 = vmatpush1.msra.mxu0 0.0
    %820 = vmatprep.subr.mxu0 0.0
    %821 = vmatpush1.msra.mxu0 0.0
    %822 = vmatprep.subr.mxu0 0.0
    %823 = vmatpush1.msra.mxu0 0.0
    %824 = vmatprep.subr.mxu0 0.0
    %825 = vmatpush1.msra.mxu0 0.0
    %826 = vmatprep.subr.mxu0 0.0
    %827 = vmatpush1.msra.mxu0 0.0
    %828 = vmatprep.subr.mxu0 0.0
    %829 = vmatpush1.msra.mxu0 0.0
    %830 = vmatprep.subr.mxu0 0.0
    %831 = vmatpush1.msra.mxu0 0.0
    %832 = vmatprep.subr.mxu0 0.0
    %833 = vmatpush1.msra.mxu0 0.0
    %834 = vmatprep.subr.mxu0 0.0
    %835 = vmatpush1.msra.mxu0 0.0
    %836 = vmatprep.subr.mxu0 0.0
    %837 = vmatpush1.msra.mxu0 0.0
    %838 = vmatprep.subr.mxu0 0.0
    %839 = vmatpush1.msra.mxu0 0.0
    %840 = vmatprep.subr.mxu0 0.0
    %841 = vmatpush1.msra.mxu0 0.0
    %842 = vmatprep.mubr.f32.mxu0 0.0
    %843 = vmatmul.mubr.f32.gmra.mrb[0].mxu0 %v773
    %v844 = vpop.f32.mrb[0].mxu0
    %v845 = vadd.f32 0.0, %v844
    %v846 = vpop.f32.mrb[0].mxu0
    %847 = vmatprep.mubr.f32.mxu0 0.0
    %848 = vmatmul.mubr.f32.gmra.mrb[0].mxu0 %v776
    %v849 = vpop.f32.mrb[0].mxu0
    %v850 = vadd.f32 0.0, %v849
    %v851 = vpop.f32.mrb[0].mxu0
    %852 = vdwg.mxu0
    %853 = vrot.lane.b32.xlu0 %v157, 104
    %v854 = vpop.permute.xlu0 %853
    %855 = vrot.lane.b32.xlu0 %v162, 104
    %v856 = vpop.permute.xlu0 %855
    %857 = vrot.lane.b32.xlu0 %v247, 104
    %v858 = vpop.permute.xlu0 %857
    %859 = vrot.lane.b32.xlu0 %v252, 104
    %v860 = vpop.permute.xlu0 %859
    %v861 = vsel %vm255, %v854, 0
    %v863 = vsel %vm255, %v856, 0
    %v865 = vsel %vm255, %v858, 0
    %v867 = vsel %vm255, %v860, 0
    %869 = vmatprep.subr.mxu0 0.0
    %870 = vmatpush1.xpose.msra.mxu0 %v865
    %871 = vmatprep.subr.mxu0 0.0
    %872 = vmatpush1.xpose.msra.mxu0 %v867
    %873 = vmatprep.subr.mxu0 0.0
    %874 = vmatpush1.xpose.msra.mxu0 0.0
    %875 = vmatprep.subr.mxu0 0.0
    %876 = vmatpush1.xpose.msra.mxu0 0.0
    %877 = vmatprep.subr.mxu0 0.0
    %878 = vmatpush1.xpose.msra.mxu0 0.0
    %879 = vmatprep.subr.mxu0 0.0
    %880 = vmatpush1.xpose.msra.mxu0 0.0
    %881 = vmatprep.subr.mxu0 0.0
    %882 = vmatpush1.xpose.msra.mxu0 0.0
    %883 = vmatprep.subr.mxu0 0.0
    %884 = vmatpush1.xpose.msra.mxu0 0.0
    %885 = vmatprep.subr.mxu0 0.0
    %886 = vmatpush1.xpose.msra.mxu0 0.0
    %887 = vmatprep.subr.mxu0 0.0
    %888 = vmatpush1.xpose.msra.mxu0 0.0
    %889 = vmatprep.subr.mxu0 0.0
    %890 = vmatpush1.xpose.msra.mxu0 0.0
    %891 = vmatprep.subr.mxu0 0.0
    %892 = vmatpush1.xpose.msra.mxu0 0.0
    %893 = vmatprep.subr.mxu0 0.0
    %894 = vmatpush1.xpose.msra.mxu0 0.0
    %895 = vmatprep.subr.mxu0 0.0
    %896 = vmatpush1.xpose.msra.mxu0 0.0
    %897 = vmatprep.subr.mxu0 0.0
    %898 = vmatpush1.xpose.msra.mxu0 0.0
    %899 = vmatprep.subr.mxu0 0.0
    %900 = vmatpush1.xpose.msra.mxu0 0.0
    %901 = vmatprep.subr.mxu0 0.0
    %902 = vmatpush1.xpose.msra.mxu0 0.0
    %903 = vmatprep.subr.mxu0 0.0
    %904 = vmatpush1.xpose.msra.mxu0 0.0
    %905 = vmatprep.subr.mxu0 0.0
    %906 = vmatpush1.xpose.msra.mxu0 0.0
    %907 = vmatprep.subr.mxu0 0.0
    %908 = vmatpush1.xpose.msra.mxu0 0.0
    %909 = vmatprep.subr.mxu0 0.0
    %910 = vmatpush1.xpose.msra.mxu0 0.0
    %911 = vmatprep.subr.mxu0 0.0
    %912 = vmatpush1.xpose.msra.mxu0 0.0
    %913 = vmatprep.subr.mxu0 0.0
    %914 = vmatpush1.xpose.msra.mxu0 0.0
    %915 = vmatprep.subr.mxu0 0.0
    %916 = vmatpush1.xpose.msra.mxu0 0.0
    %917 = vmatprep.subr.mxu0 0.0
    %918 = vmatpush1.xpose.msra.mxu0 0.0
    %919 = vmatprep.subr.mxu0 0.0
    %920 = vmatpush1.xpose.msra.mxu0 0.0
    %921 = vmatprep.subr.mxu0 0.0
    %922 = vmatpush1.xpose.msra.mxu0 0.0
    %923 = vmatprep.subr.mxu0 0.0
    %924 = vmatpush1.xpose.msra.mxu0 0.0
    %925 = vmatprep.subr.mxu0 0.0
    %926 = vmatpush1.xpose.msra.mxu0 0.0
    %927 = vmatprep.subr.mxu0 0.0
    %928 = vmatpush1.xpose.msra.mxu0 0.0
    %929 = vmatprep.subr.mxu0 0.0
    %930 = vmatpush1.xpose.msra.mxu0 0.0
    %931 = vmatprep.subr.mxu0 0.0
    %932 = vmatpush1.xpose.msra.mxu0 0.0
    %933 = vmatprep.mubr.f32.mxu0 0.0
    %934 = vmatmul.mubr.f32.gmra.mrb[0].mxu0 %v861
    %v935 = vpop.f32.mrb[0].mxu0
    %v936 = vadd.f32 %v72, %v935
    %v937 = vpop.f32.mrb[0].mxu0
    %938 = vmatprep.mubr.f32.mxu0 0.0
    %939 = vmatmul.mubr.f32.gmra.mrb[0].mxu0 %v863
    %v940 = vpop.f32.mrb[0].mxu0
    %v941 = vadd.f32 %v73, %v940
    %v942 = vpop.f32.mrb[0].mxu0
    %943 = vdwg.mxu0
    %v944 = vsel %vm343, %v936, -inf
    %945 = vmax.xlane.f32.xlu0 %v944
    %v946 = vpop.xlane.xlu0 %945
    %v947 = vsel %vm343, %v941, -inf
    %948 = vmax.xlane.f32.xlu0 %v947
    %v949 = vpop.xlane.xlu0 %948
    %v950 = vsub.f32 %v936, %v946
    %v951 = vsub.f32 %v941, %v949
    %v952 = vmul.f32 %v950, 1.442695
    %v953 = vpow.pop %v952
    %v954 = vmul.f32 %v951, 1.442695
    %v955 = vpow.pop %v954
    %v956 = vsel %vm343, %v953, 0.0
    %957 = vadd.xlane.f32.xlu0 %v956
    %v958 = vpop.xlane.xlu0 %957
    %v959 = vsel %vm343, %v955, 0.0
    %960 = vadd.xlane.f32.xlu0 %v959
    %v961 = vpop.xlane.xlu0 %960
    %v962 = vrcp.pop %v958
    %v963 = vrcp.pop %v961
    %v964 = vmul.f32 %v953, %v962
    %v965 = vmul.f32 %v955, %v963
    %966 = vrot.lane.b32.xlu0 %v247, 72
    %v967 = vpop.permute.xlu0 %966
    %968 = vrot.lane.b32.xlu0 %v252, 72
    %v969 = vpop.permute.xlu0 %968
    %v973 = vsel %vm343, %v964, 0
    %v976 = vsel %vm343, %v965, 0
    %978 = vmatprep.subr.mxu0 0.0
    %979 = vmatpush1.msra.mxu0 %v967
    %980 = vmatprep.subr.mxu0 0.0
    %981 = vmatpush1.msra.mxu0 %v969
    %982 = vmatprep.subr.mxu0 0.0
    %983 = vmatpush1.msra.mxu0 0.0
    %984 = vmatprep.subr.mxu0 0.0
    %985 = vmatpush1.msra.mxu0 0.0
    %986 = vmatprep.subr.mxu0 0.0
    %987 = vmatpush1.msra.mxu0 0.0
    %988 = vmatprep.subr.mxu0 0.0
    %989 = vmatpush1.msra.mxu0 0.0
    %990 = vmatprep.subr.mxu0 0.0
    %991 = vmatpush1.msra.mxu0 0.0
    %992 = vmatprep.subr.mxu0 0.0
    %993 = vmatpush1.msra.mxu0 0.0
    %994 = vmatprep.subr.mxu0 0.0
    %995 = vmatpush1.msra.mxu0 0.0
    %996 = vmatprep.subr.mxu0 0.0
    %997 = vmatpush1.msra.mxu0 0.0
    %998 = vmatprep.subr.mxu0 0.0
    %999 = vmatpush1.msra.mxu0 0.0
    %1000 = vmatprep.subr.mxu0 0.0
    %1001 = vmatpush1.msra.mxu0 0.0
    %1002 = vmatprep.subr.mxu0 0.0
    %1003 = vmatpush1.msra.mxu0 0.0
    %1004 = vmatprep.subr.mxu0 0.0
    %1005 = vmatpush1.msra.mxu0 0.0
    %1006 = vmatprep.subr.mxu0 0.0
    %1007 = vmatpush1.msra.mxu0 0.0
    %1008 = vmatprep.subr.mxu0 0.0
    %1009 = vmatpush1.msra.mxu0 0.0
    %1010 = vmatprep.subr.mxu0 0.0
    %1011 = vmatpush1.msra.mxu0 0.0
    %1012 = vmatprep.subr.mxu0 0.0
    %1013 = vmatpush1.msra.mxu0 0.0
    %1014 = vmatprep.subr.mxu0 0.0
    %1015 = vmatpush1.msra.mxu0 0.0
    %1016 = vmatprep.subr.mxu0 0.0
    %1017 = vmatpush1.msra.mxu0 0.0
    %1018 = vmatprep.subr.mxu0 0.0
    %1019 = vmatpush1.msra.mxu0 0.0
    %1020 = vmatprep.subr.mxu0 0.0
    %1021 = vmatpush1.msra.mxu0 0.0
    %1022 = vmatprep.subr.mxu0 0.0
    %1023 = vmatpush1.msra.mxu0 0.0
    %1024 = vmatprep.subr.mxu0 0.0
    %1025 = vmatpush1.msra.mxu0 0.0
    %1026 = vmatprep.subr.mxu0 0.0
    %1027 = vmatpush1.msra.mxu0 0.0
    %1028 = vmatprep.subr.mxu0 0.0
    %1029 = vmatpush1.msra.mxu0 0.0
    %1030 = vmatprep.subr.mxu0 0.0
    %1031 = vmatpush1.msra.mxu0 0.0
    %1032 = vmatprep.subr.mxu0 0.0
    %1033 = vmatpush1.msra.mxu0 0.0
    %1034 = vmatprep.subr.mxu0 0.0
    %1035 = vmatpush1.msra.mxu0 0.0
    %1036 = vmatprep.subr.mxu0 0.0
    %1037 = vmatpush1.msra.mxu0 0.0
    %1038 = vmatprep.subr.mxu0 0.0
    %1039 = vmatpush1.msra.mxu0 0.0
    %1040 = vmatprep.subr.mxu0 0.0
    %1041 = vmatpush1.msra.mxu0 0.0
    %1042 = vmatprep.mubr.f32.mxu0 0.0
    %1043 = vmatmul.mubr.f32.gmra.mrb[0].mxu0 %v973
    %v1044 = vpop.f32.mrb[0].mxu0
    %v1045 = vadd.f32 0.0, %v1044
    %v1046 = vpop.f32.mrb[0].mxu0
    %1047 = vmatprep.mubr.f32.mxu0 0.0
    %1048 = vmatmul.mubr.f32.gmra.mrb[0].mxu0 %v976
    %v1049 = vpop.f32.mrb[0].mxu0
    %v1050 = vadd.f32 0.0, %v1049
    %v1051 = vpop.f32.mrb[0].mxu0
    %1052 = vdwg.mxu0
    %1055 = vrot.lane.b32.xlu0 %v645, 8
    %v1056 = vpop.permute.xlu0 %1055
    %1057 = vrot.lane.b32.xlu0 %v650, 8
    %v1058 = vpop.permute.xlu0 %1057
    %1063 = vrot.lane.b32.xlu0 %v845, 16
    %v1064 = vpop.permute.xlu0 %1063
    %1065 = vrot.lane.b32.xlu0 %v850, 16
    %v1066 = vpop.permute.xlu0 %1065
    %1071 = vrot.lane.b32.xlu0 %v1045, 24
    %v1072 = vpop.permute.xlu0 %1071
    %1073 = vrot.lane.b32.xlu0 %v1050, 24
    %v1074 = vpop.permute.xlu0 %1073
    %v1077 = vsel %vm255, %v445, %v1056
    %v1078 = vsel %vm255, %v450, %v1058
    %v1079 = vsel %vm343, %v1077, %v1064
    %v1080 = vsel %vm343, %v1078, %v1066
    %vm1081 = vcmask 195584
    %v1082 = vsel %vm1081, %v1079, %v1072
    %v1083 = vsel %vm1081, %v1080, %v1074
    %v1084 = vld [vmem:[#allocation9 + $0x50] sm:$0xff]
    %v1085 = vld [vmem:[#allocation9 + $0x58] sm:$0xff]
    %v1086 = vld [vmem:[#allocation9 + $0x60] sm:$0xff]
    %v1087 = vld [vmem:[#allocation9 + $0x68] sm:$0xff]
    %v1088 = vld [vmem:[#allocation9 + $0x70] sm:$0x1]
    %v1089 = vlaneseq
    %v1090 = vshrl.u32 %v1089, 7
    %v1091 = vsub.s32 0, %v1090
    %v1092 = vrot.slane %v1088, %v1091
    %v1094 = vsel %vm83, %v1082, 0
    %v1097 = vsel %vm83, %v1083, 0
    %1099 = vmatprep.subr.mxu0 0.0
    %1100 = vmatpush1.msra.mxu0 %v1084
    %1101 = vmatprep.subr.mxu0 0.0
    %1102 = vmatpush1.msra.mxu0 %v1085
    %1103 = vmatprep.subr.mxu0 0.0
    %1104 = vmatpush1.msra.mxu0 %v1086
    %1105 = vmatprep.subr.mxu0 0.0
    %1106 = vmatpush1.msra.mxu0 %v1087
    %1107 = vmatprep.subr.mxu0 0.0
    %1108 = vmatpush1.msra.mxu0 0.0
    %1109 = vmatprep.subr.mxu0 0.0
    %1110 = vmatpush1.msra.mxu0 0.0
    %1111 = vmatprep.subr.mxu0 0.0
    %1112 = vmatpush1.msra.mxu0 0.0
    %1113 = vmatprep.subr.mxu0 0.0
    %1114 = vmatpush1.msra.mxu0 0.0
    %1115 = vmatprep.subr.mxu0 0.0
    %1116 = vmatpush1.msra.mxu0 0.0
    %1117 = vmatprep.subr.mxu0 0.0
    %1118 = vmatpush1.msra.mxu0 0.0
    %1119 = vmatprep.subr.mxu0 0.0
    %1120 = vmatpush1.msra.mxu0 0.0
    %1121 = vmatprep.subr.mxu0 0.0
    %1122 = vmatpush1.msra.mxu0 0.0
    %1123 = vmatprep.subr.mxu0 0.0
    %1124 = vmatpush1.msra.mxu0 0.0
    %1125 = vmatprep.subr.mxu0 0.0
    %1126 = vmatpush1.msra.mxu0 0.0
    %1127 = vmatprep.subr.mxu0 0.0
    %1128 = vmatpush1.msra.mxu0 0.0
    %1129 = vmatprep.subr.mxu0 0.0
    %1130 = vmatpush1.msra.mxu0 0.0
    %1131 = vmatprep.subr.mxu0 0.0
    %1132 = vmatpush1.msra.mxu0 0.0
    %1133 = vmatprep.subr.mxu0 0.0
    %1134 = vmatpush1.msra.mxu0 0.0
    %1135 = vmatprep.subr.mxu0 0.0
    %1136 = vmatpush1.msra.mxu0 0.0
    %1137 = vmatprep.subr.mxu0 0.0
    %1138 = vmatpush1.msra.mxu0 0.0
    %1139 = vmatprep.subr.mxu0 0.0
    %1140 = vmatpush1.msra.mxu0 0.0
    %1141 = vmatprep.subr.mxu0 0.0
    %1142 = vmatpush1.msra.mxu0 0.0
    %1143 = vmatprep.subr.mxu0 0.0
    %1144 = vmatpush1.msra.mxu0 0.0
    %1145 = vmatprep.subr.mxu0 0.0
    %1146 = vmatpush1.msra.mxu0 0.0
    %1147 = vmatprep.subr.mxu0 0.0
    %1148 = vmatpush1.msra.mxu0 0.0
    %1149 = vmatprep.subr.mxu0 0.0
    %1150 = vmatpush1.msra.mxu0 0.0
    %1151 = vmatprep.subr.mxu0 0.0
    %1152 = vmatpush1.msra.mxu0 0.0
    %1153 = vmatprep.subr.mxu0 0.0
    %1154 = vmatpush1.msra.mxu0 0.0
    %1155 = vmatprep.subr.mxu0 0.0
    %1156 = vmatpush1.msra.mxu0 0.0
    %1157 = vmatprep.subr.mxu0 0.0
    %1158 = vmatpush1.msra.mxu0 0.0
    %1159 = vmatprep.subr.mxu0 0.0
    %1160 = vmatpush1.msra.mxu0 0.0
    %1161 = vmatprep.subr.mxu0 0.0
    %1162 = vmatpush1.msra.mxu0 0.0
    %1163 = vmatprep.mubr.f32.mxu0 0.0
    %1164 = vmatmul.mubr.f32.gmra.mrb[0].mxu0 %v1094
    %v1165 = vpop.f32.mrb[0].mxu0
    %v1166 = vadd.f32 %v1092, %v1165
    %v1167 = vpop.f32.mrb[0].mxu0
    %1168 = vmatprep.mubr.f32.mxu0 0.0
    %1169 = vmatmul.mubr.f32.gmra.mrb[0].mxu0 %v1097
    %v1170 = vpop.f32.mrb[0].mxu0
    %v1171 = vadd.f32 %v1092, %v1170
    %v1172 = vpop.f32.mrb[0].mxu0
    %1173 = vdwg.mxu0
    %v1174 = vld [vmem:[#allocation9 + $0x78] sm:$0xff]
    %v1175 = vld [vmem:[#allocation9 + $0x80] sm:$0xff]
    %v1176 = vld [vmem:[#allocation9 + $0x88] sm:$0xff]
    %v1177 = vld [vmem:[#allocation9 + $0x90] sm:$0xff]
    %v1178 = vld [vmem:[#allocation9 + $0x98] sm:$0x1]
    %v1179 = vlaneseq
    %v1180 = vshrl.u32 %v1179, 7
    %v1181 = vsub.s32 0, %v1180
    %v1182 = vrot.slane %v1178, %v1181
    %v1184 = vsel %vm83, %v1166, 0
    %v1187 = vsel %vm83, %v1171, 0
    %1189 = vmatprep.subr.mxu0 0.0
    %1190 = vmatpush1.msra.mxu0 %v1174
    %1191 = vmatprep.subr.mxu0 0.0
    %1192 = vmatpush1.msra.mxu0 %v1175
    %1193 = vmatprep.subr.mxu0 0.0
    %1194 = vmatpush1.msra.mxu0 %v1176
    %1195 = vmatprep.subr.mxu0 0.0
    %1196 = vmatpush1.msra.mxu0 %v1177
    %1197 = vmatprep.subr.mxu0 0.0
    %1198 = vmatpush1.msra.mxu0 0.0
    %1199 = vmatprep.subr.mxu0 0.0
    %1200 = vmatpush1.msra.mxu0 0.0
    %1201 = vmatprep.subr.mxu0 0.0
    %1202 = vmatpush1.msra.mxu0 0.0
    %1203 = vmatprep.subr.mxu0 0.0
    %1204 = vmatpush1.msra.mxu0 0.0
    %1205 = vmatprep.subr.mxu0 0.0
    %1206 = vmatpush1.msra.mxu0 0.0
    %1207 = vmatprep.subr.mxu0 0.0
    %1208 = vmatpush1.msra.mxu0 0.0
    %1209 = vmatprep.subr.mxu0 0.0
    %1210 = vmatpush1.msra.mxu0 0.0
    %1211 = vmatprep.subr.mxu0 0.0
    %1212 = vmatpush1.msra.mxu0 0.0
    %1213 = vmatprep.subr.mxu0 0.0
    %1214 = vmatpush1.msra.mxu0 0.0
    %1215 = vmatprep.subr.mxu0 0.0
    %1216 = vmatpush1.msra.mxu0 0.0
    %1217 = vmatprep.subr.mxu0 0.0
    %1218 = vmatpush1.msra.mxu0 0.0
    %1219 = vmatprep.subr.mxu0 0.0
    %1220 = vmatpush1.msra.mxu0 0.0
    %1221 = vmatprep.subr.mxu0 0.0
    %1222 = vmatpush1.msra.mxu0 0.0
    %1223 = vmatprep.subr.mxu0 0.0
    %1224 = vmatpush1.msra.mxu0 0.0
    %1225 = vmatprep.subr.mxu0 0.0
    %1226 = vmatpush1.msra.mxu0 0.0
    %1227 = vmatprep.subr.mxu0 0.0
    %1228 = vmatpush1.msra.mxu0 0.0
    %1229 = vmatprep.subr.mxu0 0.0
    %1230 = vmatpush1.msra.mxu0 0.0
    %1231 = vmatprep.subr.mxu0 0.0
    %1232 = vmatpush1.msra.mxu0 0.0
    %1233 = vmatprep.subr.mxu0 0.0
    %1234 = vmatpush1.msra.mxu0 0.0
    %1235 = vmatprep.subr.mxu0 0.0
    %1236 = vmatpush1.msra.mxu0 0.0
    %1237 = vmatprep.subr.mxu0 0.0
    %1238 = vmatpush1.msra.mxu0 0.0
    %1239 = vmatprep.subr.mxu0 0.0
    %1240 = vmatpush1.msra.mxu0 0.0
    %1241 = vmatprep.subr.mxu0 0.0
    %1242 = vmatpush1.msra.mxu0 0.0
    %1243 = vmatprep.subr.mxu0 0.0
    %1244 = vmatpush1.msra.mxu0 0.0
    %1245 = vmatprep.subr.mxu0 0.0
    %1246 = vmatpush1.msra.mxu0 0.0
    %1247 = vmatprep.subr.mxu0 0.0
    %1248 = vmatpush1.msra.mxu0 0.0
    %1249 = vmatprep.subr.mxu0 0.0
    %1250 = vmatpush1.msra.mxu0 0.0
    %1251 = vmatprep.subr.mxu0 0.0
    %1252 = vmatpush1.msra.mxu0 0.0
    %1253 = vmatprep.mubr.f32.mxu0 0.0
    %1254 = vmatmul.mubr.f32.gmra.mrb[0].mxu0 %v1184
    %v1255 = vpop.f32.mrb[0].mxu0
    %v1256 = vadd.f32 %v1182, %v1255
    %v1257 = vpop.f32.mrb[0].mxu0
    %1258 = vmatprep.mubr.f32.mxu0 0.0
    %1259 = vmatmul.mubr.f32.gmra.mrb[0].mxu0 %v1187
    %v1260 = vpop.f32.mrb[0].mxu0
    %v1261 = vadd.f32 %v1182, %v1260
    %v1262 = vpop.f32.mrb[0].mxu0
    %1263 = vdwg.mxu0
    %1266 = vrot.lane.b32.xlu0 %v1256, 96
    %v1267 = vpop.permute.xlu0 %1266
    %1268 = vrot.lane.b32.xlu0 %v1261, 96
    %v1269 = vpop.permute.xlu0 %1268
    %v1270 = vsel %vm255, %v1256, 0
    %v1272 = vsel %vm255, %v1261, 0
    %v1274 = vsel %vm255, %v1267, 0
    %v1276 = vsel %vm255, %v1269, 0
    %1278 = vmatprep.subr.mxu0 0.0
    %1279 = vmatpush1.xpose.msra.mxu0 %v1274
    %1280 = vmatprep.subr.mxu0 0.0
    %1281 = vmatpush1.xpose.msra.mxu0 %v1276
    %1282 = vmatprep.subr.mxu0 0.0
    %1283 = vmatpush1.xpose.msra.mxu0 0.0
    %1284 = vmatprep.subr.mxu0 0.0
    %1285 = vmatpush1.xpose.msra.mxu0 0.0
    %1286 = vmatprep.subr.mxu0 0.0
    %1287 = vmatpush1.xpose.msra.mxu0 0.0
    %1288 = vmatprep.subr.mxu0 0.0
    %1289 = vmatpush1.xpose.msra.mxu0 0.0
    %1290 = vmatprep.subr.mxu0 0.0
    %1291 = vmatpush1.xpose.msra.mxu0 0.0
    %1292 = vmatprep.subr.mxu0 0.0
    %1293 = vmatpush1.xpose.msra.mxu0 0.0
    %1294 = vmatprep.subr.mxu0 0.0
    %1295 = vmatpush1.xpose.msra.mxu0 0.0
    %1296 = vmatprep.subr.mxu0 0.0
    %1297 = vmatpush1.xpose.msra.mxu0 0.0
    %1298 = vmatprep.subr.mxu0 0.0
    %1299 = vmatpush1.xpose.msra.mxu0 0.0
    %1300 = vmatprep.subr.mxu0 0.0
    %1301 = vmatpush1.xpose.msra.mxu0 0.0
    %1302 = vmatprep.subr.mxu0 0.0
    %1303 = vmatpush1.xpose.msra.mxu0 0.0
    %1304 = vmatprep.subr.mxu0 0.0
    %1305 = vmatpush1.xpose.msra.mxu0 0.0
    %1306 = vmatprep.subr.mxu0 0.0
    %1307 = vmatpush1.xpose.msra.mxu0 0.0
    %1308 = vmatprep.subr.mxu0 0.0
    %1309 = vmatpush1.xpose.msra.mxu0 0.0
    %1310 = vmatprep.subr.mxu0 0.0
    %1311 = vmatpush1.xpose.msra.mxu0 0.0
    %1312 = vmatprep.subr.mxu0 0.0
    %1313 = vmatpush1.xpose.msra.mxu0 0.0
    %1314 = vmatprep.subr.mxu0 0.0
    %1315 = vmatpush1.xpose.msra.mxu0 0.0
    %1316 = vmatprep.subr.mxu0 0.0
    %1317 = vmatpush1.xpose.msra.mxu0 0.0
    %1318 = vmatprep.subr.mxu0 0.0
    %1319 = vmatpush1.xpose.msra.mxu0 0.0
    %1320 = vmatprep.subr.mxu0 0.0
    %1321 = vmatpush1.xpose.msra.mxu0 0.0
    %1322 = vmatprep.subr.mxu0 0.0
    %1323 = vmatpush1.xpose.msra.mxu0 0.0
    %1324 = vmatprep.subr.mxu0 0.0
    %1325 = vmatpush1.xpose.msra.mxu0 0.0
    %1326 = vmatprep.subr.mxu0 0.0
    %1327 = vmatpush1.xpose.msra.mxu0 0.0
    %1328 = vmatprep.subr.mxu0 0.0
    %1329 = vmatpush1.xpose.msra.mxu0 0.0
    %1330 = vmatprep.subr.mxu0 0.0
    %1331 = vmatpush1.xpose.msra.mxu0 0.0
    %1332 = vmatprep.subr.mxu0 0.0
    %1333 = vmatpush1.xpose.msra.mxu0 0.0
    %1334 = vmatprep.subr.mxu0 0.0
    %1335 = vmatpush1.xpose.msra.mxu0 0.0
    %1336 = vmatprep.subr.mxu0 0.0
    %1337 = vmatpush1.xpose.msra.mxu0 0.0
    %1338 = vmatprep.subr.mxu0 0.0
    %1339 = vmatpush1.xpose.msra.mxu0 0.0
    %1340 = vmatprep.subr.mxu0 0.0
    %1341 = vmatpush1.xpose.msra.mxu0 0.0
    %1342 = vmatprep.mubr.f32.mxu0 0.0
    %1343 = vmatmul.mubr.f32.gmra.mrb[0].mxu0 %v1270
    %v1344 = vpop.f32.mrb[0].mxu0
    %v1345 = vadd.f32 %v72, %v1344
    %v1346 = vpop.f32.mrb[0].mxu0
    %1347 = vmatprep.mubr.f32.mxu0 0.0
    %1348 = vmatmul.mubr.f32.gmra.mrb[0].mxu0 %v1272
    %v1349 = vpop.f32.mrb[0].mxu0
    %v1350 = vadd.f32 %v73, %v1349
    %v1351 = vpop.f32.mrb[0].mxu0
    %1352 = vdwg.mxu0
    %v1353 = vsel %vm343, %v1345, -inf
    %1354 = vmax.xlane.f32.xlu0 %v1353
    %v1355 = vpop.xlane.xlu0 %1354
    %v1356 = vsel %vm343, %v1350, -inf
    %1357 = vmax.xlane.f32.xlu0 %v1356
    %v1358 = vpop.xlane.xlu0 %1357
    %v1359 = vsub.f32 %v1345, %v1355
    %v1360 = vsub.f32 %v1350, %v1358
    %v1361 = vmul.f32 %v1359, 1.442695
    %v1362 = vpow.pop %v1361
    %v1363 = vmul.f32 %v1360, 1.442695
    %v1364 = vpow.pop %v1363
    %v1365 = vsel %vm343, %v1362, 0.0
    %1366 = vadd.xlane.f32.xlu0 %v1365
    %v1367 = vpop.xlane.xlu0 %1366
    %v1368 = vsel %vm343, %v1364, 0.0
    %1369 = vadd.xlane.f32.xlu0 %v1368
    %v1370 = vpop.xlane.xlu0 %1369
    %v1371 = vrcp.pop %v1367
    %v1372 = vrcp.pop %v1370
    %v1373 = vmul.f32 %v1362, %v1371
    %v1374 = vmul.f32 %v1364, %v1372
    %1375 = vrot.lane.b32.xlu0 %v1256, 64
    %v1376 = vpop.permute.xlu0 %1375
    %1377 = vrot.lane.b32.xlu0 %v1261, 64
    %v1378 = vpop.permute.xlu0 %1377
    %v1382 = vsel %vm343, %v1373, 0
    %v1385 = vsel %vm343, %v1374, 0
    %1387 = vmatprep.subr.mxu0 0.0
    %1388 = vmatpush1.msra.mxu0 %v1376
    %1389 = vmatprep.subr.mxu0 0.0
    %1390 = vmatpush1.msra.mxu0 %v1378
    %1391 = vmatprep.subr.mxu0 0.0
    %1392 = vmatpush1.msra.mxu0 0.0
    %1393 = vmatprep.subr.mxu0 0.0
    %1394 = vmatpush1.msra.mxu0 0.0
    %1395 = vmatprep.subr.mxu0 0.0
    %1396 = vmatpush1.msra.mxu0 0.0
    %1397 = vmatprep.subr.mxu0 0.0
    %1398 = vmatpush1.msra.mxu0 0.0
    %1399 = vmatprep.subr.mxu0 0.0
    %1400 = vmatpush1.msra.mxu0 0.0
    %1401 = vmatprep.subr.mxu0 0.0
    %1402 = vmatpush1.msra.mxu0 0.0
    %1403 = vmatprep.subr.mxu0 0.0
    %1404 = vmatpush1.msra.mxu0 0.0
    %1405 = vmatprep.subr.mxu0 0.0
    %1406 = vmatpush1.msra.mxu0 0.0
    %1407 = vmatprep.subr.mxu0 0.0
    %1408 = vmatpush1.msra.mxu0 0.0
    %1409 = vmatprep.subr.mxu0 0.0
    %1410 = vmatpush1.msra.mxu0 0.0
    %1411 = vmatprep.subr.mxu0 0.0
    %1412 = vmatpush1.msra.mxu0 0.0
    %1413 = vmatprep.subr.mxu0 0.0
    %1414 = vmatpush1.msra.mxu0 0.0
    %1415 = vmatprep.subr.mxu0 0.0
    %1416 = vmatpush1.msra.mxu0 0.0
    %1417 = vmatprep.subr.mxu0 0.0
    %1418 = vmatpush1.msra.mxu0 0.0
    %1419 = vmatprep.subr.mxu0 0.0
    %1420 = vmatpush1.msra.mxu0 0.0
    %1421 = vmatprep.subr.mxu0 0.0
    %1422 = vmatpush1.msra.mxu0 0.0
    %1423 = vmatprep.subr.mxu0 0.0
    %1424 = vmatpush1.msra.mxu0 0.0
    %1425 = vmatprep.subr.mxu0 0.0
    %1426 = vmatpush1.msra.mxu0 0.0
    %1427 = vmatprep.subr.mxu0 0.0
    %1428 = vmatpush1.msra.mxu0 0.0
    %1429 = vmatprep.subr.mxu0 0.0
    %1430 = vmatpush1.msra.mxu0 0.0
    %1431 = vmatprep.subr.mxu0 0.0
    %1432 = vmatpush1.msra.mxu0 0.0
    %1433 = vmatprep.subr.mxu0 0.0
    %1434 = vmatpush1.msra.mxu0 0.0
    %1435 = vmatprep.subr.mxu0 0.0
    %1436 = vmatpush1.msra.mxu0 0.0
    %1437 = vmatprep.subr.mxu0 0.0
    %1438 = vmatpush1.msra.mxu0 0.0
    %1439 = vmatprep.subr.mxu0 0.0
    %1440 = vmatpush1.msra.mxu0 0.0
    %1441 = vmatprep.subr.mxu0 0.0
    %1442 = vmatpush1.msra.mxu0 0.0
    %1443 = vmatprep.subr.mxu0 0.0
    %1444 = vmatpush1.msra.mxu0 0.0
    %1445 = vmatprep.subr.mxu0 0.0
    %1446 = vmatpush1.msra.mxu0 0.0
    %1447 = vmatprep.subr.mxu0 0.0
    %1448 = vmatpush1.msra.mxu0 0.0
    %1449 = vmatprep.subr.mxu0 0.0
    %1450 = vmatpush1.msra.mxu0 0.0
    %1451 = vmatprep.mubr.f32.mxu0 0.0
    %1452 = vmatmul.mubr.f32.gmra.mrb[0].mxu0 %v1382
    %v1453 = vpop.f32.mrb[0].mxu0
    %v1454 = vadd.f32 0.0, %v1453
    %v1455 = vpop.f32.mrb[0].mxu0
    %1456 = vmatprep.mubr.f32.mxu0 0.0
    %1457 = vmatmul.mubr.f32.gmra.mrb[0].mxu0 %v1385
    %v1458 = vpop.f32.mrb[0].mxu0
    %v1459 = vadd.f32 0.0, %v1458
    %v1460 = vpop.f32.mrb[0].mxu0
    %1461 = vdwg.mxu0
    %1462 = vrot.lane.b32.xlu0 %v1256, 120
    %v1463 = vpop.permute.xlu0 %1462
    %1464 = vrot.lane.b32.xlu0 %v1261, 120
    %v1465 = vpop.permute.xlu0 %1464
    %1466 = vrot.lane.b32.xlu0 %v1256, 88
    %v1467 = vpop.permute.xlu0 %1466
    %1468 = vrot.lane.b32.xlu0 %v1261, 88
    %v1469 = vpop.permute.xlu0 %1468
    %v1470 = vsel %vm255, %v1463, 0
    %v1472 = vsel %vm255, %v1465, 0
    %v1474 = vsel %vm255, %v1467, 0
    %v1476 = vsel %vm255, %v1469, 0
    %1478 = vmatprep.subr.mxu0 0.0
    %1479 = vmatpush1.xpose.msra.mxu0 %v1474
    %1480 = vmatprep.subr.mxu0 0.0
    %1481 = vmatpush1.xpose.msra.mxu0 %v1476
    %1482 = vmatprep.subr.mxu0 0.0
    %1483 = vmatpush1.xpose.msra.mxu0 0.0
    %1484 = vmatprep.subr.mxu0 0.0
    %1485 = vmatpush1.xpose.msra.mxu0 0.0
    %1486 = vmatprep.subr.mxu0 0.0
    %1487 = vmatpush1.xpose.msra.mxu0 0.0
    %1488 = vmatprep.subr.mxu0 0.0
    %1489 = vmatpush1.xpose.msra.mxu0 0.0
    %1490 = vmatprep.subr.mxu0 0.0
    %1491 = vmatpush1.xpose.msra.mxu0 0.0
    %1492 = vmatprep.subr.mxu0 0.0
    %1493 = vmatpush1.xpose.msra.mxu0 0.0
    %1494 = vmatprep.subr.mxu0 0.0
    %1495 = vmatpush1.xpose.msra.mxu0 0.0
    %1496 = vmatprep.subr.mxu0 0.0
    %1497 = vmatpush1.xpose.msra.mxu0 0.0
    %1498 = vmatprep.subr.mxu0 0.0
    %1499 = vmatpush1.xpose.msra.mxu0 0.0
    %1500 = vmatprep.subr.mxu0 0.0
    %1501 = vmatpush1.xpose.msra.mxu0 0.0
    %1502 = vmatprep.subr.mxu0 0.0
    %1503 = vmatpush1.xpose.msra.mxu0 0.0
    %1504 = vmatprep.subr.mxu0 0.0
    %1505 = vmatpush1.xpose.msra.mxu0 0.0
    %1506 = vmatprep.subr.mxu0 0.0
    %1507 = vmatpush1.xpose.msra.mxu0 0.0
    %1508 = vmatprep.subr.mxu0 0.0
    %1509 = vmatpush1.xpose.msra.mxu0 0.0
    %1510 = vmatprep.subr.mxu0 0.0
    %1511 = vmatpush1.xpose.msra.mxu0 0.0
    %1512 = vmatprep.subr.mxu0 0.0
    %1513 = vmatpush1.xpose.msra.mxu0 0.0
    %1514 = vmatprep.subr.mxu0 0.0
    %1515 = vmatpush1.xpose.msra.mxu0 0.0
    %1516 = vmatprep.subr.mxu0 0.0
    %1517 = vmatpush1.xpose.msra.mxu0 0.0
    %1518 = vmatprep.subr.mxu0 0.0
    %1519 = vmatpush1.xpose.msra.mxu0 0.0
    %1520 = vmatprep.subr.mxu0 0.0
    %1521 = vmatpush1.xpose.msra.mxu0 0.0
    %1522 = vmatprep.subr.mxu0 0.0
    %1523 = vmatpush1.xpose.msra.mxu0 0.0
    %1524 = vmatprep.subr.mxu0 0.0
    %1525 = vmatpush1.xpose.msra.mxu0 0.0
    %1526 = vmatprep.subr.mxu0 0.0
    %1527 = vmatpush1.xpose.msra.mxu0 0.0
    %1528 = vmatprep.subr.mxu0 0.0
    %1529 = vmatpush1.xpose.msra.mxu0 0.0
    %1530 = vmatprep.subr.mxu0 0.0
    %1531 = vmatpush1.xpose.msra.mxu0 0.0
    %1532 = vmatprep.subr.mxu0 0.0
    %1533 = vmatpush1.xpose.msra.mxu0 0.0
    %1534 = vmatprep.subr.mxu0 0.0
    %1535 = vmatpush1.xpose.msra.mxu0 0.0
    %1536 = vmatprep.subr.mxu0 0.0
    %1537 = vmatpush1.xpose.msra.mxu0 0.0
    %1538 = vmatprep.subr.mxu0 0.0
    %1539 = vmatpush1.xpose.msra.mxu0 0.0
    %1540 = vmatprep.subr.mxu0 0.0
    %1541 = vmatpush1.xpose.msra.mxu0 0.0
    %1542 = vmatprep.mubr.f32.mxu0 0.0
    %1543 = vmatmul.mubr.f32.gmra.mrb[0].mxu0 %v1470
    %v1544 = vpop.f32.mrb[0].mxu0
    %v1545 = vadd.f32 %v72, %v1544
    %v1546 = vpop.f32.mrb[0].mxu0
    %1547 = vmatprep.mubr.f32.mxu0 0.0
    %1548 = vmatmul.mubr.f32.gmra.mrb[0].mxu0 %v1472
    %v1549 = vpop.f32.mrb[0].mxu0
    %v1550 = vadd.f32 %v73, %v1549
    %v1551 = vpop.f32.mrb[0].mxu0
    %1552 = vdwg.mxu0
    %v1553 = vsel %vm343, %v1545, -inf
    %1554 = vmax.xlane.f32.xlu0 %v1553
    %v1555 = vpop.xlane.xlu0 %1554
    %v1556 = vsel %vm343, %v1550, -inf
    %1557 = vmax.xlane.f32.xlu0 %v1556
    %v1558 = vpop.xlane.xlu0 %1557
    %v1559 = vsub.f32 %v1545, %v1555
    %v1560 = vsub.f32 %v1550, %v1558
    %v1561 = vmul.f32 %v1559, 1.442695
    %v1562 = vpow.pop %v1561
    %v1563 = vmul.f32 %v1560, 1.442695
    %v1564 = vpow.pop %v1563
    %v1565 = vsel %vm343, %v1562, 0.0
    %1566 = vadd.xlane.f32.xlu0 %v1565
    %v1567 = vpop.xlane.xlu0 %1566
    %v1568 = vsel %vm343, %v1564, 0.0
    %1569 = vadd.xlane.f32.xlu0 %v1568
    %v1570 = vpop.xlane.xlu0 %1569
    %v1571 = vrcp.pop %v1567
    %v1572 = vrcp.pop %v1570
    %v1573 = vmul.f32 %v1562, %v1571
    %v1574 = vmul.f32 %v1564, %v1572
    %1575 = vrot.lane.b32.xlu0 %v1256, 56
    %v1576 = vpop.permute.xlu0 %1575
    %1577 = vrot.lane.b32.xlu0 %v1261, 56
    %v1578 = vpop.permute.xlu0 %1577
    %v1582 = vsel %vm343, %v1573, 0
    %v1585 = vsel %vm343, %v1574, 0
    %1587 = vmatprep.subr.mxu0 0.0
    %1588 = vmatpush1.msra.mxu0 %v1576
    %1589 = vmatprep.subr.mxu0 0.0
    %1590 = vmatpush1.msra.mxu0 %v1578
    %1591 = vmatprep.subr.mxu0 0.0
    %1592 = vmatpush1.msra.mxu0 0.0
    %1593 = vmatprep.subr.mxu0 0.0
    %1594 = vmatpush1.msra.mxu0 0.0
    %1595 = vmatprep.subr.mxu0 0.0
    %1596 = vmatpush1.msra.mxu0 0.0
    %1597 = vmatprep.subr.mxu0 0.0
    %1598 = vmatpush1.msra.mxu0 0.0
    %1599 = vmatprep.subr.mxu0 0.0
    %1600 = vmatpush1.msra.mxu0 0.0
    %1601 = vmatprep.subr.mxu0 0.0
    %1602 = vmatpush1.msra.mxu0 0.0
    %1603 = vmatprep.subr.mxu0 0.0
    %1604 = vmatpush1.msra.mxu0 0.0
    %1605 = vmatprep.subr.mxu0 0.0
    %1606 = vmatpush1.msra.mxu0 0.0
    %1607 = vmatprep.subr.mxu0 0.0
    %1608 = vmatpush1.msra.mxu0 0.0
    %1609 = vmatprep.subr.mxu0 0.0
    %1610 = vmatpush1.msra.mxu0 0.0
    %1611 = vmatprep.subr.mxu0 0.0
    %1612 = vmatpush1.msra.mxu0 0.0
    %1613 = vmatprep.subr.mxu0 0.0
    %1614 = vmatpush1.msra.mxu0 0.0
    %1615 = vmatprep.subr.mxu0 0.0
    %1616 = vmatpush1.msra.mxu0 0.0
    %1617 = vmatprep.subr.mxu0 0.0
    %1618 = vmatpush1.msra.mxu0 0.0
    %1619 = vmatprep.subr.mxu0 0.0
    %1620 = vmatpush1.msra.mxu0 0.0
    %1621 = vmatprep.subr.mxu0 0.0
    %1622 = vmatpush1.msra.mxu0 0.0
    %1623 = vmatprep.subr.mxu0 0.0
    %1624 = vmatpush1.msra.mxu0 0.0
    %1625 = vmatprep.subr.mxu0 0.0
    %1626 = vmatpush1.msra.mxu0 0.0
    %1627 = vmatprep.subr.mxu0 0.0
    %1628 = vmatpush1.msra.mxu0 0.0
    %1629 = vmatprep.subr.mxu0 0.0
    %1630 = vmatpush1.msra.mxu0 0.0
    %1631 = vmatprep.subr.mxu0 0.0
    %1632 = vmatpush1.msra.mxu0 0.0
    %1633 = vmatprep.subr.mxu0 0.0
    %1634 = vmatpush1.msra.mxu0 0.0
    %1635 = vmatprep.subr.mxu0 0.0
    %1636 = vmatpush1.msra.mxu0 0.0
    %1637 = vmatprep.subr.mxu0 0.0
    %1638 = vmatpush1.msra.mxu0 0.0
    %1639 = vmatprep.subr.mxu0 0.0
    %1640 = vmatpush1.msra.mxu0 0.0
    %1641 = vmatprep.subr.mxu0 0.0
    %1642 = vmatpush1.msra.mxu0 0.0
    %1643 = vmatprep.subr.mxu0 0.0
    %1644 = vmatpush1.msra.mxu0 0.0
    %1645 = vmatprep.subr.mxu0 0.0
    %1646 = vmatpush1.msra.mxu0 0.0
    %1647 = vmatprep.subr.mxu0 0.0
    %1648 = vmatpush1.msra.mxu0 0.0
    %1649 = vmatprep.subr.mxu0 0.0
    %1650 = vmatpush1.msra.mxu0 0.0
    %1651 = vmatprep.mubr.f32.mxu0 0.0
    %1652 = vmatmul.mubr.f32.gmra.mrb[0].mxu0 %v1582
    %v1653 = vpop.f32.mrb[0].mxu0
    %v1654 = vadd.f32 0.0, %v1653
    %v1655 = vpop.f32.mrb[0].mxu0
    %1656 = vmatprep.mubr.f32.mxu0 0.0
    %1657 = vmatmul.mubr.f32.gmra.mrb[0].mxu0 %v1585
    %v1658 = vpop.f32.mrb[0].mxu0
    %v1659 = vadd.f32 0.0, %v1658
    %v1660 = vpop.f32.mrb[0].mxu0
    %1661 = vdwg.mxu0
    %1662 = vrot.lane.b32.xlu0 %v1256, 112
    %v1663 = vpop.permute.xlu0 %1662
    %1664 = vrot.lane.b32.xlu0 %v1261, 112
    %v1665 = vpop.permute.xlu0 %1664
    %1666 = vrot.lane.b32.xlu0 %v1256, 80
    %v1667 = vpop.permute.xlu0 %1666
    %1668 = vrot.lane.b32.xlu0 %v1261, 80
    %v1669 = vpop.permute.xlu0 %1668
    %v1670 = vsel %vm255, %v1663, 0
    %v1672 = vsel %vm255, %v1665, 0
    %v1674 = vsel %vm255, %v1667, 0
    %v1676 = vsel %vm255, %v1669, 0
    %1678 = vmatprep.subr.mxu0 0.0
    %1679 = vmatpush1.xpose.msra.mxu0 %v1674
    %1680 = vmatprep.subr.mxu0 0.0
    %1681 = vmatpush1.xpose.msra.mxu0 %v1676
    %1682 = vmatprep.subr.mxu0 0.0
    %1683 = vmatpush1.xpose.msra.mxu0 0.0
    %1684 = vmatprep.subr.mxu0 0.0
    %1685 = vmatpush1.xpose.msra.mxu0 0.0
    %1686 = vmatprep.subr.mxu0 0.0
    %1687 = vmatpush1.xpose.msra.mxu0 0.0
    %1688 = vmatprep.subr.mxu0 0.0
    %1689 = vmatpush1.xpose.msra.mxu0 0.0
    %1690 = vmatprep.subr.mxu0 0.0
    %1691 = vmatpush1.xpose.msra.mxu0 0.0
    %1692 = vmatprep.subr.mxu0 0.0
    %1693 = vmatpush1.xpose.msra.mxu0 0.0
    %1694 = vmatprep.subr.mxu0 0.0
    %1695 = vmatpush1.xpose.msra.mxu0 0.0
    %1696 = vmatprep.subr.mxu0 0.0
    %1697 = vmatpush1.xpose.msra.mxu0 0.0
    %1698 = vmatprep.subr.mxu0 0.0
    %1699 = vmatpush1.xpose.msra.mxu0 0.0
    %1700 = vmatprep.subr.mxu0 0.0
    %1701 = vmatpush1.xpose.msra.mxu0 0.0
    %1702 = vmatprep.subr.mxu0 0.0
    %1703 = vmatpush1.xpose.msra.mxu0 0.0
    %1704 = vmatprep.subr.mxu0 0.0
    %1705 = vmatpush1.xpose.msra.mxu0 0.0
    %1706 = vmatprep.subr.mxu0 0.0
    %1707 = vmatpush1.xpose.msra.mxu0 0.0
    %1708 = vmatprep.subr.mxu0 0.0
    %1709 = vmatpush1.xpose.msra.mxu0 0.0
    %1710 = vmatprep.subr.mxu0 0.0
    %1711 = vmatpush1.xpose.msra.mxu0 0.0
    %1712 = vmatprep.subr.mxu0 0.0
    %1713 = vmatpush1.xpose.msra.mxu0 0.0
    %1714 = vmatprep.subr.mxu0 0.0
    %1715 = vmatpush1.xpose.msra.mxu0 0.0
    %1716 = vmatprep.subr.mxu0 0.0
    %1717 = vmatpush1.xpose.msra.mxu0 0.0
    %1718 = vmatprep.subr.mxu0 0.0
    %1719 = vmatpush1.xpose.msra.mxu0 0.0
    %1720 = vmatprep.subr.mxu0 0.0
    %1721 = vmatpush1.xpose.msra.mxu0 0.0
    %1722 = vmatprep.subr.mxu0 0.0
    %1723 = vmatpush1.xpose.msra.mxu0 0.0
    %1724 = vmatprep.subr.mxu0 0.0
    %1725 = vmatpush1.xpose.msra.mxu0 0.0
    %1726 = vmatprep.subr.mxu0 0.0
    %1727 = vmatpush1.xpose.msra.mxu0 0.0
    %1728 = vmatprep.subr.mxu0 0.0
    %1729 = vmatpush1.xpose.msra.mxu0 0.0
    %1730 = vmatprep.subr.mxu0 0.0
    %1731 = vmatpush1.xpose.msra.mxu0 0.0
    %1732 = vmatprep.subr.mxu0 0.0
    %1733 = vmatpush1.xpose.msra.mxu0 0.0
    %1734 = vmatprep.subr.mxu0 0.0
    %1735 = vmatpush1.xpose.msra.mxu0 0.0
    %1736 = vmatprep.subr.mxu0 0.0
    %1737 = vmatpush1.xpose.msra.mxu0 0.0
    %1738 = vmatprep.subr.mxu0 0.0
    %1739 = vmatpush1.xpose.msra.mxu0 0.0
    %1740 = vmatprep.subr.mxu0 0.0
    %1741 = vmatpush1.xpose.msra.mxu0 0.0
    %1742 = vmatprep.mubr.f32.mxu0 0.0
    %1743 = vmatmul.mubr.f32.gmra.mrb[0].mxu0 %v1670
    %v1744 = vpop.f32.mrb[0].mxu0
    %v1745 = vadd.f32 %v72, %v1744
    %v1746 = vpop.f32.mrb[0].mxu0
    %1747 = vmatprep.mubr.f32.mxu0 0.0
    %1748 = vmatmul.mubr.f32.gmra.mrb[0].mxu0 %v1672
    %v1749 = vpop.f32.mrb[0].mxu0
    %v1750 = vadd.f32 %v73, %v1749
    %v1751 = vpop.f32.mrb[0].mxu0
    %1752 = vdwg.mxu0
    %v1753 = vsel %vm343, %v1745, -inf
    %1754 = vmax.xlane.f32.xlu0 %v1753
    %v1755 = vpop.xlane.xlu0 %1754
    %v1756 = vsel %vm343, %v1750, -inf
    %1757 = vmax.xlane.f32.xlu0 %v1756
    %v1758 = vpop.xlane.xlu0 %1757
    %v1759 = vsub.f32 %v1745, %v1755
    %v1760 = vsub.f32 %v1750, %v1758
    %v1761 = vmul.f32 %v1759, 1.442695
    %v1762 = vpow.pop %v1761
    %v1763 = vmul.f32 %v1760, 1.442695
    %v1764 = vpow.pop %v1763
    %v1765 = vsel %vm343, %v1762, 0.0
    %1766 = vadd.xlane.f32.xlu0 %v1765
    %v1767 = vpop.xlane.xlu0 %1766
    %v1768 = vsel %vm343, %v1764, 0.0
    %1769 = vadd.xlane.f32.xlu0 %v1768
    %v1770 = vpop.xlane.xlu0 %1769
    %v1771 = vrcp.pop %v1767
    %v1772 = vrcp.pop %v1770
    %v1773 = vmul.f32 %v1762, %v1771
    %v1774 = vmul.f32 %v1764, %v1772
    %1775 = vrot.lane.b32.xlu0 %v1256, 48
    %v1776 = vpop.permute.xlu0 %1775
    %1777 = vrot.lane.b32.xlu0 %v1261, 48
    %v1778 = vpop.permute.xlu0 %1777
    %v1782 = vsel %vm343, %v1773, 0
    %v1785 = vsel %vm343, %v1774, 0
    %1787 = vmatprep.subr.mxu0 0.0
    %1788 = vmatpush1.msra.mxu0 %v1776
    %1789 = vmatprep.subr.mxu0 0.0
    %1790 = vmatpush1.msra.mxu0 %v1778
    %1791 = vmatprep.subr.mxu0 0.0
    %1792 = vmatpush1.msra.mxu0 0.0
    %1793 = vmatprep.subr.mxu0 0.0
    %1794 = vmatpush1.msra.mxu0 0.0
    %1795 = vmatprep.subr.mxu0 0.0
    %1796 = vmatpush1.msra.mxu0 0.0
    %1797 = vmatprep.subr.mxu0 0.0
    %1798 = vmatpush1.msra.mxu0 0.0
    %1799 = vmatprep.subr.mxu0 0.0
    %1800 = vmatpush1.msra.mxu0 0.0
    %1801 = vmatprep.subr.mxu0 0.0
    %1802 = vmatpush1.msra.mxu0 0.0
    %1803 = vmatprep.subr.mxu0 0.0
    %1804 = vmatpush1.msra.mxu0 0.0
    %1805 = vmatprep.subr.mxu0 0.0
    %1806 = vmatpush1.msra.mxu0 0.0
    %1807 = vmatprep.subr.mxu0 0.0
    %1808 = vmatpush1.msra.mxu0 0.0
    %1809 = vmatprep.subr.mxu0 0.0
    %1810 = vmatpush1.msra.mxu0 0.0
    %1811 = vmatprep.subr.mxu0 0.0
    %1812 = vmatpush1.msra.mxu0 0.0
    %1813 = vmatprep.subr.mxu0 0.0
    %1814 = vmatpush1.msra.mxu0 0.0
    %1815 = vmatprep.subr.mxu0 0.0
    %1816 = vmatpush1.msra.mxu0 0.0
    %1817 = vmatprep.subr.mxu0 0.0
    %1818 = vmatpush1.msra.mxu0 0.0
    %1819 = vmatprep.subr.mxu0 0.0
    %1820 = vmatpush1.msra.mxu0 0.0
    %1821 = vmatprep.subr.mxu0 0.0
    %1822 = vmatpush1.msra.mxu0 0.0
    %1823 = vmatprep.subr.mxu0 0.0
    %1824 = vmatpush1.msra.mxu0 0.0
    %1825 = vmatprep.subr.mxu0 0.0
    %1826 = vmatpush1.msra.mxu0 0.0
    %1827 = vmatprep.subr.mxu0 0.0
    %1828 = vmatpush1.msra.mxu0 0.0
    %1829 = vmatprep.subr.mxu0 0.0
    %1830 = vmatpush1.msra.mxu0 0.0
    %1831 = vmatprep.subr.mxu0 0.0
    %1832 = vmatpush1.msra.mxu0 0.0
    %1833 = vmatprep.subr.mxu0 0.0
    %1834 = vmatpush1.msra.mxu0 0.0
    %1835 = vmatprep.subr.mxu0 0.0
    %1836 = vmatpush1.msra.mxu0 0.0
    %1837 = vmatprep.subr.mxu0 0.0
    %1838 = vmatpush1.msra.mxu0 0.0
    %1839 = vmatprep.subr.mxu0 0.0
    %1840 = vmatpush1.msra.mxu0 0.0
    %1841 = vmatprep.subr.mxu0 0.0
    %1842 = vmatpush1.msra.mxu0 0.0
    %1843 = vmatprep.subr.mxu0 0.0
    %1844 = vmatpush1.msra.mxu0 0.0
    %1845 = vmatprep.subr.mxu0 0.0
    %1846 = vmatpush1.msra.mxu0 0.0
    %1847 = vmatprep.subr.mxu0 0.0
    %1848 = vmatpush1.msra.mxu0 0.0
    %1849 = vmatprep.subr.mxu0 0.0
    %1850 = vmatpush1.msra.mxu0 0.0
    %1851 = vmatprep.mubr.f32.mxu0 0.0
    %1852 = vmatmul.mubr.f32.gmra.mrb[0].mxu0 %v1782
    %v1853 = vpop.f32.mrb[0].mxu0
    %v1854 = vadd.f32 0.0, %v1853
    %v1855 = vpop.f32.mrb[0].mxu0
    %1856 = vmatprep.mubr.f32.mxu0 0.0
    %1857 = vmatmul.mubr.f32.gmra.mrb[0].mxu0 %v1785
    %v1858 = vpop.f32.mrb[0].mxu0
    %v1859 = vadd.f32 0.0, %v1858
    %v1860 = vpop.f32.mrb[0].mxu0
    %1861 = vdwg.mxu0
    %1862 = vrot.lane.b32.xlu0 %v1256, 104
    %v1863 = vpop.permute.xlu0 %1862
    %1864 = vrot.lane.b32.xlu0 %v1261, 104
    %v1865 = vpop.permute.xlu0 %1864
    %1866 = vrot.lane.b32.xlu0 %v1256, 72
    %v1867 = vpop.permute.xlu0 %1866
    %1868 = vrot.lane.b32.xlu0 %v1261, 72
    %v1869 = vpop.permute.xlu0 %1868
    %v1870 = vsel %vm255, %v1863, 0
    %v1872 = vsel %vm255, %v1865, 0
    %v1874 = vsel %vm255, %v1867, 0
    %v1876 = vsel %vm255, %v1869, 0
    %1878 = vmatprep.subr.mxu0 0.0
    %1879 = vmatpush1.xpose.msra.mxu0 %v1874
    %1880 = vmatprep.subr.mxu0 0.0
    %1881 = vmatpush1.xpose.msra.mxu0 %v1876
    %1882 = vmatprep.subr.mxu0 0.0
    %1883 = vmatpush1.xpose.msra.mxu0 0.0
    %1884 = vmatprep.subr.mxu0 0.0
    %1885 = vmatpush1.xpose.msra.mxu0 0.0
    %1886 = vmatprep.subr.mxu0 0.0
    %1887 = vmatpush1.xpose.msra.mxu0 0.0
    %1888 = vmatprep.subr.mxu0 0.0
    %1889 = vmatpush1.xpose.msra.mxu0 0.0
    %1890 = vmatprep.subr.mxu0 0.0
    %1891 = vmatpush1.xpose.msra.mxu0 0.0
    %1892 = vmatprep.subr.mxu0 0.0
    %1893 = vmatpush1.xpose.msra.mxu0 0.0
    %1894 = vmatprep.subr.mxu0 0.0
    %1895 = vmatpush1.xpose.msra.mxu0 0.0
    %1896 = vmatprep.subr.mxu0 0.0
    %1897 = vmatpush1.xpose.msra.mxu0 0.0
    %1898 = vmatprep.subr.mxu0 0.0
    %1899 = vmatpush1.xpose.msra.mxu0 0.0
    %1900 = vmatprep.subr.mxu0 0.0
    %1901 = vmatpush1.xpose.msra.mxu0 0.0
    %1902 = vmatprep.subr.mxu0 0.0
    %1903 = vmatpush1.xpose.msra.mxu0 0.0
    %1904 = vmatprep.subr.mxu0 0.0
    %1905 = vmatpush1.xpose.msra.mxu0 0.0
    %1906 = vmatprep.subr.mxu0 0.0
    %1907 = vmatpush1.xpose.msra.mxu0 0.0
    %1908 = vmatprep.subr.mxu0 0.0
    %1909 = vmatpush1.xpose.msra.mxu0 0.0
    %1910 = vmatprep.subr.mxu0 0.0
    %1911 = vmatpush1.xpose.msra.mxu0 0.0
    %1912 = vmatprep.subr.mxu0 0.0
    %1913 = vmatpush1.xpose.msra.mxu0 0.0
    %1914 = vmatprep.subr.mxu0 0.0
    %1915 = vmatpush1.xpose.msra.mxu0 0.0
    %1916 = vmatprep.subr.mxu0 0.0
    %1917 = vmatpush1.xpose.msra.mxu0 0.0
    %1918 = vmatprep.subr.mxu0 0.0
    %1919 = vmatpush1.xpose.msra.mxu0 0.0
    %1920 = vmatprep.subr.mxu0 0.0
    %1921 = vmatpush1.xpose.msra.mxu0 0.0
    %1922 = vmatprep.subr.mxu0 0.0
    %1923 = vmatpush1.xpose.msra.mxu0 0.0
    %1924 = vmatprep.subr.mxu0 0.0
    %1925 = vmatpush1.xpose.msra.mxu0 0.0
    %1926 = vmatprep.subr.mxu0 0.0
    %1927 = vmatpush1.xpose.msra.mxu0 0.0
    %1928 = vmatprep.subr.mxu0 0.0
    %1929 = vmatpush1.xpose.msra.mxu0 0.0
    %1930 = vmatprep.subr.mxu0 0.0
    %1931 = vmatpush1.xpose.msra.mxu0 0.0
    %1932 = vmatprep.subr.mxu0 0.0
    %1933 = vmatpush1.xpose.msra.mxu0 0.0
    %1934 = vmatprep.subr.mxu0 0.0
    %1935 = vmatpush1.xpose.msra.mxu0 0.0
    %1936 = vmatprep.subr.mxu0 0.0
    %1937 = vmatpush1.xpose.msra.mxu0 0.0
    %1938 = vmatprep.subr.mxu0 0.0
    %1939 = vmatpush1.xpose.msra.mxu0 0.0
    %1940 = vmatprep.subr.mxu0 0.0
    %1941 = vmatpush1.xpose.msra.mxu0 0.0
    %1942 = vmatprep.mubr.f32.mxu0 0.0
    %1943 = vmatmul.mubr.f32.gmra.mrb[0].mxu0 %v1870
    %v1944 = vpop.f32.mrb[0].mxu0
    %v1945 = vadd.f32 %v72, %v1944
    %v1946 = vpop.f32.mrb[0].mxu0
    %1947 = vmatprep.mubr.f32.mxu0 0.0
    %1948 = vmatmul.mubr.f32.gmra.mrb[0].mxu0 %v1872
    %v1949 = vpop.f32.mrb[0].mxu0
    %v1950 = vadd.f32 %v73, %v1949
    %v1951 = vpop.f32.mrb[0].mxu0
    %1952 = vdwg.mxu0
    %v1953 = vsel %vm343, %v1945, -inf
    %1954 = vmax.xlane.f32.xlu0 %v1953
    %v1955 = vpop.xlane.xlu0 %1954
    %v1956 = vsel %vm343, %v1950, -inf
    %1957 = vmax.xlane.f32.xlu0 %v1956
    %v1958 = vpop.xlane.xlu0 %1957
    %v1959 = vsub.f32 %v1945, %v1955
    %v1960 = vsub.f32 %v1950, %v1958
    %v1961 = vmul.f32 %v1959, 1.442695
    %v1962 = vpow.pop %v1961
    %v1963 = vmul.f32 %v1960, 1.442695
    %v1964 = vpow.pop %v1963
    %v1965 = vsel %vm343, %v1962, 0.0
    %1966 = vadd.xlane.f32.xlu0 %v1965
    %v1967 = vpop.xlane.xlu0 %1966
    %v1968 = vsel %vm343, %v1964, 0.0
    %1969 = vadd.xlane.f32.xlu0 %v1968
    %v1970 = vpop.xlane.xlu0 %1969
    %v1971 = vrcp.pop %v1967
    %v1972 = vrcp.pop %v1970
    %v1973 = vmul.f32 %v1962, %v1971
    %v1974 = vmul.f32 %v1964, %v1972
    %1975 = vrot.lane.b32.xlu0 %v1256, 40
    %v1976 = vpop.permute.xlu0 %1975
    %1977 = vrot.lane.b32.xlu0 %v1261, 40
    %v1978 = vpop.permute.xlu0 %1977
    %v1982 = vsel %vm343, %v1973, 0
    %v1985 = vsel %vm343, %v1974, 0
    %1987 = vmatprep.subr.mxu0 0.0
    %1988 = vmatpush1.msra.mxu0 %v1976
    %1989 = vmatprep.subr.mxu0 0.0
    %1990 = vmatpush1.msra.mxu0 %v1978
    %1991 = vmatprep.subr.mxu0 0.0
    %1992 = vmatpush1.msra.mxu0 0.0
    %1993 = vmatprep.subr.mxu0 0.0
    %1994 = vmatpush1.msra.mxu0 0.0
    %1995 = vmatprep.subr.mxu0 0.0
    %1996 = vmatpush1.msra.mxu0 0.0
    %1997 = vmatprep.subr.mxu0 0.0
    %1998 = vmatpush1.msra.mxu0 0.0
    %1999 = vmatprep.subr.mxu0 0.0
    %2000 = vmatpush1.msra.mxu0 0.0
    %2001 = vmatprep.subr.mxu0 0.0
    %2002 = vmatpush1.msra.mxu0 0.0
    %2003 = vmatprep.subr.mxu0 0.0
    %2004 = vmatpush1.msra.mxu0 0.0
    %2005 = vmatprep.subr.mxu0 0.0
    %2006 = vmatpush1.msra.mxu0 0.0
    %2007 = vmatprep.subr.mxu0 0.0
    %2008 = vmatpush1.msra.mxu0 0.0
    %2009 = vmatprep.subr.mxu0 0.0
    %2010 = vmatpush1.msra.mxu0 0.0
    %2011 = vmatprep.subr.mxu0 0.0
    %2012 = vmatpush1.msra.mxu0 0.0
    %2013 = vmatprep.subr.mxu0 0.0
    %2014 = vmatpush1.msra.mxu0 0.0
    %2015 = vmatprep.subr.mxu0 0.0
    %2016 = vmatpush1.msra.mxu0 0.0
    %2017 = vmatprep.subr.mxu0 0.0
    %2018 = vmatpush1.msra.mxu0 0.0
    %2019 = vmatprep.subr.mxu0 0.0
    %2020 = vmatpush1.msra.mxu0 0.0
    %2021 = vmatprep.subr.mxu0 0.0
    %2022 = vmatpush1.msra.mxu0 0.0
    %2023 = vmatprep.subr.mxu0 0.0
    %2024 = vmatpush1.msra.mxu0 0.0
    %2025 = vmatprep.subr.mxu0 0.0
    %2026 = vmatpush1.msra.mxu0 0.0
    %2027 = vmatprep.subr.mxu0 0.0
    %2028 = vmatpush1.msra.mxu0 0.0
    %2029 = vmatprep.subr.mxu0 0.0
    %2030 = vmatpush1.msra.mxu0 0.0
    %2031 = vmatprep.subr.mxu0 0.0
    %2032 = vmatpush1.msra.mxu0 0.0
    %2033 = vmatprep.subr.mxu0 0.0
    %2034 = vmatpush1.msra.mxu0 0.0
    %2035 = vmatprep.subr.mxu0 0.0
    %2036 = vmatpush1.msra.mxu0 0.0
    %2037 = vmatprep.subr.mxu0 0.0
    %2038 = vmatpush1.msra.mxu0 0.0
    %2039 = vmatprep.subr.mxu0 0.0
    %2040 = vmatpush1.msra.mxu0 0.0
    %2041 = vmatprep.subr.mxu0 0.0
    %2042 = vmatpush1.msra.mxu0 0.0
    %2043 = vmatprep.subr.mxu0 0.0
    %2044 = vmatpush1.msra.mxu0 0.0
    %2045 = vmatprep.subr.mxu0 0.0
    %2046 = vmatpush1.msra.mxu0 0.0
    %2047 = vmatprep.subr.mxu0 0.0
    %2048 = vmatpush1.msra.mxu0 0.0
    %2049 = vmatprep.subr.mxu0 0.0
    %2050 = vmatpush1.msra.mxu0 0.0
    %2051 = vmatprep.mubr.f32.mxu0 0.0
    %2052 = vmatmul.mubr.f32.gmra.mrb[0].mxu0 %v1982
    %v2053 = vpop.f32.mrb[0].mxu0
    %v2054 = vadd.f32 0.0, %v2053
    %v2055 = vpop.f32.mrb[0].mxu0
    %2056 = vmatprep.mubr.f32.mxu0 0.0
    %2057 = vmatmul.mubr.f32.gmra.mrb[0].mxu0 %v1985
    %v2058 = vpop.f32.mrb[0].mxu0
    %v2059 = vadd.f32 0.0, %v2058
    %v2060 = vpop.f32.mrb[0].mxu0
    %2061 = vdwg.mxu0
    %2064 = vrot.lane.b32.xlu0 %v1654, 8
    %v2065 = vpop.permute.xlu0 %2064
    %2066 = vrot.lane.b32.xlu0 %v1659, 8
    %v2067 = vpop.permute.xlu0 %2066
    %2072 = vrot.lane.b32.xlu0 %v1854, 16
    %v2073 = vpop.permute.xlu0 %2072
    %2074 = vrot.lane.b32.xlu0 %v1859, 16
    %v2075 = vpop.permute.xlu0 %2074
    %2080 = vrot.lane.b32.xlu0 %v2054, 24
    %v2081 = vpop.permute.xlu0 %2080
    %2082 = vrot.lane.b32.xlu0 %v2059, 24
    %v2083 = vpop.permute.xlu0 %2082
    %v2086 = vsel %vm255, %v1454, %v2065
    %v2087 = vsel %vm255, %v1459, %v2067
    %v2088 = vsel %vm343, %v2086, %v2073
    %v2089 = vsel %vm343, %v2087, %v2075
    %v2090 = vsel %vm1081, %v2088, %v2081
    %v2091 = vsel %vm1081, %v2089, %v2083
    %v2092 = vld [vmem:[#allocation9 + $0xa0] sm:$0xff]
    %v2093 = vld [vmem:[#allocation9 + $0xa8] sm:$0xff]
    %v2094 = vld [vmem:[#allocation9 + $0xb0] sm:$0xff]
    %v2095 = vld [vmem:[#allocation9 + $0xb8] sm:$0xff]
    %v2096 = vld [vmem:[#allocation9 + $0xc0] sm:$0x1]
    %v2097 = vlaneseq
    %v2098 = vshrl.u32 %v2097, 7
    %v2099 = vsub.s32 0, %v2098
    %v2100 = vrot.slane %v2096, %v2099
    %v2102 = vsel %vm83, %v2090, 0
    %v2105 = vsel %vm83, %v2091, 0
    %2107 = vmatprep.subr.mxu0 0.0
    %2108 = vmatpush1.msra.mxu0 %v2092
    %2109 = vmatprep.subr.mxu0 0.0
    %2110 = vmatpush1.msra.mxu0 %v2093
    %2111 = vmatprep.subr.mxu0 0.0
    %2112 = vmatpush1.msra.mxu0 %v2094
    %2113 = vmatprep.subr.mxu0 0.0
    %2114 = vmatpush1.msra.mxu0 %v2095
    %2115 = vmatprep.subr.mxu0 0.0
    %2116 = vmatpush1.msra.mxu0 0.0
    %2117 = vmatprep.subr.mxu0 0.0
    %2118 = vmatpush1.msra.mxu0 0.0
    %2119 = vmatprep.subr.mxu0 0.0
    %2120 = vmatpush1.msra.mxu0 0.0
    %2121 = vmatprep.subr.mxu0 0.0
    %2122 = vmatpush1.msra.mxu0 0.0
    %2123 = vmatprep.subr.mxu0 0.0
    %2124 = vmatpush1.msra.mxu0 0.0
    %2125 = vmatprep.subr.mxu0 0.0
    %2126 = vmatpush1.msra.mxu0 0.0
    %2127 = vmatprep.subr.mxu0 0.0
    %2128 = vmatpush1.msra.mxu0 0.0
    %2129 = vmatprep.subr.mxu0 0.0
    %2130 = vmatpush1.msra.mxu0 0.0
    %2131 = vmatprep.subr.mxu0 0.0
    %2132 = vmatpush1.msra.mxu0 0.0
    %2133 = vmatprep.subr.mxu0 0.0
    %2134 = vmatpush1.msra.mxu0 0.0
    %2135 = vmatprep.subr.mxu0 0.0
    %2136 = vmatpush1.msra.mxu0 0.0
    %2137 = vmatprep.subr.mxu0 0.0
    %2138 = vmatpush1.msra.mxu0 0.0
    %2139 = vmatprep.subr.mxu0 0.0
    %2140 = vmatpush1.msra.mxu0 0.0
    %2141 = vmatprep.subr.mxu0 0.0
    %2142 = vmatpush1.msra.mxu0 0.0
    %2143 = vmatprep.subr.mxu0 0.0
    %2144 = vmatpush1.msra.mxu0 0.0
    %2145 = vmatprep.subr.mxu0 0.0
    %2146 = vmatpush1.msra.mxu0 0.0
    %2147 = vmatprep.subr.mxu0 0.0
    %2148 = vmatpush1.msra.mxu0 0.0
    %2149 = vmatprep.subr.mxu0 0.0
    %2150 = vmatpush1.msra.mxu0 0.0
    %2151 = vmatprep.subr.mxu0 0.0
    %2152 = vmatpush1.msra.mxu0 0.0
    %2153 = vmatprep.subr.mxu0 0.0
    %2154 = vmatpush1.msra.mxu0 0.0
    %2155 = vmatprep.subr.mxu0 0.0
    %2156 = vmatpush1.msra.mxu0 0.0
    %2157 = vmatprep.subr.mxu0 0.0
    %2158 = vmatpush1.msra.mxu0 0.0
    %2159 = vmatprep.subr.mxu0 0.0
    %2160 = vmatpush1.msra.mxu0 0.0
    %2161 = vmatprep.subr.mxu0 0.0
    %2162 = vmatpush1.msra.mxu0 0.0
    %2163 = vmatprep.subr.mxu0 0.0
    %2164 = vmatpush1.msra.mxu0 0.0
    %2165 = vmatprep.subr.mxu0 0.0
    %2166 = vmatpush1.msra.mxu0 0.0
    %2167 = vmatprep.subr.mxu0 0.0
    %2168 = vmatpush1.msra.mxu0 0.0
    %2169 = vmatprep.subr.mxu0 0.0
    %2170 = vmatpush1.msra.mxu0 0.0
    %2171 = vmatprep.mubr.f32.mxu0 0.0
    %2172 = vmatmul.mubr.f32.gmra.mrb[0].mxu0 %v2102
    %v2173 = vpop.f32.mrb[0].mxu0
    %v2174 = vadd.f32 %v2100, %v2173
    %v2175 = vpop.f32.mrb[0].mxu0
    %2176 = vmatprep.mubr.f32.mxu0 0.0
    %2177 = vmatmul.mubr.f32.gmra.mrb[0].mxu0 %v2105
    %v2178 = vpop.f32.mrb[0].mxu0
    %v2179 = vadd.f32 %v2100, %v2178
    %v2180 = vpop.f32.mrb[0].mxu0
    %2181 = vdwg.mxu0
    %s2182 = smul.u32 256, 1
    %s2183 = sshll.u32 %s2182, 4
    %2184 = dma.done [#allocation3], %s2183
    %v2185 = vld [vmem:[#allocation2] sm:$0xff]
    %v2186 = vld [vmem:[#allocation2 + $0x8] sm:$0xff]
    %v2187 = vld [vmem:[#allocation2 + $0x10] sm:$0xff]
    %v2188 = vld [vmem:[#allocation2 + $0x18] sm:$0xff]
    %v2189 = vld [vmem:[#allocation2 + $0x20] sm:$0xff]
    %v2190 = vld [vmem:[#allocation2 + $0x28] sm:$0xff]
    %v2191 = vld [vmem:[#allocation2 + $0x30] sm:$0xff]
    %v2192 = vld [vmem:[#allocation2 + $0x38] sm:$0xff]
    %v2194 = vsel %vm83, %v2174, 0
    %v2197 = vsel %vm83, %v2179, 0
    %2199 = vmatprep.subr.mxu0 0.0
    %2200 = vmatpush1.msra.mxu0 %v2189
    %2201 = vmatprep.subr.mxu0 0.0
    %2202 = vmatpush1.msra.mxu0 %v2190
    %2203 = vmatprep.subr.mxu0 0.0
    %2204 = vmatpush1.msra.mxu0 %v2191
    %2205 = vmatprep.subr.mxu0 0.0
    %2206 = vmatpush1.msra.mxu0 %v2192
    %2207 = vmatprep.subr.mxu0 0.0
    %2208 = vmatpush1.msra.mxu0 0.0
    %2209 = vmatprep.subr.mxu0 0.0
    %2210 = vmatpush1.msra.mxu0 0.0
    %2211 = vmatprep.subr.mxu0 0.0
    %2212 = vmatpush1.msra.mxu0 0.0
    %2213 = vmatprep.subr.mxu0 0.0
    %2214 = vmatpush1.msra.mxu0 0.0
    %2215 = vmatprep.subr.mxu0 0.0
    %2216 = vmatpush1.msra.mxu0 0.0
    %2217 = vmatprep.subr.mxu0 0.0
    %2218 = vmatpush1.msra.mxu0 0.0
    %2219 = vmatprep.subr.mxu0 0.0
    %2220 = vmatpush1.msra.mxu0 0.0
    %2221 = vmatprep.subr.mxu0 0.0
    %2222 = vmatpush1.msra.mxu0 0.0
    %2223 = vmatprep.subr.mxu0 0.0
    %2224 = vmatpush1.msra.mxu0 0.0
    %2225 = vmatprep.subr.mxu0 0.0
    %2226 = vmatpush1.msra.mxu0 0.0
    %2227 = vmatprep.subr.mxu0 0.0
    %2228 = vmatpush1.msra.mxu0 0.0
    %2229 = vmatprep.subr.mxu0 0.0
    %2230 = vmatpush1.msra.mxu0 0.0
    %2231 = vmatprep.subr.mxu0 0.0
    %2232 = vmatpush1.msra.mxu0 0.0
    %2233 = vmatprep.subr.mxu0 0.0
    %2234 = vmatpush1.msra.mxu0 0.0
    %2235 = vmatprep.subr.mxu0 0.0
    %2236 = vmatpush1.msra.mxu0 0.0
    %2237 = vmatprep.subr.mxu0 0.0
    %2238 = vmatpush1.msra.mxu0 0.0
    %2239 = vmatprep.subr.mxu0 0.0
    %2240 = vmatpush1.msra.mxu0 0.0
    %2241 = vmatprep.subr.mxu0 0.0
    %2242 = vmatpush1.msra.mxu0 0.0
    %2243 = vmatprep.subr.mxu0 0.0
    %2244 = vmatpush1.msra.mxu0 0.0
    %2245 = vmatprep.subr.mxu0 0.0
    %2246 = vmatpush1.msra.mxu0 0.0
    %2247 = vmatprep.subr.mxu0 0.0
    %2248 = vmatpush1.msra.mxu0 0.0
    %2249 = vmatprep.subr.mxu0 0.0
    %2250 = vmatpush1.msra.mxu0 0.0
    %2251 = vmatprep.subr.mxu0 0.0
    %2252 = vmatpush1.msra.mxu0 0.0
    %2253 = vmatprep.subr.mxu0 0.0
    %2254 = vmatpush1.msra.mxu0 0.0
    %2255 = vmatprep.subr.mxu0 0.0
    %2256 = vmatpush1.msra.mxu0 0.0
    %2257 = vmatprep.subr.mxu0 0.0
    %2258 = vmatpush1.msra.mxu0 0.0
    %2259 = vmatprep.subr.mxu0 0.0
    %2260 = vmatpush1.msra.mxu0 0.0
    %2261 = vmatprep.subr.mxu0 0.0
    %2262 = vmatpush1.msra.mxu0 0.0
    %2263 = vmatprep.mubr.f32.mxu0 0.0
    %2264 = vmatmul.mubr.f32.gmra.mrb[0].mxu0 %v2194
    %v2265 = vpop.f32.mrb[0].mxu0
    %v2266 = vadd.f32 0.0, %v2265
    %v2267 = vpop.f32.mrb[0].mxu0
    %2268 = vmatprep.mubr.f32.mxu0 0.0
    %2269 = vmatmul.mubr.f32.gmra.mrb[0].mxu0 %v2197
    %v2270 = vpop.f32.mrb[0].mxu0
    %v2271 = vadd.f32 0.0, %v2270
    %v2272 = vpop.f32.mrb[0].mxu0
    %2273 = vdwg.mxu0
    %2274 = vmatprep.subr.mxu0 0.0
    %2275 = vmatpush1.msra.mxu0 %v2185
    %2276 = vmatprep.subr.mxu0 0.0
    %2277 = vmatpush1.msra.mxu0 %v2186
    %2278 = vmatprep.subr.mxu0 0.0
    %2279 = vmatpush1.msra.mxu0 %v2187
    %2280 = vmatprep.subr.mxu0 0.0
    %2281 = vmatpush1.msra.mxu0 %v2188
    %2282 = vmatprep.subr.mxu0 0.0
    %2283 = vmatpush1.msra.mxu0 0.0
    %2284 = vmatprep.subr.mxu0 0.0
    %2285 = vmatpush1.msra.mxu0 0.0
    %2286 = vmatprep.subr.mxu0 0.0
    %2287 = vmatpush1.msra.mxu0 0.0
    %2288 = vmatprep.subr.mxu0 0.0
    %2289 = vmatpush1.msra.mxu0 0.0
    %2290 = vmatprep.subr.mxu0 0.0
    %2291 = vmatpush1.msra.mxu0 0.0
    %2292 = vmatprep.subr.mxu0 0.0
    %2293 = vmatpush1.msra.mxu0 0.0
    %2294 = vmatprep.subr.mxu0 0.0
    %2295 = vmatpush1.msra.mxu0 0.0
    %2296 = vmatprep.subr.mxu0 0.0
    %2297 = vmatpush1.msra.mxu0 0.0
    %2298 = vmatprep.subr.mxu0 0.0
    %2299 = vmatpush1.msra.mxu0 0.0
    %2300 = vmatprep.subr.mxu0 0.0
    %2301 = vmatpush1.msra.mxu0 0.0
    %2302 = vmatprep.subr.mxu0 0.0
    %2303 = vmatpush1.msra.mxu0 0.0
    %2304 = vmatprep.subr.mxu0 0.0
    %2305 = vmatpush1.msra.mxu0 0.0
    %2306 = vmatprep.subr.mxu0 0.0
    %2307 = vmatpush1.msra.mxu0 0.0
    %2308 = vmatprep.subr.mxu0 0.0
    %2309 = vmatpush1.msra.mxu0 0.0
    %2310 = vmatprep.subr.mxu0 0.0
    %2311 = vmatpush1.msra.mxu0 0.0
    %2312 = vmatprep.subr.mxu0 0.0
    %2313 = vmatpush1.msra.mxu0 0.0
    %2314 = vmatprep.subr.mxu0 0.0
    %2315 = vmatpush1.msra.mxu0 0.0
    %2316 = vmatprep.subr.mxu0 0.0
    %2317 = vmatpush1.msra.mxu0 0.0
    %2318 = vmatprep.subr.mxu0 0.0
    %2319 = vmatpush1.msra.mxu0 0.0
    %2320 = vmatprep.subr.mxu0 0.0
    %2321 = vmatpush1.msra.mxu0 0.0
    %2322 = vmatprep.subr.mxu0 0.0
    %2323 = vmatpush1.msra.mxu0 0.0
    %2324 = vmatprep.subr.mxu0 0.0
    %2325 = vmatpush1.msra.mxu0 0.0
    %2326 = vmatprep.subr.mxu0 0.0
    %2327 = vmatpush1.msra.mxu0 0.0
    %2328 = vmatprep.subr.mxu0 0.0
    %2329 = vmatpush1.msra.mxu0 0.0
    %2330 = vmatprep.subr.mxu0 0.0
    %2331 = vmatpush1.msra.mxu0 0.0
    %2332 = vmatprep.subr.mxu0 0.0
    %2333 = vmatpush1.msra.mxu0 0.0
    %2334 = vmatprep.subr.mxu0 0.0
    %2335 = vmatpush1.msra.mxu0 0.0
    %2336 = vmatprep.subr.mxu0 0.0
    %2337 = vmatpush1.msra.mxu0 0.0
    %2338 = vmatprep.mubr.f32.mxu0 0.0
    %2339 = vmatmul.mubr.f32.gmra.mrb[0].mxu0 %v175
    %v2340 = vpop.f32.mrb[0].mxu0
    %v2341 = vadd.f32 %v2266, %v2340
    %v2342 = vpop.f32.mrb[0].mxu0
    %2343 = vmatprep.mubr.f32.mxu0 0.0
    %2344 = vmatmul.mubr.f32.gmra.mrb[0].mxu0 %v178
    %v2345 = vpop.f32.mrb[0].mxu0
    %v2346 = vadd.f32 %v2271, %v2345
    %v2347 = vpop.f32.mrb[0].mxu0
    %2348 = vdwg.mxu0
    %v2349 = vld [vmem:[#allocation2 + $0x40] sm:$0x1]
    %v2350 = vlaneseq
    %v2351 = vshrl.u32 %v2350, 7
    %v2352 = vsub.s32 0, %v2351
    %v2353 = vrot.slane %v2349, %v2352
    %v2354 = vadd.f32 %v2341, %v2353
    %v2355 = vadd.f32 %v2346, %v2353
    %v2356 = vld [vmem:[#allocation2 + $0x48] sm:$0xff]
    %v2357 = vld [vmem:[#allocation2 + $0x50] sm:$0xff]
    %v2358 = vld [vmem:[#allocation2 + $0x58] sm:$0xff]
    %v2359 = vld [vmem:[#allocation2 + $0x60] sm:$0xff]
    %v2360 = vld [vmem:[#allocation2 + $0x68] sm:$0x1]
    %v2361 = vlaneseq
    %v2362 = vshrl.u32 %v2361, 7
    %v2363 = vsub.s32 0, %v2362
    %v2364 = vrot.slane %v2360, %v2363
    %v2366 = vsel %vm83, %v2354, 0
    %v2369 = vsel %vm83, %v2355, 0
    %2371 = vmatprep.subr.mxu0 0.0
    %2372 = vmatpush1.msra.mxu0 %v2356
    %2373 = vmatprep.subr.mxu0 0.0
    %2374 = vmatpush1.msra.mxu0 %v2357
    %2375 = vmatprep.subr.mxu0 0.0
    %2376 = vmatpush1.msra.mxu0 %v2358
    %2377 = vmatprep.subr.mxu0 0.0
    %2378 = vmatpush1.msra.mxu0 %v2359
    %2379 = vmatprep.subr.mxu0 0.0
    %2380 = vmatpush1.msra.mxu0 0.0
    %2381 = vmatprep.subr.mxu0 0.0
    %2382 = vmatpush1.msra.mxu0 0.0
    %2383 = vmatprep.subr.mxu0 0.0
    %2384 = vmatpush1.msra.mxu0 0.0
    %2385 = vmatprep.subr.mxu0 0.0
    %2386 = vmatpush1.msra.mxu0 0.0
    %2387 = vmatprep.subr.mxu0 0.0
    %2388 = vmatpush1.msra.mxu0 0.0
    %2389 = vmatprep.subr.mxu0 0.0
    %2390 = vmatpush1.msra.mxu0 0.0
    %2391 = vmatprep.subr.mxu0 0.0
    %2392 = vmatpush1.msra.mxu0 0.0
    %2393 = vmatprep.subr.mxu0 0.0
    %2394 = vmatpush1.msra.mxu0 0.0
    %2395 = vmatprep.subr.mxu0 0.0
    %2396 = vmatpush1.msra.mxu0 0.0
    %2397 = vmatprep.subr.mxu0 0.0
    %2398 = vmatpush1.msra.mxu0 0.0
    %2399 = vmatprep.subr.mxu0 0.0
    %2400 = vmatpush1.msra.mxu0 0.0
    %2401 = vmatprep.subr.mxu0 0.0
    %2402 = vmatpush1.msra.mxu0 0.0
    %2403 = vmatprep.subr.mxu0 0.0
    %2404 = vmatpush1.msra.mxu0 0.0
    %2405 = vmatprep.subr.mxu0 0.0
    %2406 = vmatpush1.msra.mxu0 0.0
    %2407 = vmatprep.subr.mxu0 0.0
    %2408 = vmatpush1.msra.mxu0 0.0
    %2409 = vmatprep.subr.mxu0 0.0
    %2410 = vmatpush1.msra.mxu0 0.0
    %2411 = vmatprep.subr.mxu0 0.0
    %2412 = vmatpush1.msra.mxu0 0.0
    %2413 = vmatprep.subr.mxu0 0.0
    %2414 = vmatpush1.msra.mxu0 0.0
    %2415 = vmatprep.subr.mxu0 0.0
    %2416 = vmatpush1.msra.mxu0 0.0
    %2417 = vmatprep.subr.mxu0 0.0
    %2418 = vmatpush1.msra.mxu0 0.0
    %2419 = vmatprep.subr.mxu0 0.0
    %2420 = vmatpush1.msra.mxu0 0.0
    %2421 = vmatprep.subr.mxu0 0.0
    %2422 = vmatpush1.msra.mxu0 0.0
    %2423 = vmatprep.subr.mxu0 0.0
    %2424 = vmatpush1.msra.mxu0 0.0
    %2425 = vmatprep.subr.mxu0 0.0
    %2426 = vmatpush1.msra.mxu0 0.0
    %2427 = vmatprep.subr.mxu0 0.0
    %2428 = vmatpush1.msra.mxu0 0.0
    %2429 = vmatprep.subr.mxu0 0.0
    %2430 = vmatpush1.msra.mxu0 0.0
    %2431 = vmatprep.subr.mxu0 0.0
    %2432 = vmatpush1.msra.mxu0 0.0
    %2433 = vmatprep.subr.mxu0 0.0
    %2434 = vmatpush1.msra.mxu0 0.0
    %2435 = vmatprep.mubr.f32.mxu0 0.0
    %2436 = vmatmul.mubr.f32.gmra.mrb[0].mxu0 %v2366
    %v2437 = vpop.f32.mrb[0].mxu0
    %v2438 = vadd.f32 %v2364, %v2437
    %v2439 = vpop.f32.mrb[0].mxu0
    %2440 = vmatprep.mubr.f32.mxu0 0.0
    %2441 = vmatmul.mubr.f32.gmra.mrb[0].mxu0 %v2369
    %v2442 = vpop.f32.mrb[0].mxu0
    %v2443 = vadd.f32 %v2364, %v2442
    %v2444 = vpop.f32.mrb[0].mxu0
    %2445 = vdwg.mxu0
    %v2446 = vmul.f32 %v2438, 0.5
    %v2447 = vmul.f32 %v2443, 0.5
    %v2448 = vmul.f32 %v2438, 0.70710677
    %v2449 = vmul.f32 %v2443, 0.70710677
    %v2450 = vand.u32 2147483647, %v2448
    %v2451 = vand.u32 2147483647, %v2449
    %v2452 = vmul.f32 %v2450, 0.3275911
    %v2453 = vmul.f32 %v2451, 0.3275911
    %v2454 = vadd.f32 %v2452, 1.0
    %v2455 = vadd.f32 %v2453, 1.0
    %v2456 = vrcp.pop %v2454
    %v2457 = vrcp.pop %v2455
    %v2458 = vmul.f32 %v2456, 1.0614054
    %v2459 = vmul.f32 %v2457, 1.0614054
    %v2460 = vadd.f32 %v2458, -1.4531521
    %v2461 = vadd.f32 %v2459, -1.4531521
    %v2462 = vmul.f32 %v2460, %v2456
    %v2463 = vmul.f32 %v2461, %v2457
    %v2464 = vadd.f32 %v2462, 1.4214138
    %v2465 = vadd.f32 %v2463, 1.4214138
    %v2466 = vmul.f32 %v2464, %v2456
    %v2467 = vmul.f32 %v2465, %v2457
    %v2468 = vadd.f32 %v2466, -0.28449672
    %v2469 = vadd.f32 %v2467, -0.28449672
    %v2470 = vmul.f32 %v2468, %v2456
    %v2471 = vmul.f32 %v2469, %v2457
    %v2472 = vadd.f32 %v2470, 0.2548296
    %v2473 = vadd.f32 %v2471, 0.2548296
    %v2474 = vmul.f32 %v2472, %v2456
    %v2475 = vmul.f32 %v2473, %v2457
    %v2476 = vsub.f32 0.0, %v2450
    %v2477 = vsub.f32 0.0, %v2451
    %v2478 = vmul.f32 %v2476, %v2450
    %v2479 = vmul.f32 %v2477, %v2451
    %v2480 = vmul.f32 %v2478, 1.442695
    %v2481 = vpow.pop %v2480
    %v2482 = vmul.f32 %v2479, 1.442695
    %v2483 = vpow.pop %v2482
    %v2484 = vmul.f32 %v2474, %v2481
    %v2485 = vmul.f32 %v2475, %v2483
    %v2486 = vsub.f32 1.0, %v2484
    %v2487 = vsub.f32 1.0, %v2485
    %vm2488 = vcmp.ge.f32.partialorder %v2448, 0.0
    %vm2489 = vcmp.ge.f32.partialorder %v2449, 0.0
    %v2490 = vsub.f32 0.0, %v2486
    %v2491 = vsub.f32 0.0, %v2487
    %v2492 = vsel %vm2488, %v2486, %v2490
    %v2493 = vsel %vm2489, %v2487, %v2491
    %v2494 = vadd.f32 %v2492, 1.0
    %v2495 = vadd.f32 %v2493, 1.0
    %v2496 = vmul.f32 %v2446, %v2494
    %v2497 = vmul.f32 %v2447, %v2495
    %v2498 = vld [vmem:[#allocation2 + $0x70] sm:$0xff]
    %v2499 = vld [vmem:[#allocation2 + $0x78] sm:$0xff]
    %v2500 = vld [vmem:[#allocation2 + $0x80] sm:$0xff]
    %v2501 = vld [vmem:[#allocation2 + $0x88] sm:$0xff]
    %v2502 = vld [vmem:[#allocation2 + $0x90] sm:$0xff]
    %v2503 = vld [vmem:[#allocation2 + $0x98] sm:$0xff]
    %v2504 = vld [vmem:[#allocation2 + $0xa0] sm:$0xff]
    %v2505 = vld [vmem:[#allocation2 + $0xa8] sm:$0xff]
    %v2506 = vld [vmem:[#allocation2 + $0xb0] sm:$0xff]
    %v2507 = vld [vmem:[#allocation2 + $0xb8] sm:$0xff]
    %v2508 = vld [vmem:[#allocation2 + $0xc0] sm:$0xff]
    %v2509 = vld [vmem:[#allocation2 + $0xc8] sm:$0xff]
    %v2510 = vld [vmem:[#allocation2 + $0xd0] sm:$0xff]
    %v2511 = vld [vmem:[#allocation2 + $0xd8] sm:$0xff]
    %v2512 = vld [vmem:[#allocation2 + $0xe0] sm:$0xff]
    %v2513 = vld [vmem:[#allocation2 + $0xe8] sm:$0xff]
    %v2514 = vld [vmem:[#allocation2 + $0xf0] sm:$0x1]
    %v2515 = vlaneseq
    %v2516 = vshrl.u32 %v2515, 7
    %v2517 = vsub.s32 0, %v2516
    %v2518 = vrot.slane %v2514, %v2517
    %2519 = vmatprep.subr.mxu0 0.0
    %2520 = vmatpush1.msra.mxu0 %v2498
    %2521 = vmatprep.subr.mxu0 0.0
    %2522 = vmatpush1.msra.mxu0 %v2499
    %2523 = vmatprep.subr.mxu0 0.0
    %2524 = vmatpush1.msra.mxu0 %v2500
    %2525 = vmatprep.subr.mxu0 0.0
    %2526 = vmatpush1.msra.mxu0 %v2501
    %2527 = vmatprep.subr.mxu0 0.0
    %2528 = vmatpush1.msra.mxu0 %v2502
    %2529 = vmatprep.subr.mxu0 0.0
    %2530 = vmatpush1.msra.mxu0 %v2503
    %2531 = vmatprep.subr.mxu0 0.0
    %2532 = vmatpush1.msra.mxu0 %v2504
    %2533 = vmatprep.subr.mxu0 0.0
    %2534 = vmatpush1.msra.mxu0 %v2505
    %2535 = vmatprep.subr.mxu0 0.0
    %2536 = vmatpush1.msra.mxu0 %v2506
    %2537 = vmatprep.subr.mxu0 0.0
    %2538 = vmatpush1.msra.mxu0 %v2507
    %2539 = vmatprep.subr.mxu0 0.0
    %2540 = vmatpush1.msra.mxu0 %v2508
    %2541 = vmatprep.subr.mxu0 0.0
    %2542 = vmatpush1.msra.mxu0 %v2509
    %2543 = vmatprep.subr.mxu0 0.0
    %2544 = vmatpush1.msra.mxu0 %v2510
    %2545 = vmatprep.subr.mxu0 0.0
    %2546 = vmatpush1.msra.mxu0 %v2511
    %2547 = vmatprep.subr.mxu0 0.0
    %2548 = vmatpush1.msra.mxu0 %v2512
    %2549 = vmatprep.subr.mxu0 0.0
    %2550 = vmatpush1.msra.mxu0 %v2513
    %2551 = vmatprep.subr.mxu0 0.0
    %2552 = vmatpush1.msra.mxu0 0.0
    %2553 = vmatprep.subr.mxu0 0.0
    %2554 = vmatpush1.msra.mxu0 0.0
    %2555 = vmatprep.subr.mxu0 0.0
    %2556 = vmatpush1.msra.mxu0 0.0
    %2557 = vmatprep.subr.mxu0 0.0
    %2558 = vmatpush1.msra.mxu0 0.0
    %2559 = vmatprep.subr.mxu0 0.0
    %2560 = vmatpush1.msra.mxu0 0.0
    %2561 = vmatprep.subr.mxu0 0.0
    %2562 = vmatpush1.msra.mxu0 0.0
    %2563 = vmatprep.subr.mxu0 0.0
    %2564 = vmatpush1.msra.mxu0 0.0
    %2565 = vmatprep.subr.mxu0 0.0
    %2566 = vmatpush1.msra.mxu0 0.0
    %2567 = vmatprep.subr.mxu0 0.0
    %2568 = vmatpush1.msra.mxu0 0.0
    %2569 = vmatprep.subr.mxu0 0.0
    %2570 = vmatpush1.msra.mxu0 0.0
    %2571 = vmatprep.subr.mxu0 0.0
    %2572 = vmatpush1.msra.mxu0 0.0
    %2573 = vmatprep.subr.mxu0 0.0
    %2574 = vmatpush1.msra.mxu0 0.0
    %2575 = vmatprep.subr.mxu0 0.0
    %2576 = vmatpush1.msra.mxu0 0.0
    %2577 = vmatprep.subr.mxu0 0.0
    %2578 = vmatpush1.msra.mxu0 0.0
    %2579 = vmatprep.subr.mxu0 0.0
    %2580 = vmatpush1.msra.mxu0 0.0
    %2581 = vmatprep.subr.mxu0 0.0
    %2582 = vmatpush1.msra.mxu0 0.0
    %2583 = vmatprep.mubr.f32.mxu0 0.0
    %2584 = vmatmul.mubr.f32.gmra.mrb[0].mxu0 %v2496
    %v2585 = vpop.f32.mrb[0].mxu0
    %v2586 = vadd.f32 %v2518, %v2585
    %v2587 = vpop.f32.mrb[0].mxu0
    %2588 = vmatprep.mubr.f32.mxu0 0.0
    %2589 = vmatmul.mubr.f32.gmra.mrb[0].mxu0 %v2497
    %v2590 = vpop.f32.mrb[0].mxu0
    %v2591 = vadd.f32 %v2518, %v2590
    %v2592 = vpop.f32.mrb[0].mxu0
    %2593 = vdwg.mxu0
    %v2594 = vadd.f32 %v70, %v2586
    %v2595 = vadd.f32 %v71, %v2591
    %v2596 = vsel %vm83, %v2594, 0.0
    %2597 = vadd.xlane.f32.xlu0 %v2596
    %v2598 = vpop.xlane.xlu0 %2597
    %v2599 = vsel %vm83, %v2595, 0.0
    %2600 = vadd.xlane.f32.xlu0 %v2599
    %v2601 = vpop.xlane.xlu0 %2600
    %v2602 = vrcp.pop 32.0
    %v2603 = vmul.f32 %v2598, %v2602
    %v2604 = vmul.f32 %v2601, %v2602
    %v2605 = vsub.f32 %v2594, %v2603
    %v2606 = vsub.f32 %v2595, %v2604
    %v2607 = vmul.f32 %v2605, %v2605
    %v2608 = vmul.f32 %v2606, %v2606
    %v2609 = vsel %vm83, %v2607, 0.0
    %2610 = vadd.xlane.f32.xlu0 %v2609
    %v2611 = vpop.xlane.xlu0 %2610
    %v2612 = vsel %vm83, %v2608, 0.0
    %2613 = vadd.xlane.f32.xlu0 %v2612
    %v2614 = vpop.xlane.xlu0 %2613
    %v2615 = vmul.f32 %v2611, %v2602
    %v2616 = vmul.f32 %v2614, %v2602
    %v2617 = vadd.f32 %v2615, 1e-05
    %v2618 = vadd.f32 %v2616, 1e-05
    %v2619 = vrsqrt.pop %v2617
    %v2620 = vrsqrt.pop %v2618
    %v2621 = vmul.f32 %v2605, %v2619
    %v2622 = vmul.f32 %v2606, %v2620
    %v2623 = vld [vmem:[#allocation2 + $0xf8] sm:$0x1]
    %v2624 = vlaneseq
    %v2625 = vshrl.u32 %v2624, 7
    %v2626 = vsub.s32 0, %v2625
    %v2627 = vrot.slane %v2623, %v2626
    %v2628 = vmul.f32 %v2621, %v2627
    %v2629 = vmul.f32 %v2622, %v2627
    %v2630 = vld [vmem:[#allocation2 + $0xf9] sm:$0x1]
    %v2631 = vlaneseq
    %v2632 = vshrl.u32 %v2631, 7
    %v2633 = vsub.s32 0, %v2632
    %v2634 = vrot.slane %v2630, %v2633
    %v2635 = vadd.f32 %v2628, %v2634
    %v2636 = vadd.f32 %v2629, %v2634
    %2637 = vst.msk [vmem:[#allocation10] sm:$0xff] %vm83, %v2635
    %2638 = vst.msk [vmem:[#allocation10 + $0x8] sm:$0xff] %vm83, %v2636
    // Predicated region
    $region30: #{_forward.1} parent=1 // pred_check
      _
    $region31: #{_forward.1} parent=1 // pred_check_branch
      %2640 = sbr.rel (0) target = $region33
    $region32: #{_forward.1} parent=1 // pred_region
      %s2642 = ssub.s32 256, 256
      %2643 = vsyncadd [#allocation6], %s2642
      %s2644 = sshll.u32 [#allocation10], 4
      %s2645 = int_to_ptr.vmem [resolvable:$true] %s2644
      %2650 = dma.vmem_to_hbm [thread:$0]  %s2645, 256, %s4, [#allocation6], 128, 128, 8
    $region33: #{_forward.1} parent=1 // pred_fallthru
      _
    // Predicated region
    $region34: #{_forward.1} parent=1 // pred_check
      _
    $region35: #{_forward.1} parent=1 // pred_check_branch
      %2652 = sbr.rel (0) target = $region37
    $region36: #{_forward.1} parent=1 // pred_region
      %2653 = dma.done [#allocation6], 256
    $region37: #{_forward.1} parent=1 // pred_fallthru
      _
    %2654 = vsyncpa [#allocation5], 1
    %2655 = vsyncpa [#allocation8], 1
    %2656 = vsyncpa [#allocation6], 1
  %2657 = vsyncmov [#allocation3]
  %s2658 = vpop.sfrf %2657
  %p2659 = scmp.eq.s32.totalorder %s2658, 0
  %p2660 = pneg %p2659
  %2662 = shalt.err (%p2660)

</llo_original>
